<compile_context>
chip_gen: v7x
topology: tpu7x:2x2x1
jax: 0.10.0
libtpu: 0.0.40
codegen_flags: <defaults>
</compile_context>

<pallas_src>
import functools

import jax
import jax.numpy as jnp
from jax.experimental import pallas as pl
from jax.experimental.pallas import tpu as pltpu

EPS = 1e-5  # nn.BatchNorm2d default eps


def _round_up(x, m):
    return ((x + m - 1) // m) * m


# ----------------------------- Pallas kernels ------------------------------ #

def _conv_bn_kernel(w_ref, p_ref, s_ref, b_ref, o_ref, *, relu):
    # w_ref: (Cout, Kp) bf16, p_ref: (Kp, tm) bf16, s/b_ref: (Cout, 1) f32.
    # Output block (Cout, tm) is lane-dense: tm (flattened spatial) on lanes.
    acc = jnp.dot(w_ref[...], p_ref[...], preferred_element_type=jnp.float32)
    y = acc * s_ref[...] + b_ref[...]
    if relu:
        y = jnp.maximum(y, 0.0)
    o_ref[...] = y.astype(o_ref.dtype)


def _maxpool_relu_kernel(v_ref, o_ref):
    # v_ref: (9, C, tm) window views; max over the 9 windows, then ReLU.
    o_ref[...] = jnp.maximum(jnp.max(v_ref[...], axis=0), 0.0).astype(o_ref.dtype)


# ------------------------------ layer wrappers ----------------------------- #

def conv_bn(x, w, conv_b, gamma, beta, mean, var, *, stride=1, relu=False,
            tm_max=2048):
    """Conv2d (valid, given stride) + folded BatchNorm + optional ReLU.

    x: (Cin, N, H, W) channel-major float32
    w: (Cout, Cin, KH, KW)  (PyTorch layout)
    returns: (Cout, N, Ho, Wo) float32
    """
    Cin, N, H, W = x.shape
    Cout, _, KH, KW = w.shape
    Ho = (H - KH) // stride + 1
    Wo = (W - KW) // stride + 1
    M = N * Ho * Wo
    K = KH * KW * Cin

    # im2col in channel-major layout (XLA glue): (K, M), row order (i, j, c).
    views = []
    for i in range(KH):
        for j in range(KW):
            views.append(x[:, :,
                           i:i + stride * (Ho - 1) + 1:stride,
                           j:j + stride * (Wo - 1) + 1:stride])
    patches = jnp.stack(views, axis=0).reshape(K, M)

    # Pad K and M to lane multiples; pick a tile size over M.
    Kp = _round_up(K, 128)
    Mp = _round_up(M, 128)
    tm = min(Mp, tm_max)
    Mp = _round_up(M, tm)
    patches = jnp.pad(patches, ((0, Kp - K), (0, Mp - M))).astype(jnp.bfloat16)

    # Weight as (Cout, K) matching the (i, j, c) patch-row order.
    wm = jnp.transpose(w, (0, 2, 3, 1)).reshape(Cout, K)
    wm = jnp.pad(wm, ((0, 0), (0, Kp - K))).astype(jnp.bfloat16)

    # Fold conv bias + BN (running stats) into per-channel scale/shift (f32).
    scale = gamma / jnp.sqrt(var + EPS)
    shift = (conv_b - mean) * scale + beta
    scale = scale.reshape(Cout, 1).astype(jnp.float32)
    shift = shift.reshape(Cout, 1).astype(jnp.float32)

    out = pl.pallas_call(
        functools.partial(_conv_bn_kernel, relu=relu),
        out_shape=jax.ShapeDtypeStruct((Cout, Mp), jnp.float32),
        grid=(Mp // tm,),
        in_specs=[
            pl.BlockSpec((Cout, Kp), lambda i: (0, 0)),
            pl.BlockSpec((Kp, tm), lambda i: (0, i)),
            pl.BlockSpec((Cout, 1), lambda i: (0, 0)),
            pl.BlockSpec((Cout, 1), lambda i: (0, 0)),
        ],
        out_specs=pl.BlockSpec((Cout, tm), lambda i: (0, i)),
        compiler_params=pltpu.CompilerParams(dimension_semantics=("parallel",)),
    )(wm, patches, scale, shift)

    return out[:, :M].reshape(Cout, N, Ho, Wo)


def maxpool_relu(x, *, k=3, s=2):
    """MaxPool2d(kernel=3, stride=2) followed by ReLU (PyTorch op order).

    x: (C, N, H, W) float32 -> (C, N, Ho, Wo) float32
    """
    C, N, H, W = x.shape
    Ho = (H - k) // s + 1
    Wo = (W - k) // s + 1
    M = N * Ho * Wo

    views = [x[:, :, i:i + s * (Ho - 1) + 1:s, j:j + s * (Wo - 1) + 1:s]
             for i in range(k) for j in range(k)]
    v = jnp.stack(views, axis=0).reshape(k * k, C, M)

    Mp = _round_up(M, 128)
    tm = Mp  # pooled M is tiny at this width; a single lane-dense grid step
    v = jnp.pad(v, ((0, 0), (0, 0), (0, Mp - M)))

    out = pl.pallas_call(
        _maxpool_relu_kernel,
        out_shape=jax.ShapeDtypeStruct((C, Mp), jnp.float32),
        grid=(Mp // tm,),
        in_specs=[pl.BlockSpec((k * k, C, tm), lambda i: (0, 0, i))],
        out_specs=pl.BlockSpec((C, tm), lambda i: (0, i)),
        compiler_params=pltpu.CompilerParams(dimension_semantics=("parallel",)),
    )(v)

    return out[:, :M].reshape(C, N, Ho, Wo)


# --------------------------- model parameters/init ------------------------- #

def init_params(key, width_mult=1.0 / 16.0):
    # configs = [3, 96, 256, 384, 384, 256], first entry stays 3
    base = [3, 96, 256, 384, 384, 256]
    cfg = [3 if c == 3 else int(c * width_mult) for c in base]
    # (Cin, Cout, kernel)
    specs = [
        (cfg[0], cfg[1], 11),
        (cfg[1], cfg[2], 5),
        (cfg[2], cfg[3], 3),
        (cfg[3], cfg[4], 3),
        (cfg[4], cfg[5], 3),
    ]
    params = []
    for (cin, cout, k) in specs:
        key, k1, k2, k3, k4, k5, k6 = jax.random.split(key, 7)
        params.append(dict(
            w=0.05 * jax.random.normal(k1, (cout, cin, k, k), jnp.float32),
            b=0.05 * jax.random.normal(k2, (cout,), jnp.float32),
            gamma=1.0 + 0.1 * jax.random.normal(k3, (cout,), jnp.float32),
            beta=0.1 * jax.random.normal(k4, (cout,), jnp.float32),
            mean=0.1 * jax.random.normal(k5, (cout,), jnp.float32),
            var=jax.random.uniform(k6, (cout,), jnp.float32, 0.5, 1.5),
        ))
    return params


# -------------------------------- forward ---------------------------------- #

def alexnet_legacy_forward(x_nchw, params):
    """x_nchw: (N, 3, H, W) float32 -> (N, cfg[5], H', W') float32 (NCHW)."""
    # NCHW -> channel-major (C, N, H, W)
    x = jnp.transpose(x_nchw, (1, 0, 2, 3)).astype(jnp.float32)

    # features[0:4]:  Conv(11, s2) -> BN -> MaxPool(3,2) -> ReLU
    p = params[0]
    x = conv_bn(x, p["w"], p["b"], p["gamma"], p["beta"], p["mean"], p["var"],
                stride=2, relu=False)
    x = maxpool_relu(x)

    # features[4:8]:  Conv(5) -> BN -> MaxPool(3,2) -> ReLU
    p = params[1]
    x = conv_bn(x, p["w"], p["b"], p["gamma"], p["beta"], p["mean"], p["var"],
                stride=1, relu=False)
    x = maxpool_relu(x)

    # features[8:11]: Conv(3) -> BN -> ReLU
    p = params[2]
    x = conv_bn(x, p["w"], p["b"], p["gamma"], p["beta"], p["mean"], p["var"],
                stride=1, relu=True)

    # features[11:14]: Conv(3) -> BN -> ReLU
    p = params[3]
    x = conv_bn(x, p["w"], p["b"], p["gamma"], p["beta"], p["mean"], p["var"],
                stride=1, relu=True)

    # features[14:16]: Conv(3) -> BN
    p = params[4]
    x = conv_bn(x, p["w"], p["b"], p["gamma"], p["beta"], p["mean"], p["var"],
                stride=1, relu=False)

    # channel-major back to NCHW
    return jnp.transpose(x, (1, 0, 2, 3))


# ---------------------------------- main ------------------------------------ #

if __name__ == "__main__":
    key = jax.random.PRNGKey(0)
    key, pkey, xkey = jax.random.split(key, 3)

    # width_mult = 1/16 -> channels [3, 6, 16, 24, 24, 16]; input 95x95 is the
    # smallest convenient size that survives all stride-2 / valid-conv stages
    # (output spatial = 2x2).
    params = init_params(pkey, width_mult=1.0 / 16.0)
    x = jax.random.normal(xkey, (2, 3, 95, 95), jnp.float32)

    fwd = jax.jit(alexnet_legacy_forward)
    out = jax.block_until_ready(fwd(x, params))

    assert out.shape == (2, 16, 2, 2), out.shape
    print("KERNEL_OK")
</pallas_src>

<mosaic_0001>
module attributes {stable_mosaic.version = 11 : i64} {
  func.func @_conv_bn_kernel(%arg0: i32, %arg1: memref<6x384xbf16, #tpu.memory_space<vmem>>, %arg2: memref<384x2048xbf16, #tpu.memory_space<vmem>>, %arg3: memref<6x1xf32, #tpu.memory_space<vmem>>, %arg4: memref<6x1xf32, #tpu.memory_space<vmem>>, %arg5: memref<6x2048xf32, #tpu.memory_space<vmem>>) attributes {dimension_semantics = [#tpu.dimension_semantics<parallel>], iteration_bounds = array<i64: 2>, scalar_prefetch = 0 : i64, scratch_operands = 0 : i64, tpu.core_type = #tpu.core_type<tc>, window_params = [{pipeline_mode = #tpu.pipeline_mode<synchronous>, transform_indices = @transform_0, window_bounds = array<i64: 6, 384>}, {transform_indices = @transform_1, window_bounds = array<i64: 384, 2048>}, {pipeline_mode = #tpu.pipeline_mode<synchronous>, transform_indices = @transform_2, window_bounds = array<i64: 6, 1>}, {pipeline_mode = #tpu.pipeline_mode<synchronous>, transform_indices = @transform_3, window_bounds = array<i64: 6, 1>}, {transform_indices = @transform_4, window_bounds = array<i64: 6, 2048>}]} {
    %c0 = arith.constant 0 : index
    %c0_0 = arith.constant 0 : index
    %0 = vector.load %arg1[%c0, %c0_0] : memref<6x384xbf16, #tpu.memory_space<vmem>>, vector<6x384xbf16>
    %c0_1 = arith.constant 0 : index
    %c0_2 = arith.constant 0 : index
    %1 = vector.load %arg2[%c0_1, %c0_2] : memref<384x2048xbf16, #tpu.memory_space<vmem>>, vector<384x2048xbf16>
    %cst = arith.constant dense<0.000000e+00> : vector<6x2048xf32>
    %2 = tpu.matmul %0, %1, %cst {dimension_numbers = #tpu.dot_dimension_numbers<[1], [0], [0], [1], [0, 0, 1, 1], [], []>} : vector<6x384xbf16>, vector<384x2048xbf16>, vector<6x2048xf32> -> vector<6x2048xf32>
    %c0_3 = arith.constant 0 : index
    %c0_4 = arith.constant 0 : index
    %3 = vector.load %arg3[%c0_3, %c0_4] : memref<6x1xf32, #tpu.memory_space<vmem>>, vector<6x1xf32>
    %4 = vector.broadcast %3 : vector<6x1xf32> to vector<6x2048xf32>
    %5 = arith.mulf %2, %4 : vector<6x2048xf32>
    %c0_5 = arith.constant 0 : index
    %c0_6 = arith.constant 0 : index
    %6 = vector.load %arg4[%c0_5, %c0_6] : memref<6x1xf32, #tpu.memory_space<vmem>>, vector<6x1xf32>
    %7 = vector.broadcast %6 : vector<6x1xf32> to vector<6x2048xf32>
    %8 = arith.addf %5, %7 : vector<6x2048xf32>
    %c0_7 = arith.constant 0 : index
    %c0_8 = arith.constant 0 : index
    %9 = vector.load %arg5[%c0_7, %c0_8] : memref<6x2048xf32, #tpu.memory_space<vmem>>, vector<6x2048xf32>
    tpu.vector_store %arg5[%c0_7, %c0_8], %8 {strides = array<i32>} : memref<6x2048xf32, #tpu.memory_space<vmem>>, vector<6x2048xf32>,
    return
  }
  func.func @transform_0(%arg0: i32) -> (i32, i32) {
    %c0_i32 = arith.constant 0 : i32
    %c0_i32_0 = arith.constant 0 : i32
    %c0_i32_1 = arith.constant 0 : i32
    return %c0_i32, %c0_i32_0 : i32, i32
  }
  func.func @transform_1(%arg0: i32) -> (i32, i32) {
    %c0_i32 = arith.constant 0 : i32
    %c0_i32_0 = arith.constant 0 : i32
    return %c0_i32, %arg0 : i32, i32
  }
  func.func @transform_2(%arg0: i32) -> (i32, i32) {
    %c0_i32 = arith.constant 0 : i32
    %c0_i32_0 = arith.constant 0 : i32
    %c0_i32_1 = arith.constant 0 : i32
    return %c0_i32, %c0_i32_0 : i32, i32
  }
  func.func @transform_3(%arg0: i32) -> (i32, i32) {
    %c0_i32 = arith.constant 0 : i32
    %c0_i32_0 = arith.constant 0 : i32
    %c0_i32_1 = arith.constant 0 : i32
    return %c0_i32, %c0_i32_0 : i32, i32
  }
  func.func @transform_4(%arg0: i32) -> (i32, i32) {
    %c0_i32 = arith.constant 0 : i32
    %c0_i32_0 = arith.constant 0 : i32
    return %c0_i32, %arg0 : i32, i32
  }
}

module attributes {stable_mosaic.version = 11 : i64} {
  func.func @_maxpool_relu_kernel(%arg0: i32, %arg1: memref<9x6x896xf32, #tpu.memory_space<vmem>>, %arg2: memref<6x896xf32, #tpu.memory_space<vmem>>) attributes {dimension_semantics = [#tpu.dimension_semantics<parallel>], iteration_bounds = array<i64: 1>, scalar_prefetch = 0 : i64, scratch_operands = 0 : i64, tpu.core_type = #tpu.core_type<tc>, window_params = [{transform_indices = @transform_0, window_bounds = array<i64: 9, 6, 896>}, {transform_indices = @transform_1, window_bounds = array<i64: 6, 896>}]} {
    %c0 = arith.constant 0 : index
    %c0_0 = arith.constant 0 : index
    %c0_1 = arith.constant 0 : index
    %0 = vector.load %arg1[%c0, %c0_0, %c0_1] : memref<9x6x896xf32, #tpu.memory_space<vmem>>, vector<9x6x896xf32>
    %cst = arith.constant dense<0xFF800000> : vector<6x896xf32>
    %1 = vector.multi_reduction <maximumf>, %0, %cst [0] : vector<9x6x896xf32> to vector<6x896xf32>
    %cst_2 = arith.constant 0.000000e+00 : f32
    %2 = vector.broadcast %cst_2 : f32 to vector<6x896xf32>
    %3 = arith.maximumf %1, %2 : vector<6x896xf32>
    %c0_3 = arith.constant 0 : index
    %c0_4 = arith.constant 0 : index
    %4 = vector.load %arg2[%c0_3, %c0_4] : memref<6x896xf32, #tpu.memory_space<vmem>>, vector<6x896xf32>
    tpu.vector_store %arg2[%c0_3, %c0_4], %3 {strides = array<i32>} : memref<6x896xf32, #tpu.memory_space<vmem>>, vector<6x896xf32>,
    return
  }
  func.func @transform_0(%arg0: i32) -> (i32, i32, i32) {
    %c0_i32 = arith.constant 0 : i32
    %c0_i32_0 = arith.constant 0 : i32
    %c0_i32_1 = arith.constant 0 : i32
    return %c0_i32, %c0_i32_0, %arg0 : i32, i32, i32
  }
  func.func @transform_1(%arg0: i32) -> (i32, i32) {
    %c0_i32 = arith.constant 0 : i32
    %c0_i32_0 = arith.constant 0 : i32
    return %c0_i32, %arg0 : i32, i32
  }
}

module attributes {stable_mosaic.version = 11 : i64} {
  func.func @_conv_bn_kernel(%arg0: i32, %arg1: memref<16x256xbf16, #tpu.memory_space<vmem>>, %arg2: memref<256x640xbf16, #tpu.memory_space<vmem>>, %arg3: memref<16x1xf32, #tpu.memory_space<vmem>>, %arg4: memref<16x1xf32, #tpu.memory_space<vmem>>, %arg5: memref<16x640xf32, #tpu.memory_space<vmem>>) attributes {dimension_semantics = [#tpu.dimension_semantics<parallel>], iteration_bounds = array<i64: 1>, scalar_prefetch = 0 : i64, scratch_operands = 0 : i64, tpu.core_type = #tpu.core_type<tc>, window_params = [{pipeline_mode = #tpu.pipeline_mode<synchronous>, transform_indices = @transform_0, window_bounds = array<i64: 16, 256>}, {transform_indices = @transform_1, window_bounds = array<i64: 256, 640>}, {pipeline_mode = #tpu.pipeline_mode<synchronous>, transform_indices = @transform_2, window_bounds = array<i64: 16, 1>}, {pipeline_mode = #tpu.pipeline_mode<synchronous>, transform_indices = @transform_3, window_bounds = array<i64: 16, 1>}, {transform_indices = @transform_4, window_bounds = array<i64: 16, 640>}]} {
    %c0 = arith.constant 0 : index
    %c0_0 = arith.constant 0 : index
    %0 = vector.load %arg1[%c0, %c0_0] : memref<16x256xbf16, #tpu.memory_space<vmem>>, vector<16x256xbf16>
    %c0_1 = arith.constant 0 : index
    %c0_2 = arith.constant 0 : index
    %1 = vector.load %arg2[%c0_1, %c0_2] : memref<256x640xbf16, #tpu.memory_space<vmem>>, vector<256x640xbf16>
    %cst = arith.constant dense<0.000000e+00> : vector<16x640xf32>
    %2 = tpu.matmul %0, %1, %cst {dimension_numbers = #tpu.dot_dimension_numbers<[1], [0], [0], [1], [0, 0, 1, 1], [], []>} : vector<16x256xbf16>, vector<256x640xbf16>, vector<16x640xf32> -> vector<16x640xf32>
    %c0_3 = arith.constant 0 : index
    %c0_4 = arith.constant 0 : index
    %3 = vector.load %arg3[%c0_3, %c0_4] : memref<16x1xf32, #tpu.memory_space<vmem>>, vector<16x1xf32>
    %4 = vector.broadcast %3 : vector<16x1xf32> to vector<16x640xf32>
    %5 = arith.mulf %2, %4 : vector<16x640xf32>
    %c0_5 = arith.constant 0 : index
    %c0_6 = arith.constant 0 : index
    %6 = vector.load %arg4[%c0_5, %c0_6] : memref<16x1xf32, #tpu.memory_space<vmem>>, vector<16x1xf32>
    %7 = vector.broadcast %6 : vector<16x1xf32> to vector<16x640xf32>
    %8 = arith.addf %5, %7 : vector<16x640xf32>
    %c0_7 = arith.constant 0 : index
    %c0_8 = arith.constant 0 : index
    %9 = vector.load %arg5[%c0_7, %c0_8] : memref<16x640xf32, #tpu.memory_space<vmem>>, vector<16x640xf32>
    tpu.vector_store %arg5[%c0_7, %c0_8], %8 {strides = array<i32>} : memref<16x640xf32, #tpu.memory_space<vmem>>, vector<16x640xf32>,
    return
  }
  func.func @transform_0(%arg0: i32) -> (i32, i32) {
    %c0_i32 = arith.constant 0 : i32
    %c0_i32_0 = arith.constant 0 : i32
    %c0_i32_1 = arith.constant 0 : i32
    return %c0_i32, %c0_i32_0 : i32, i32
  }
  func.func @transform_1(%arg0: i32) -> (i32, i32) {
    %c0_i32 = arith.constant 0 : i32
    %c0_i32_0 = arith.constant 0 : i32
    return %c0_i32, %arg0 : i32, i32
  }
  func.func @transform_2(%arg0: i32) -> (i32, i32) {
    %c0_i32 = arith.constant 0 : i32
    %c0_i32_0 = arith.constant 0 : i32
    %c0_i32_1 = arith.constant 0 : i32
    return %c0_i32, %c0_i32_0 : i32, i32
  }
  func.func @transform_3(%arg0: i32) -> (i32, i32) {
    %c0_i32 = arith.constant 0 : i32
    %c0_i32_0 = arith.constant 0 : i32
    %c0_i32_1 = arith.constant 0 : i32
    return %c0_i32, %c0_i32_0 : i32, i32
  }
  func.func @transform_4(%arg0: i32) -> (i32, i32) {
    %c0_i32 = arith.constant 0 : i32
    %c0_i32_0 = arith.constant 0 : i32
    return %c0_i32, %arg0 : i32, i32
  }
}

module attributes {stable_mosaic.version = 11 : i64} {
  func.func @_maxpool_relu_kernel(%arg0: i32, %arg1: memref<9x16x128xf32, #tpu.memory_space<vmem>>, %arg2: memref<16x128xf32, #tpu.memory_space<vmem>>) attributes {dimension_semantics = [#tpu.dimension_semantics<parallel>], iteration_bounds = array<i64: 1>, scalar_prefetch = 0 : i64, scratch_operands = 0 : i64, tpu.core_type = #tpu.core_type<tc>, window_params = [{transform_indices = @transform_0, window_bounds = array<i64: 9, 16, 128>}, {transform_indices = @transform_1, window_bounds = array<i64: 16, 128>}]} {
    %c0 = arith.constant 0 : index
    %c0_0 = arith.constant 0 : index
    %c0_1 = arith.constant 0 : index
    %0 = vector.load %arg1[%c0, %c0_0, %c0_1] : memref<9x16x128xf32, #tpu.memory_space<vmem>>, vector<9x16x128xf32>
    %cst = arith.constant dense<0xFF800000> : vector<16x128xf32>
    %1 = vector.multi_reduction <maximumf>, %0, %cst [0] : vector<9x16x128xf32> to vector<16x128xf32>
    %cst_2 = arith.constant 0.000000e+00 : f32
    %2 = vector.broadcast %cst_2 : f32 to vector<16x128xf32>
    %3 = arith.maximumf %1, %2 : vector<16x128xf32>
    %c0_3 = arith.constant 0 : index
    %c0_4 = arith.constant 0 : index
    %4 = vector.load %arg2[%c0_3, %c0_4] : memref<16x128xf32, #tpu.memory_space<vmem>>, vector<16x128xf32>
    tpu.vector_store %arg2[%c0_3, %c0_4], %3 {strides = array<i32>} : memref<16x128xf32, #tpu.memory_space<vmem>>, vector<16x128xf32>,
    return
  }
  func.func @transform_0(%arg0: i32) -> (i32, i32, i32) {
    %c0_i32 = arith.constant 0 : i32
    %c0_i32_0 = arith.constant 0 : i32
    %c0_i32_1 = arith.constant 0 : i32
    return %c0_i32, %c0_i32_0, %arg0 : i32, i32, i32
  }
  func.func @transform_1(%arg0: i32) -> (i32, i32) {
    %c0_i32 = arith.constant 0 : i32
    %c0_i32_0 = arith.constant 0 : i32
    return %c0_i32, %arg0 : i32, i32
  }
}

module attributes {stable_mosaic.version = 11 : i64} {
  func.func @_conv_bn_kernel(%arg0: i32, %arg1: memref<24x256xbf16, #tpu.memory_space<vmem>>, %arg2: memref<256x128xbf16, #tpu.memory_space<vmem>>, %arg3: memref<24x1xf32, #tpu.memory_space<vmem>>, %arg4: memref<24x1xf32, #tpu.memory_space<vmem>>, %arg5: memref<24x128xf32, #tpu.memory_space<vmem>>) attributes {dimension_semantics = [#tpu.dimension_semantics<parallel>], iteration_bounds = array<i64: 1>, scalar_prefetch = 0 : i64, scratch_operands = 0 : i64, tpu.core_type = #tpu.core_type<tc>, window_params = [{pipeline_mode = #tpu.pipeline_mode<synchronous>, transform_indices = @transform_0, window_bounds = array<i64: 24, 256>}, {transform_indices = @transform_1, window_bounds = array<i64: 256, 128>}, {pipeline_mode = #tpu.pipeline_mode<synchronous>, transform_indices = @transform_2, window_bounds = array<i64: 24, 1>}, {pipeline_mode = #tpu.pipeline_mode<synchronous>, transform_indices = @transform_3, window_bounds = array<i64: 24, 1>}, {transform_indices = @transform_4, window_bounds = array<i64: 24, 128>}]} {
    %c0 = arith.constant 0 : index
    %c0_0 = arith.constant 0 : index
    %0 = vector.load %arg1[%c0, %c0_0] : memref<24x256xbf16, #tpu.memory_space<vmem>>, vector<24x256xbf16>
    %c0_1 = arith.constant 0 : index
    %c0_2 = arith.constant 0 : index
    %1 = vector.load %arg2[%c0_1, %c0_2] : memref<256x128xbf16, #tpu.memory_space<vmem>>, vector<256x128xbf16>
    %cst = arith.constant dense<0.000000e+00> : vector<24x128xf32>
    %2 = tpu.matmul %0, %1, %cst {dimension_numbers = #tpu.dot_dimension_numbers<[1], [0], [0], [1], [0, 0, 1, 1], [], []>} : vector<24x256xbf16>, vector<256x128xbf16>, vector<24x128xf32> -> vector<24x128xf32>
    %c0_3 = arith.constant 0 : index
    %c0_4 = arith.constant 0 : index
    %3 = vector.load %arg3[%c0_3, %c0_4] : memref<24x1xf32, #tpu.memory_space<vmem>>, vector<24x1xf32>
    %4 = vector.broadcast %3 : vector<24x1xf32> to vector<24x128xf32>
    %5 = arith.mulf %2, %4 : vector<24x128xf32>
    %c0_5 = arith.constant 0 : index
    %c0_6 = arith.constant 0 : index
    %6 = vector.load %arg4[%c0_5, %c0_6] : memref<24x1xf32, #tpu.memory_space<vmem>>, vector<24x1xf32>
    %7 = vector.broadcast %6 : vector<24x1xf32> to vector<24x128xf32>
    %8 = arith.addf %5, %7 : vector<24x128xf32>
    %cst_7 = arith.constant 0.000000e+00 : f32
    %9 = vector.broadcast %cst_7 : f32 to vector<24x128xf32>
    %10 = arith.maximumf %8, %9 : vector<24x128xf32>
    %c0_8 = arith.constant 0 : index
    %c0_9 = arith.constant 0 : index
    %11 = vector.load %arg5[%c0_8, %c0_9] : memref<24x128xf32, #tpu.memory_space<vmem>>, vector<24x128xf32>
    tpu.vector_store %arg5[%c0_8, %c0_9], %10 {strides = array<i32>} : memref<24x128xf32, #tpu.memory_space<vmem>>, vector<24x128xf32>,
    return
  }
  func.func @transform_0(%arg0: i32) -> (i32, i32) {
    %c0_i32 = arith.constant 0 : i32
    %c0_i32_0 = arith.constant 0 : i32
    %c0_i32_1 = arith.constant 0 : i32
    return %c0_i32, %c0_i32_0 : i32, i32
  }
  func.func @transform_1(%arg0: i32) -> (i32, i32) {
    %c0_i32 = arith.constant 0 : i32
    %c0_i32_0 = arith.constant 0 : i32
    return %c0_i32, %arg0 : i32, i32
  }
  func.func @transform_2(%arg0: i32) -> (i32, i32) {
    %c0_i32 = arith.constant 0 : i32
    %c0_i32_0 = arith.constant 0 : i32
    %c0_i32_1 = arith.constant 0 : i32
    return %c0_i32, %c0_i32_0 : i32, i32
  }
  func.func @transform_3(%arg0: i32) -> (i32, i32) {
    %c0_i32 = arith.constant 0 : i32
    %c0_i32_0 = arith.constant 0 : i32
    %c0_i32_1 = arith.constant 0 : i32
    return %c0_i32, %c0_i32_0 : i32, i32
  }
  func.func @transform_4(%arg0: i32) -> (i32, i32) {
    %c0_i32 = arith.constant 0 : i32
    %c0_i32_0 = arith.constant 0 : i32
    return %c0_i32, %arg0 : i32, i32
  }
}

module attributes {stable_mosaic.version = 11 : i64} {
  func.func @_conv_bn_kernel(%arg0: i32, %arg1: memref<16x256xbf16, #tpu.memory_space<vmem>>, %arg2: memref<256x128xbf16, #tpu.memory_space<vmem>>, %arg3: memref<16x1xf32, #tpu.memory_space<vmem>>, %arg4: memref<16x1xf32, #tpu.memory_space<vmem>>, %arg5: memref<16x128xf32, #tpu.memory_space<vmem>>) attributes {dimension_semantics = [#tpu.dimension_semantics<parallel>], iteration_bounds = array<i64: 1>, scalar_prefetch = 0 : i64, scratch_operands = 0 : i64, tpu.core_type = #tpu.core_type<tc>, window_params = [{pipeline_mode = #tpu.pipeline_mode<synchronous>, transform_indices = @transform_0, window_bounds = array<i64: 16, 256>}, {transform_indices = @transform_1, window_bounds = array<i64: 256, 128>}, {pipeline_mode = #tpu.pipeline_mode<synchronous>, transform_indices = @transform_2, window_bounds = array<i64: 16, 1>}, {pipeline_mode = #tpu.pipeline_mode<synchronous>, transform_indices = @transform_3, window_bounds = array<i64: 16, 1>}, {transform_indices = @transform_4, window_bounds = array<i64: 16, 128>}]} {
    %c0 = arith.constant 0 : index
    %c0_0 = arith.constant 0 : index
    %0 = vector.load %arg1[%c0, %c0_0] : memref<16x256xbf16, #tpu.memory_space<vmem>>, vector<16x256xbf16>
    %c0_1 = arith.constant 0 : index
    %c0_2 = arith.constant 0 : index
    %1 = vector.load %arg2[%c0_1, %c0_2] : memref<256x128xbf16, #tpu.memory_space<vmem>>, vector<256x128xbf16>
    %cst = arith.constant dense<0.000000e+00> : vector<16x128xf32>
    %2 = tpu.matmul %0, %1, %cst {dimension_numbers = #tpu.dot_dimension_numbers<[1], [0], [0], [1], [0, 0, 1, 1], [], []>} : vector<16x256xbf16>, vector<256x128xbf16>, vector<16x128xf32> -> vector<16x128xf32>
    %c0_3 = arith.constant 0 : index
    %c0_4 = arith.constant 0 : index
    %3 = vector.load %arg3[%c0_3, %c0_4] : memref<16x1xf32, #tpu.memory_space<vmem>>, vector<16x1xf32>
    %4 = vector.broadcast %3 : vector<16x1xf32> to vector<16x128xf32>
    %5 = arith.mulf %2, %4 : vector<16x128xf32>
    %c0_5 = arith.constant 0 : index
    %c0_6 = arith.constant 0 : index
    %6 = vector.load %arg4[%c0_5, %c0_6] : memref<16x1xf32, #tpu.memory_space<vmem>>, vector<16x1xf32>
    %7 = vector.broadcast %6 : vector<16x1xf32> to vector<16x128xf32>
    %8 = arith.addf %5, %7 : vector<16x128xf32>
    %c0_7 = arith.constant 0 : index
    %c0_8 = arith.constant 0 : index
    %9 = vector.load %arg5[%c0_7, %c0_8] : memref<16x128xf32, #tpu.memory_space<vmem>>, vector<16x128xf32>
    tpu.vector_store %arg5[%c0_7, %c0_8], %8 {strides = array<i32>} : memref<16x128xf32, #tpu.memory_space<vmem>>, vector<16x128xf32>,
    return
  }
  func.func @transform_0(%arg0: i32) -> (i32, i32) {
    %c0_i32 = arith.constant 0 : i32
    %c0_i32_0 = arith.constant 0 : i32
    %c0_i32_1 = arith.constant 0 : i32
    return %c0_i32, %c0_i32_0 : i32, i32
  }
  func.func @transform_1(%arg0: i32) -> (i32, i32) {
    %c0_i32 = arith.constant 0 : i32
    %c0_i32_0 = arith.constant 0 : i32
    return %c0_i32, %arg0 : i32, i32
  }
  func.func @transform_2(%arg0: i32) -> (i32, i32) {
    %c0_i32 = arith.constant 0 : i32
    %c0_i32_0 = arith.constant 0 : i32
    %c0_i32_1 = arith.constant 0 : i32
    return %c0_i32, %c0_i32_0 : i32, i32
  }
  func.func @transform_3(%arg0: i32) -> (i32, i32) {
    %c0_i32 = arith.constant 0 : i32
    %c0_i32_0 = arith.constant 0 : i32
    %c0_i32_1 = arith.constant 0 : i32
    return %c0_i32, %c0_i32_0 : i32, i32
  }
  func.func @transform_4(%arg0: i32) -> (i32, i32) {
    %c0_i32 = arith.constant 0 : i32
    %c0_i32_0 = arith.constant 0 : i32
    return %c0_i32, %arg0 : i32, i32
  }
}

</mosaic_0001>

<llo_original>
// kernel: alexnet_legacy_forward.7
$region0: #{alexnet_legacy_forward.7}
  #allocation0 [shape = 'u32[]', space=smem, size = 0x4, offset = 0x4, fixed_abs, tag = 'smem constant byte address 0x4 - core index']
  #allocation1 [shape = 'u32[144,128]{1,0:T(1,128)}', space=vmem, size = 0x12000, scoped, tag = 'internal scratch']
  %s0 = inlined_call_operand.vmem [shape: bf16[6,384], index: 0, kind: input, shape index: {}]
  %s1 = inlined_call_operand.vmem [shape: bf16[384,4096], index: 1, kind: input, shape index: {}]
  %s2 = inlined_call_operand.vmem [shape: f32[6,1], index: 2, kind: input, shape index: {}]
  %s3 = inlined_call_operand.vmem [shape: f32[6,1], index: 3, kind: input, shape index: {}]
  %s4 = inlined_call_operand.vmem [shape: f32[6,4096], index: 4, kind: output, shape index: {}]
  %s5 = sld [smem:[#allocation0]]
  $region72: #{alexnet_legacy_forward.7} parent=0
    _
  %s7 = ssub.s32 1, %s5
  %s8 = scalar_select 0, %s7, %s5
  $region1: #{alexnet_legacy_forward.7} parent=0
    #allocation2 [shape = 'u8[3145728]{0}', space=vmem, size = 0x300000, scoped, tag = 'input window, operand 1']
    loop: start=0, step=1, limit=4
    $region2: #{alexnet_legacy_forward.7} parent=1 // loop_pre_header
      _
    $region3: #{alexnet_legacy_forward.7} parent=1 // loop_header
      %s10 = sphi 0, %s14
      %p11 = scmp.ge.s32.totalorder %s10, 4
      %s18 = sphi 0, %s18
      %s20 = sphi 0, %s18
      %s21 = sphi 0, %s20
      %s35 = sphi 0, %s21
      %s41 = sphi 0, %s43
      %s44 = sphi 0, %s41
      %s45 = sphi 0, %s44
      %s61 = sphi 0, %s45
      %s65 = sphi 0, %s65
      %s67 = sphi 0, %s65
      %s68 = sphi 0, %s67
      %s82 = sphi 0, %s68
      %s86 = sphi 0, %s86
      %s88 = sphi 0, %s86
      %s89 = sphi 0, %s88
      %s103 = sphi 0, %s89
      %s109 = sphi 0, %s111
      %s112 = sphi 0, %s109
      %s113 = sphi 0, %s112
      %s129 = sphi 0, %s113
    $region4: #{alexnet_legacy_forward.7} parent=1 // loop_header_branch
      %13 = sbr.rel (%p11) target = $region8
    $region5: #{alexnet_legacy_forward.7} parent=1 // loop_body
      %s15 = ssub.s32 %s10, 1
      %s16 = ssub.s32 %s10, 2
      %s17 = sadd.s32 %s10, 1
      %s19 = sadd.s32 %s18, 1
      %p22 = scmp.eq.s32.totalorder %s10, 1
      %p23 = scmp.ne.s32.totalorder %s18, %s20
      %p24 = scmp.eq.s32.totalorder %s10, 0
      %p25 = por %p23, %p24
      %p26 = scmp.ne.s32.totalorder %s18, %s20
      %p27 = scmp.eq.s32.totalorder %s15, 1
      %p28 = por %p26, %p27
      %p29 = scmp.ne.s32.totalorder %s20, %s21
      %p30 = scmp.eq.s32.totalorder %s15, 0
      %p31 = por %p29, %p30
      %p32 = scmp.ne.s32.totalorder %s20, %s21
      %p33 = scmp.eq.s32.totalorder %s16, 1
      %p34 = por %p32, %p33
      %p36 = scmp.ne.s32.totalorder %s21, %s35
      %p37 = scmp.eq.s32.totalorder %s16, 0
      %p38 = por %p36, %p37
      %s39 = ssub.s32 %s10, %s17
      %p40 = scmp.eq.s32.totalorder %s39, 0
      %s42 = sadd.s32 %s41, 1
      %s43 = scalar_select %p40, %s41, %s42
      %p46 = pneg %p40
      %p47 = scmp.eq.s32.totalorder %s10, 1
      %p48 = por %p46, %p47
      %p49 = scmp.ne.s32.totalorder %s41, %s44
      %p50 = scmp.eq.s32.totalorder %s10, 0
      %p51 = por %p49, %p50
      %p52 = scmp.ne.s32.totalorder %s41, %s44
      %p53 = scmp.eq.s32.totalorder %s15, 1
      %p54 = por %p52, %p53
      %p55 = scmp.ne.s32.totalorder %s44, %s45
      %p56 = scmp.eq.s32.totalorder %s15, 0
      %p57 = por %p55, %p56
      %p58 = scmp.ne.s32.totalorder %s44, %s45
      %p59 = scmp.eq.s32.totalorder %s16, 1
      %p60 = por %p58, %p59
      %p62 = scmp.ne.s32.totalorder %s45, %s61
      %p63 = scmp.eq.s32.totalorder %s16, 0
      %p64 = por %p62, %p63
      %s66 = sadd.s32 %s65, 1
      %p69 = scmp.eq.s32.totalorder %s10, 1
      %p70 = scmp.ne.s32.totalorder %s65, %s67
      %p71 = scmp.eq.s32.totalorder %s10, 0
      %p72 = por %p70, %p71
      %p73 = scmp.ne.s32.totalorder %s65, %s67
      %p74 = scmp.eq.s32.totalorder %s15, 1
      %p75 = por %p73, %p74
      %p76 = scmp.ne.s32.totalorder %s67, %s68
      %p77 = scmp.eq.s32.totalorder %s15, 0
      %p78 = por %p76, %p77
      %p79 = scmp.ne.s32.totalorder %s67, %s68
      %p80 = scmp.eq.s32.totalorder %s16, 1
      %p81 = por %p79, %p80
      %p83 = scmp.ne.s32.totalorder %s68, %s82
      %p84 = scmp.eq.s32.totalorder %s16, 0
      %p85 = por %p83, %p84
      %s87 = sadd.s32 %s86, 1
      %p90 = scmp.eq.s32.totalorder %s10, 1
      %p91 = scmp.ne.s32.totalorder %s86, %s88
      %p92 = scmp.eq.s32.totalorder %s10, 0
      %p93 = por %p91, %p92
      %p94 = scmp.ne.s32.totalorder %s86, %s88
      %p95 = scmp.eq.s32.totalorder %s15, 1
      %p96 = por %p94, %p95
      %p97 = scmp.ne.s32.totalorder %s88, %s89
      %p98 = scmp.eq.s32.totalorder %s15, 0
      %p99 = por %p97, %p98
      %p100 = scmp.ne.s32.totalorder %s88, %s89
      %p101 = scmp.eq.s32.totalorder %s16, 1
      %p102 = por %p100, %p101
      %p104 = scmp.ne.s32.totalorder %s89, %s103
      %p105 = scmp.eq.s32.totalorder %s16, 0
      %p106 = por %p104, %p105
      %s107 = ssub.s32 %s10, %s17
      %p108 = scmp.eq.s32.totalorder %s107, 0
      %s110 = sadd.s32 %s109, 1
      %s111 = scalar_select %p108, %s109, %s110
      %p114 = pneg %p108
      %p115 = scmp.eq.s32.totalorder %s10, 1
      %p116 = por %p114, %p115
      %p117 = scmp.ne.s32.totalorder %s109, %s112
      %p118 = scmp.eq.s32.totalorder %s10, 0
      %p119 = por %p117, %p118
      %p120 = scmp.ne.s32.totalorder %s109, %s112
      %p121 = scmp.eq.s32.totalorder %s15, 1
      %p122 = por %p120, %p121
      %p123 = scmp.ne.s32.totalorder %s112, %s113
      %p124 = scmp.eq.s32.totalorder %s15, 0
      %p125 = por %p123, %p124
      %p126 = scmp.ne.s32.totalorder %s112, %s113
      %p127 = scmp.eq.s32.totalorder %s16, 1
      %p128 = por %p126, %p127
      %p130 = scmp.ne.s32.totalorder %s113, %s129
      %p131 = scmp.eq.s32.totalorder %s16, 0
      %p132 = por %p130, %p131
      %p133 = scmp.le.s32.totalorder 1, %s10
      %p134 = scmp.lt.s32.totalorder %s10, 3
      %p135 = pnand %p133, %p134
      %p136 = pneg %p135
      // Predicated region
      $region9: #{alexnet_legacy_forward.7} parent=5 // pred_check
        _
      $region10: #{alexnet_legacy_forward.7} parent=5 // pred_check_branch
        %138 = sbr.rel (%p135) target = $region12
      $region11: #{alexnet_legacy_forward.7} parent=5 // pred_region
        %s139 = ssub.s32 %s10, 1
        // Predicated region
        $region13: #{alexnet_legacy_forward.7} parent=11 // pred_check
          %p140 = pneg %p31
        $region14: #{alexnet_legacy_forward.7} parent=11 // pred_check_branch
          %142 = sbr.rel (%p140) target = $region16
        $region15: #{alexnet_legacy_forward.7} parent=11 // pred_region
          _
        $region16: #{alexnet_legacy_forward.7} parent=11 // pred_fallthru
          _
        // Predicated region
        $region17: #{alexnet_legacy_forward.7} parent=11 // pred_check
          %p143 = pneg %p78
        $region18: #{alexnet_legacy_forward.7} parent=11 // pred_check_branch
          %145 = sbr.rel (%p143) target = $region20
        $region19: #{alexnet_legacy_forward.7} parent=11 // pred_region
          _
        $region20: #{alexnet_legacy_forward.7} parent=11 // pred_fallthru
          _
        // Predicated region
        $region21: #{alexnet_legacy_forward.7} parent=11 // pred_check
          %p146 = pneg %p99
        $region22: #{alexnet_legacy_forward.7} parent=11 // pred_check_branch
          %148 = sbr.rel (%p146) target = $region24
        $region23: #{alexnet_legacy_forward.7} parent=11 // pred_region
          _
        $region24: #{alexnet_legacy_forward.7} parent=11 // pred_fallthru
          _
      $region12: #{alexnet_legacy_forward.7} parent=5 // pred_fallthru
        _
      %p149 = scmp.lt.s32.totalorder %s10, 2
      // Predicated region
      $region25: #{alexnet_legacy_forward.7} parent=5 // pred_check
        %p150 = pneg %p149
      $region26: #{alexnet_legacy_forward.7} parent=5 // pred_check_branch
        %152 = sbr.rel (%p150) target = $region28
      $region27: #{alexnet_legacy_forward.7} parent=5 // pred_region
        // Predicated region
        $region29: #{alexnet_legacy_forward.7} parent=27 // pred_check
          %p153 = pneg %p51
        $region30: #{alexnet_legacy_forward.7} parent=27 // pred_check_branch
          %155 = sbr.rel (%p153) target = $region32
        $region31: #{alexnet_legacy_forward.7} parent=27 // pred_region
          %s156 = sand.u32 %s41, 1
          %s157 = sand.u32 %s41, 1
          %s158 = smul.addr %s157, 3072
          %s159 = scalar_lea.vmem [#allocation2], %s158
          %s160 = smul.u32 16, %s10
          %s161 = smul.addr %s160, 4
          %s162 = scalar_lea.vmem %s1, %s161
          // Predicated region
          $region33: #{alexnet_legacy_forward.7} parent=31 // pred_check
            _
          $region34: #{alexnet_legacy_forward.7} parent=31 // pred_check_branch
            %164 = sbr.rel (0) target = $region36
          $region35: #{alexnet_legacy_forward.7} parent=31 // pred_region
            // Predicated region
            $region37: #{alexnet_legacy_forward.7} parent=35 // pred_check
              _
            $region38: #{alexnet_legacy_forward.7} parent=35 // pred_check_branch
              %166 = sbr.rel (0) target = $region40
            $region39: #{alexnet_legacy_forward.7} parent=35 // pred_region
              loop: start=0, step=1, limit=1
              $region41: #{alexnet_legacy_forward.7} parent=39 // loop_pre_header
                _
              $region42: #{alexnet_legacy_forward.7} parent=39 // loop_header
                %s168 = sphi 0, %s172
                %p169 = scmp.ge.s32.totalorder %s168, 1
                %s173 = sphi %s162, %s162
                %s174 = sphi %s159, %s159
              $region43: #{alexnet_legacy_forward.7} parent=39 // loop_header_branch
                %171 = sbr.rel (%p169) target = $region47
              $region44: #{alexnet_legacy_forward.7} parent=39 // loop_body
                %v175 = vld [vmem:[%s173] sm:$0xff]
                %176 = vst [vmem:[%s174] sm:$0xff] %v175
                %v177 = vld [vmem:[%s173 + $0x8] sm:$0xff]
                %178 = vst [vmem:[%s174 + $0x8] sm:$0xff] %v177
                %v179 = vld [vmem:[%s173 + $0x10] sm:$0xff]
                %180 = vst [vmem:[%s174 + $0x10] sm:$0xff] %v179
                %v181 = vld [vmem:[%s173 + $0x18] sm:$0xff]
                %182 = vst [vmem:[%s174 + $0x18] sm:$0xff] %v181
                %v183 = vld [vmem:[%s173 + $0x20] sm:$0xff]
                %184 = vst [vmem:[%s174 + $0x20] sm:$0xff] %v183
                %v185 = vld [vmem:[%s173 + $0x28] sm:$0xff]
                %186 = vst [vmem:[%s174 + $0x28] sm:$0xff] %v185
                %v187 = vld [vmem:[%s173 + $0x30] sm:$0xff]
                %188 = vst [vmem:[%s174 + $0x30] sm:$0xff] %v187
                %v189 = vld [vmem:[%s173 + $0x38] sm:$0xff]
                %190 = vst [vmem:[%s174 + $0x38] sm:$0xff] %v189
                %v191 = vld [vmem:[%s173 + $0x80] sm:$0xff]
                %192 = vst [vmem:[%s174 + $0x40] sm:$0xff] %v191
                %v193 = vld [vmem:[%s173 + $0x88] sm:$0xff]
                %194 = vst [vmem:[%s174 + $0x48] sm:$0xff] %v193
                %v195 = vld [vmem:[%s173 + $0x90] sm:$0xff]
                %196 = vst [vmem:[%s174 + $0x50] sm:$0xff] %v195
                %v197 = vld [vmem:[%s173 + $0x98] sm:$0xff]
                %198 = vst [vmem:[%s174 + $0x58] sm:$0xff] %v197
                %v199 = vld [vmem:[%s173 + $0xa0] sm:$0xff]
                %200 = vst [vmem:[%s174 + $0x60] sm:$0xff] %v199
                %v201 = vld [vmem:[%s173 + $0xa8] sm:$0xff]
                %202 = vst [vmem:[%s174 + $0x68] sm:$0xff] %v201
                %v203 = vld [vmem:[%s173 + $0xb0] sm:$0xff]
                %204 = vst [vmem:[%s174 + $0x70] sm:$0xff] %v203
                %v205 = vld [vmem:[%s173 + $0xb8] sm:$0xff]
                %206 = vst [vmem:[%s174 + $0x78] sm:$0xff] %v205
                %v207 = vld [vmem:[%s173 + $0x100] sm:$0xff]
                %208 = vst [vmem:[%s174 + $0x80] sm:$0xff] %v207
                %v209 = vld [vmem:[%s173 + $0x108] sm:$0xff]
                %210 = vst [vmem:[%s174 + $0x88] sm:$0xff] %v209
                %v211 = vld [vmem:[%s173 + $0x110] sm:$0xff]
                %212 = vst [vmem:[%s174 + $0x90] sm:$0xff] %v211
                %v213 = vld [vmem:[%s173 + $0x118] sm:$0xff]
                %214 = vst [vmem:[%s174 + $0x98] sm:$0xff] %v213
                %v215 = vld [vmem:[%s173 + $0x120] sm:$0xff]
                %216 = vst [vmem:[%s174 + $0xa0] sm:$0xff] %v215
                %v217 = vld [vmem:[%s173 + $0x128] sm:$0xff]
                %218 = vst [vmem:[%s174 + $0xa8] sm:$0xff] %v217
                %v219 = vld [vmem:[%s173 + $0x130] sm:$0xff]
                %220 = vst [vmem:[%s174 + $0xb0] sm:$0xff] %v219
                %v221 = vld [vmem:[%s173 + $0x138] sm:$0xff]
                %222 = vst [vmem:[%s174 + $0xb8] sm:$0xff] %v221
                %v223 = vld [vmem:[%s173 + $0x180] sm:$0xff]
                %224 = vst [vmem:[%s174 + $0xc0] sm:$0xff] %v223
                %v225 = vld [vmem:[%s173 + $0x188] sm:$0xff]
                %226 = vst [vmem:[%s174 + $0xc8] sm:$0xff] %v225
                %v227 = vld [vmem:[%s173 + $0x190] sm:$0xff]
                %228 = vst [vmem:[%s174 + $0xd0] sm:$0xff] %v227
                %v229 = vld [vmem:[%s173 + $0x198] sm:$0xff]
                %230 = vst [vmem:[%s174 + $0xd8] sm:$0xff] %v229
                %v231 = vld [vmem:[%s173 + $0x1a0] sm:$0xff]
                %232 = vst [vmem:[%s174 + $0xe0] sm:$0xff] %v231
                %v233 = vld [vmem:[%s173 + $0x1a8] sm:$0xff]
                %234 = vst [vmem:[%s174 + $0xe8] sm:$0xff] %v233
                %v235 = vld [vmem:[%s173 + $0x1b0] sm:$0xff]
                %236 = vst [vmem:[%s174 + $0xf0] sm:$0xff] %v235
                %v237 = vld [vmem:[%s173 + $0x1b8] sm:$0xff]
                %238 = vst [vmem:[%s174 + $0xf8] sm:$0xff] %v237
                %v239 = vld [vmem:[%s173 + $0x200] sm:$0xff]
                %240 = vst [vmem:[%s174 + $0x100] sm:$0xff] %v239
                %v241 = vld [vmem:[%s173 + $0x208] sm:$0xff]
                %242 = vst [vmem:[%s174 + $0x108] sm:$0xff] %v241
                %v243 = vld [vmem:[%s173 + $0x210] sm:$0xff]
                %244 = vst [vmem:[%s174 + $0x110] sm:$0xff] %v243
                %v245 = vld [vmem:[%s173 + $0x218] sm:$0xff]
                %246 = vst [vmem:[%s174 + $0x118] sm:$0xff] %v245
                %v247 = vld [vmem:[%s173 + $0x220] sm:$0xff]
                %248 = vst [vmem:[%s174 + $0x120] sm:$0xff] %v247
                %v249 = vld [vmem:[%s173 + $0x228] sm:$0xff]
                %250 = vst [vmem:[%s174 + $0x128] sm:$0xff] %v249
                %v251 = vld [vmem:[%s173 + $0x230] sm:$0xff]
                %252 = vst [vmem:[%s174 + $0x130] sm:$0xff] %v251
                %v253 = vld [vmem:[%s173 + $0x238] sm:$0xff]
                %254 = vst [vmem:[%s174 + $0x138] sm:$0xff] %v253
                %v255 = vld [vmem:[%s173 + $0x280] sm:$0xff]
                %256 = vst [vmem:[%s174 + $0x140] sm:$0xff] %v255
                %v257 = vld [vmem:[%s173 + $0x288] sm:$0xff]
                %258 = vst [vmem:[%s174 + $0x148] sm:$0xff] %v257
                %v259 = vld [vmem:[%s173 + $0x290] sm:$0xff]
                %260 = vst [vmem:[%s174 + $0x150] sm:$0xff] %v259
                %v261 = vld [vmem:[%s173 + $0x298] sm:$0xff]
                %262 = vst [vmem:[%s174 + $0x158] sm:$0xff] %v261
                %v263 = vld [vmem:[%s173 + $0x2a0] sm:$0xff]
                %264 = vst [vmem:[%s174 + $0x160] sm:$0xff] %v263
                %v265 = vld [vmem:[%s173 + $0x2a8] sm:$0xff]
                %266 = vst [vmem:[%s174 + $0x168] sm:$0xff] %v265
                %v267 = vld [vmem:[%s173 + $0x2b0] sm:$0xff]
                %268 = vst [vmem:[%s174 + $0x170] sm:$0xff] %v267
                %v269 = vld [vmem:[%s173 + $0x2b8] sm:$0xff]
                %270 = vst [vmem:[%s174 + $0x178] sm:$0xff] %v269
                %v271 = vld [vmem:[%s173 + $0x300] sm:$0xff]
                %272 = vst [vmem:[%s174 + $0x180] sm:$0xff] %v271
                %v273 = vld [vmem:[%s173 + $0x308] sm:$0xff]
                %274 = vst [vmem:[%s174 + $0x188] sm:$0xff] %v273
                %v275 = vld [vmem:[%s173 + $0x310] sm:$0xff]
                %276 = vst [vmem:[%s174 + $0x190] sm:$0xff] %v275
                %v277 = vld [vmem:[%s173 + $0x318] sm:$0xff]
                %278 = vst [vmem:[%s174 + $0x198] sm:$0xff] %v277
                %v279 = vld [vmem:[%s173 + $0x320] sm:$0xff]
                %280 = vst [vmem:[%s174 + $0x1a0] sm:$0xff] %v279
                %v281 = vld [vmem:[%s173 + $0x328] sm:$0xff]
                %282 = vst [vmem:[%s174 + $0x1a8] sm:$0xff] %v281
                %v283 = vld [vmem:[%s173 + $0x330] sm:$0xff]
                %284 = vst [vmem:[%s174 + $0x1b0] sm:$0xff] %v283
                %v285 = vld [vmem:[%s173 + $0x338] sm:$0xff]
                %286 = vst [vmem:[%s174 + $0x1b8] sm:$0xff] %v285
                %v287 = vld [vmem:[%s173 + $0x380] sm:$0xff]
                %288 = vst [vmem:[%s174 + $0x1c0] sm:$0xff] %v287
                %v289 = vld [vmem:[%s173 + $0x388] sm:$0xff]
                %290 = vst [vmem:[%s174 + $0x1c8] sm:$0xff] %v289
                %v291 = vld [vmem:[%s173 + $0x390] sm:$0xff]
                %292 = vst [vmem:[%s174 + $0x1d0] sm:$0xff] %v291
                %v293 = vld [vmem:[%s173 + $0x398] sm:$0xff]
                %294 = vst [vmem:[%s174 + $0x1d8] sm:$0xff] %v293
                %v295 = vld [vmem:[%s173 + $0x3a0] sm:$0xff]
                %296 = vst [vmem:[%s174 + $0x1e0] sm:$0xff] %v295
                %v297 = vld [vmem:[%s173 + $0x3a8] sm:$0xff]
                %298 = vst [vmem:[%s174 + $0x1e8] sm:$0xff] %v297
                %v299 = vld [vmem:[%s173 + $0x3b0] sm:$0xff]
                %300 = vst [vmem:[%s174 + $0x1f0] sm:$0xff] %v299
                %v301 = vld [vmem:[%s173 + $0x3b8] sm:$0xff]
                %302 = vst [vmem:[%s174 + $0x1f8] sm:$0xff] %v301
                %v303 = vld [vmem:[%s173 + $0x400] sm:$0xff]
                %304 = vst [vmem:[%s174 + $0x200] sm:$0xff] %v303
                %v305 = vld [vmem:[%s173 + $0x408] sm:$0xff]
                %306 = vst [vmem:[%s174 + $0x208] sm:$0xff] %v305
                %v307 = vld [vmem:[%s173 + $0x410] sm:$0xff]
                %308 = vst [vmem:[%s174 + $0x210] sm:$0xff] %v307
                %v309 = vld [vmem:[%s173 + $0x418] sm:$0xff]
                %310 = vst [vmem:[%s174 + $0x218] sm:$0xff] %v309
                %v311 = vld [vmem:[%s173 + $0x420] sm:$0xff]
                %312 = vst [vmem:[%s174 + $0x220] sm:$0xff] %v311
                %v313 = vld [vmem:[%s173 + $0x428] sm:$0xff]
                %314 = vst [vmem:[%s174 + $0x228] sm:$0xff] %v313
                %v315 = vld [vmem:[%s173 + $0x430] sm:$0xff]
                %316 = vst [vmem:[%s174 + $0x230] sm:$0xff] %v315
                %v317 = vld [vmem:[%s173 + $0x438] sm:$0xff]
                %318 = vst [vmem:[%s174 + $0x238] sm:$0xff] %v317
                %v319 = vld [vmem:[%s173 + $0x480] sm:$0xff]
                %320 = vst [vmem:[%s174 + $0x240] sm:$0xff] %v319
                %v321 = vld [vmem:[%s173 + $0x488] sm:$0xff]
                %322 = vst [vmem:[%s174 + $0x248] sm:$0xff] %v321
                %v323 = vld [vmem:[%s173 + $0x490] sm:$0xff]
                %324 = vst [vmem:[%s174 + $0x250] sm:$0xff] %v323
                %v325 = vld [vmem:[%s173 + $0x498] sm:$0xff]
                %326 = vst [vmem:[%s174 + $0x258] sm:$0xff] %v325
                %v327 = vld [vmem:[%s173 + $0x4a0] sm:$0xff]
                %328 = vst [vmem:[%s174 + $0x260] sm:$0xff] %v327
                %v329 = vld [vmem:[%s173 + $0x4a8] sm:$0xff]
                %330 = vst [vmem:[%s174 + $0x268] sm:$0xff] %v329
                %v331 = vld [vmem:[%s173 + $0x4b0] sm:$0xff]
                %332 = vst [vmem:[%s174 + $0x270] sm:$0xff] %v331
                %v333 = vld [vmem:[%s173 + $0x4b8] sm:$0xff]
                %334 = vst [vmem:[%s174 + $0x278] sm:$0xff] %v333
                %v335 = vld [vmem:[%s173 + $0x500] sm:$0xff]
                %336 = vst [vmem:[%s174 + $0x280] sm:$0xff] %v335
                %v337 = vld [vmem:[%s173 + $0x508] sm:$0xff]
                %338 = vst [vmem:[%s174 + $0x288] sm:$0xff] %v337
                %v339 = vld [vmem:[%s173 + $0x510] sm:$0xff]
                %340 = vst [vmem:[%s174 + $0x290] sm:$0xff] %v339
                %v341 = vld [vmem:[%s173 + $0x518] sm:$0xff]
                %342 = vst [vmem:[%s174 + $0x298] sm:$0xff] %v341
                %v343 = vld [vmem:[%s173 + $0x520] sm:$0xff]
                %344 = vst [vmem:[%s174 + $0x2a0] sm:$0xff] %v343
                %v345 = vld [vmem:[%s173 + $0x528] sm:$0xff]
                %346 = vst [vmem:[%s174 + $0x2a8] sm:$0xff] %v345
                %v347 = vld [vmem:[%s173 + $0x530] sm:$0xff]
                %348 = vst [vmem:[%s174 + $0x2b0] sm:$0xff] %v347
                %v349 = vld [vmem:[%s173 + $0x538] sm:$0xff]
                %350 = vst [vmem:[%s174 + $0x2b8] sm:$0xff] %v349
                %v351 = vld [vmem:[%s173 + $0x580] sm:$0xff]
                %352 = vst [vmem:[%s174 + $0x2c0] sm:$0xff] %v351
                %v353 = vld [vmem:[%s173 + $0x588] sm:$0xff]
                %354 = vst [vmem:[%s174 + $0x2c8] sm:$0xff] %v353
                %v355 = vld [vmem:[%s173 + $0x590] sm:$0xff]
                %356 = vst [vmem:[%s174 + $0x2d0] sm:$0xff] %v355
                %v357 = vld [vmem:[%s173 + $0x598] sm:$0xff]
                %358 = vst [vmem:[%s174 + $0x2d8] sm:$0xff] %v357
                %v359 = vld [vmem:[%s173 + $0x5a0] sm:$0xff]
                %360 = vst [vmem:[%s174 + $0x2e0] sm:$0xff] %v359
                %v361 = vld [vmem:[%s173 + $0x5a8] sm:$0xff]
                %362 = vst [vmem:[%s174 + $0x2e8] sm:$0xff] %v361
                %v363 = vld [vmem:[%s173 + $0x5b0] sm:$0xff]
                %364 = vst [vmem:[%s174 + $0x2f0] sm:$0xff] %v363
                %v365 = vld [vmem:[%s173 + $0x5b8] sm:$0xff]
                %366 = vst [vmem:[%s174 + $0x2f8] sm:$0xff] %v365
                %v367 = vld [vmem:[%s173 + $0x600] sm:$0xff]
                %368 = vst [vmem:[%s174 + $0x300] sm:$0xff] %v367
                %v369 = vld [vmem:[%s173 + $0x608] sm:$0xff]
                %370 = vst [vmem:[%s174 + $0x308] sm:$0xff] %v369
                %v371 = vld [vmem:[%s173 + $0x610] sm:$0xff]
                %372 = vst [vmem:[%s174 + $0x310] sm:$0xff] %v371
                %v373 = vld [vmem:[%s173 + $0x618] sm:$0xff]
                %374 = vst [vmem:[%s174 + $0x318] sm:$0xff] %v373
                %v375 = vld [vmem:[%s173 + $0x620] sm:$0xff]
                %376 = vst [vmem:[%s174 + $0x320] sm:$0xff] %v375
                %v377 = vld [vmem:[%s173 + $0x628] sm:$0xff]
                %378 = vst [vmem:[%s174 + $0x328] sm:$0xff] %v377
                %v379 = vld [vmem:[%s173 + $0x630] sm:$0xff]
                %380 = vst [vmem:[%s174 + $0x330] sm:$0xff] %v379
                %v381 = vld [vmem:[%s173 + $0x638] sm:$0xff]
                %382 = vst [vmem:[%s174 + $0x338] sm:$0xff] %v381
                %v383 = vld [vmem:[%s173 + $0x680] sm:$0xff]
                %384 = vst [vmem:[%s174 + $0x340] sm:$0xff] %v383
                %v385 = vld [vmem:[%s173 + $0x688] sm:$0xff]
                %386 = vst [vmem:[%s174 + $0x348] sm:$0xff] %v385
                %v387 = vld [vmem:[%s173 + $0x690] sm:$0xff]
                %388 = vst [vmem:[%s174 + $0x350] sm:$0xff] %v387
                %v389 = vld [vmem:[%s173 + $0x698] sm:$0xff]
                %390 = vst [vmem:[%s174 + $0x358] sm:$0xff] %v389
                %v391 = vld [vmem:[%s173 + $0x6a0] sm:$0xff]
                %392 = vst [vmem:[%s174 + $0x360] sm:$0xff] %v391
                %v393 = vld [vmem:[%s173 + $0x6a8] sm:$0xff]
                %394 = vst [vmem:[%s174 + $0x368] sm:$0xff] %v393
                %v395 = vld [vmem:[%s173 + $0x6b0] sm:$0xff]
                %396 = vst [vmem:[%s174 + $0x370] sm:$0xff] %v395
                %v397 = vld [vmem:[%s173 + $0x6b8] sm:$0xff]
                %398 = vst [vmem:[%s174 + $0x378] sm:$0xff] %v397
                %v399 = vld [vmem:[%s173 + $0x700] sm:$0xff]
                %400 = vst [vmem:[%s174 + $0x380] sm:$0xff] %v399
                %v401 = vld [vmem:[%s173 + $0x708] sm:$0xff]
                %402 = vst [vmem:[%s174 + $0x388] sm:$0xff] %v401
                %v403 = vld [vmem:[%s173 + $0x710] sm:$0xff]
                %404 = vst [vmem:[%s174 + $0x390] sm:$0xff] %v403
                %v405 = vld [vmem:[%s173 + $0x718] sm:$0xff]
                %406 = vst [vmem:[%s174 + $0x398] sm:$0xff] %v405
                %v407 = vld [vmem:[%s173 + $0x720] sm:$0xff]
                %408 = vst [vmem:[%s174 + $0x3a0] sm:$0xff] %v407
                %v409 = vld [vmem:[%s173 + $0x728] sm:$0xff]
                %410 = vst [vmem:[%s174 + $0x3a8] sm:$0xff] %v409
                %v411 = vld [vmem:[%s173 + $0x730] sm:$0xff]
                %412 = vst [vmem:[%s174 + $0x3b0] sm:$0xff] %v411
                %v413 = vld [vmem:[%s173 + $0x738] sm:$0xff]
                %414 = vst [vmem:[%s174 + $0x3b8] sm:$0xff] %v413
                %v415 = vld [vmem:[%s173 + $0x780] sm:$0xff]
                %416 = vst [vmem:[%s174 + $0x3c0] sm:$0xff] %v415
                %v417 = vld [vmem:[%s173 + $0x788] sm:$0xff]
                %418 = vst [vmem:[%s174 + $0x3c8] sm:$0xff] %v417
                %v419 = vld [vmem:[%s173 + $0x790] sm:$0xff]
                %420 = vst [vmem:[%s174 + $0x3d0] sm:$0xff] %v419
                %v421 = vld [vmem:[%s173 + $0x798] sm:$0xff]
                %422 = vst [vmem:[%s174 + $0x3d8] sm:$0xff] %v421
                %v423 = vld [vmem:[%s173 + $0x7a0] sm:$0xff]
                %424 = vst [vmem:[%s174 + $0x3e0] sm:$0xff] %v423
                %v425 = vld [vmem:[%s173 + $0x7a8] sm:$0xff]
                %426 = vst [vmem:[%s174 + $0x3e8] sm:$0xff] %v425
                %v427 = vld [vmem:[%s173 + $0x7b0] sm:$0xff]
                %428 = vst [vmem:[%s174 + $0x3f0] sm:$0xff] %v427
                %v429 = vld [vmem:[%s173 + $0x7b8] sm:$0xff]
                %430 = vst [vmem:[%s174 + $0x3f8] sm:$0xff] %v429
                %v431 = vld [vmem:[%s173 + $0x800] sm:$0xff]
                %432 = vst [vmem:[%s174 + $0x400] sm:$0xff] %v431
                %v433 = vld [vmem:[%s173 + $0x808] sm:$0xff]
                %434 = vst [vmem:[%s174 + $0x408] sm:$0xff] %v433
                %v435 = vld [vmem:[%s173 + $0x810] sm:$0xff]
                %436 = vst [vmem:[%s174 + $0x410] sm:$0xff] %v435
                %v437 = vld [vmem:[%s173 + $0x818] sm:$0xff]
                %438 = vst [vmem:[%s174 + $0x418] sm:$0xff] %v437
                %v439 = vld [vmem:[%s173 + $0x820] sm:$0xff]
                %440 = vst [vmem:[%s174 + $0x420] sm:$0xff] %v439
                %v441 = vld [vmem:[%s173 + $0x828] sm:$0xff]
                %442 = vst [vmem:[%s174 + $0x428] sm:$0xff] %v441
                %v443 = vld [vmem:[%s173 + $0x830] sm:$0xff]
                %444 = vst [vmem:[%s174 + $0x430] sm:$0xff] %v443
                %v445 = vld [vmem:[%s173 + $0x838] sm:$0xff]
                %446 = vst [vmem:[%s174 + $0x438] sm:$0xff] %v445
                %v447 = vld [vmem:[%s173 + $0x880] sm:$0xff]
                %448 = vst [vmem:[%s174 + $0x440] sm:$0xff] %v447
                %v449 = vld [vmem:[%s173 + $0x888] sm:$0xff]
                %450 = vst [vmem:[%s174 + $0x448] sm:$0xff] %v449
                %v451 = vld [vmem:[%s173 + $0x890] sm:$0xff]
                %452 = vst [vmem:[%s174 + $0x450] sm:$0xff] %v451
                %v453 = vld [vmem:[%s173 + $0x898] sm:$0xff]
                %454 = vst [vmem:[%s174 + $0x458] sm:$0xff] %v453
                %v455 = vld [vmem:[%s173 + $0x8a0] sm:$0xff]
                %456 = vst [vmem:[%s174 + $0x460] sm:$0xff] %v455
                %v457 = vld [vmem:[%s173 + $0x8a8] sm:$0xff]
                %458 = vst [vmem:[%s174 + $0x468] sm:$0xff] %v457
                %v459 = vld [vmem:[%s173 + $0x8b0] sm:$0xff]
                %460 = vst [vmem:[%s174 + $0x470] sm:$0xff] %v459
                %v461 = vld [vmem:[%s173 + $0x8b8] sm:$0xff]
                %462 = vst [vmem:[%s174 + $0x478] sm:$0xff] %v461
                %v463 = vld [vmem:[%s173 + $0x900] sm:$0xff]
                %464 = vst [vmem:[%s174 + $0x480] sm:$0xff] %v463
                %v465 = vld [vmem:[%s173 + $0x908] sm:$0xff]
                %466 = vst [vmem:[%s174 + $0x488] sm:$0xff] %v465
                %v467 = vld [vmem:[%s173 + $0x910] sm:$0xff]
                %468 = vst [vmem:[%s174 + $0x490] sm:$0xff] %v467
                %v469 = vld [vmem:[%s173 + $0x918] sm:$0xff]
                %470 = vst [vmem:[%s174 + $0x498] sm:$0xff] %v469
                %v471 = vld [vmem:[%s173 + $0x920] sm:$0xff]
                %472 = vst [vmem:[%s174 + $0x4a0] sm:$0xff] %v471
                %v473 = vld [vmem:[%s173 + $0x928] sm:$0xff]
                %474 = vst [vmem:[%s174 + $0x4a8] sm:$0xff] %v473
                %v475 = vld [vmem:[%s173 + $0x930] sm:$0xff]
                %476 = vst [vmem:[%s174 + $0x4b0] sm:$0xff] %v475
                %v477 = vld [vmem:[%s173 + $0x938] sm:$0xff]
                %478 = vst [vmem:[%s174 + $0x4b8] sm:$0xff] %v477
                %v479 = vld [vmem:[%s173 + $0x980] sm:$0xff]
                %480 = vst [vmem:[%s174 + $0x4c0] sm:$0xff] %v479
                %v481 = vld [vmem:[%s173 + $0x988] sm:$0xff]
                %482 = vst [vmem:[%s174 + $0x4c8] sm:$0xff] %v481
                %v483 = vld [vmem:[%s173 + $0x990] sm:$0xff]
                %484 = vst [vmem:[%s174 + $0x4d0] sm:$0xff] %v483
                %v485 = vld [vmem:[%s173 + $0x998] sm:$0xff]
                %486 = vst [vmem:[%s174 + $0x4d8] sm:$0xff] %v485
                %v487 = vld [vmem:[%s173 + $0x9a0] sm:$0xff]
                %488 = vst [vmem:[%s174 + $0x4e0] sm:$0xff] %v487
                %v489 = vld [vmem:[%s173 + $0x9a8] sm:$0xff]
                %490 = vst [vmem:[%s174 + $0x4e8] sm:$0xff] %v489
                %v491 = vld [vmem:[%s173 + $0x9b0] sm:$0xff]
                %492 = vst [vmem:[%s174 + $0x4f0] sm:$0xff] %v491
                %v493 = vld [vmem:[%s173 + $0x9b8] sm:$0xff]
                %494 = vst [vmem:[%s174 + $0x4f8] sm:$0xff] %v493
                %v495 = vld [vmem:[%s173 + $0xa00] sm:$0xff]
                %496 = vst [vmem:[%s174 + $0x500] sm:$0xff] %v495
                %v497 = vld [vmem:[%s173 + $0xa08] sm:$0xff]
                %498 = vst [vmem:[%s174 + $0x508] sm:$0xff] %v497
                %v499 = vld [vmem:[%s173 + $0xa10] sm:$0xff]
                %500 = vst [vmem:[%s174 + $0x510] sm:$0xff] %v499
                %v501 = vld [vmem:[%s173 + $0xa18] sm:$0xff]
                %502 = vst [vmem:[%s174 + $0x518] sm:$0xff] %v501
                %v503 = vld [vmem:[%s173 + $0xa20] sm:$0xff]
                %504 = vst [vmem:[%s174 + $0x520] sm:$0xff] %v503
                %v505 = vld [vmem:[%s173 + $0xa28] sm:$0xff]
                %506 = vst [vmem:[%s174 + $0x528] sm:$0xff] %v505
                %v507 = vld [vmem:[%s173 + $0xa30] sm:$0xff]
                %508 = vst [vmem:[%s174 + $0x530] sm:$0xff] %v507
                %v509 = vld [vmem:[%s173 + $0xa38] sm:$0xff]
                %510 = vst [vmem:[%s174 + $0x538] sm:$0xff] %v509
                %v511 = vld [vmem:[%s173 + $0xa80] sm:$0xff]
                %512 = vst [vmem:[%s174 + $0x540] sm:$0xff] %v511
                %v513 = vld [vmem:[%s173 + $0xa88] sm:$0xff]
                %514 = vst [vmem:[%s174 + $0x548] sm:$0xff] %v513
                %v515 = vld [vmem:[%s173 + $0xa90] sm:$0xff]
                %516 = vst [vmem:[%s174 + $0x550] sm:$0xff] %v515
                %v517 = vld [vmem:[%s173 + $0xa98] sm:$0xff]
                %518 = vst [vmem:[%s174 + $0x558] sm:$0xff] %v517
                %v519 = vld [vmem:[%s173 + $0xaa0] sm:$0xff]
                %520 = vst [vmem:[%s174 + $0x560] sm:$0xff] %v519
                %v521 = vld [vmem:[%s173 + $0xaa8] sm:$0xff]
                %522 = vst [vmem:[%s174 + $0x568] sm:$0xff] %v521
                %v523 = vld [vmem:[%s173 + $0xab0] sm:$0xff]
                %524 = vst [vmem:[%s174 + $0x570] sm:$0xff] %v523
                %v525 = vld [vmem:[%s173 + $0xab8] sm:$0xff]
                %526 = vst [vmem:[%s174 + $0x578] sm:$0xff] %v525
                %v527 = vld [vmem:[%s173 + $0xb00] sm:$0xff]
                %528 = vst [vmem:[%s174 + $0x580] sm:$0xff] %v527
                %v529 = vld [vmem:[%s173 + $0xb08] sm:$0xff]
                %530 = vst [vmem:[%s174 + $0x588] sm:$0xff] %v529
                %v531 = vld [vmem:[%s173 + $0xb10] sm:$0xff]
                %532 = vst [vmem:[%s174 + $0x590] sm:$0xff] %v531
                %v533 = vld [vmem:[%s173 + $0xb18] sm:$0xff]
                %534 = vst [vmem:[%s174 + $0x598] sm:$0xff] %v533
                %v535 = vld [vmem:[%s173 + $0xb20] sm:$0xff]
                %536 = vst [vmem:[%s174 + $0x5a0] sm:$0xff] %v535
                %v537 = vld [vmem:[%s173 + $0xb28] sm:$0xff]
                %538 = vst [vmem:[%s174 + $0x5a8] sm:$0xff] %v537
                %v539 = vld [vmem:[%s173 + $0xb30] sm:$0xff]
                %540 = vst [vmem:[%s174 + $0x5b0] sm:$0xff] %v539
                %v541 = vld [vmem:[%s173 + $0xb38] sm:$0xff]
                %542 = vst [vmem:[%s174 + $0x5b8] sm:$0xff] %v541
                %v543 = vld [vmem:[%s173 + $0xb80] sm:$0xff]
                %544 = vst [vmem:[%s174 + $0x5c0] sm:$0xff] %v543
                %v545 = vld [vmem:[%s173 + $0xb88] sm:$0xff]
                %546 = vst [vmem:[%s174 + $0x5c8] sm:$0xff] %v545
                %v547 = vld [vmem:[%s173 + $0xb90] sm:$0xff]
                %548 = vst [vmem:[%s174 + $0x5d0] sm:$0xff] %v547
                %v549 = vld [vmem:[%s173 + $0xb98] sm:$0xff]
                %550 = vst [vmem:[%s174 + $0x5d8] sm:$0xff] %v549
                %v551 = vld [vmem:[%s173 + $0xba0] sm:$0xff]
                %552 = vst [vmem:[%s174 + $0x5e0] sm:$0xff] %v551
                %v553 = vld [vmem:[%s173 + $0xba8] sm:$0xff]
                %554 = vst [vmem:[%s174 + $0x5e8] sm:$0xff] %v553
                %v555 = vld [vmem:[%s173 + $0xbb0] sm:$0xff]
                %556 = vst [vmem:[%s174 + $0x5f0] sm:$0xff] %v555
                %v557 = vld [vmem:[%s173 + $0xbb8] sm:$0xff]
                %558 = vst [vmem:[%s174 + $0x5f8] sm:$0xff] %v557
                %v559 = vld [vmem:[%s173 + $0xc00] sm:$0xff]
                %560 = vst [vmem:[%s174 + $0x600] sm:$0xff] %v559
                %v561 = vld [vmem:[%s173 + $0xc08] sm:$0xff]
                %562 = vst [vmem:[%s174 + $0x608] sm:$0xff] %v561
                %v563 = vld [vmem:[%s173 + $0xc10] sm:$0xff]
                %564 = vst [vmem:[%s174 + $0x610] sm:$0xff] %v563
                %v565 = vld [vmem:[%s173 + $0xc18] sm:$0xff]
                %566 = vst [vmem:[%s174 + $0x618] sm:$0xff] %v565
                %v567 = vld [vmem:[%s173 + $0xc20] sm:$0xff]
                %568 = vst [vmem:[%s174 + $0x620] sm:$0xff] %v567
                %v569 = vld [vmem:[%s173 + $0xc28] sm:$0xff]
                %570 = vst [vmem:[%s174 + $0x628] sm:$0xff] %v569
                %v571 = vld [vmem:[%s173 + $0xc30] sm:$0xff]
                %572 = vst [vmem:[%s174 + $0x630] sm:$0xff] %v571
                %v573 = vld [vmem:[%s173 + $0xc38] sm:$0xff]
                %574 = vst [vmem:[%s174 + $0x638] sm:$0xff] %v573
                %v575 = vld [vmem:[%s173 + $0xc80] sm:$0xff]
                %576 = vst [vmem:[%s174 + $0x640] sm:$0xff] %v575
                %v577 = vld [vmem:[%s173 + $0xc88] sm:$0xff]
                %578 = vst [vmem:[%s174 + $0x648] sm:$0xff] %v577
                %v579 = vld [vmem:[%s173 + $0xc90] sm:$0xff]
                %580 = vst [vmem:[%s174 + $0x650] sm:$0xff] %v579
                %v581 = vld [vmem:[%s173 + $0xc98] sm:$0xff]
                %582 = vst [vmem:[%s174 + $0x658] sm:$0xff] %v581
                %v583 = vld [vmem:[%s173 + $0xca0] sm:$0xff]
                %584 = vst [vmem:[%s174 + $0x660] sm:$0xff] %v583
                %v585 = vld [vmem:[%s173 + $0xca8] sm:$0xff]
                %586 = vst [vmem:[%s174 + $0x668] sm:$0xff] %v585
                %v587 = vld [vmem:[%s173 + $0xcb0] sm:$0xff]
                %588 = vst [vmem:[%s174 + $0x670] sm:$0xff] %v587
                %v589 = vld [vmem:[%s173 + $0xcb8] sm:$0xff]
                %590 = vst [vmem:[%s174 + $0x678] sm:$0xff] %v589
                %v591 = vld [vmem:[%s173 + $0xd00] sm:$0xff]
                %592 = vst [vmem:[%s174 + $0x680] sm:$0xff] %v591
                %v593 = vld [vmem:[%s173 + $0xd08] sm:$0xff]
                %594 = vst [vmem:[%s174 + $0x688] sm:$0xff] %v593
                %v595 = vld [vmem:[%s173 + $0xd10] sm:$0xff]
                %596 = vst [vmem:[%s174 + $0x690] sm:$0xff] %v595
                %v597 = vld [vmem:[%s173 + $0xd18] sm:$0xff]
                %598 = vst [vmem:[%s174 + $0x698] sm:$0xff] %v597
                %v599 = vld [vmem:[%s173 + $0xd20] sm:$0xff]
                %600 = vst [vmem:[%s174 + $0x6a0] sm:$0xff] %v599
                %v601 = vld [vmem:[%s173 + $0xd28] sm:$0xff]
                %602 = vst [vmem:[%s174 + $0x6a8] sm:$0xff] %v601
                %v603 = vld [vmem:[%s173 + $0xd30] sm:$0xff]
                %604 = vst [vmem:[%s174 + $0x6b0] sm:$0xff] %v603
                %v605 = vld [vmem:[%s173 + $0xd38] sm:$0xff]
                %606 = vst [vmem:[%s174 + $0x6b8] sm:$0xff] %v605
                %v607 = vld [vmem:[%s173 + $0xd80] sm:$0xff]
                %608 = vst [vmem:[%s174 + $0x6c0] sm:$0xff] %v607
                %v609 = vld [vmem:[%s173 + $0xd88] sm:$0xff]
                %610 = vst [vmem:[%s174 + $0x6c8] sm:$0xff] %v609
                %v611 = vld [vmem:[%s173 + $0xd90] sm:$0xff]
                %612 = vst [vmem:[%s174 + $0x6d0] sm:$0xff] %v611
                %v613 = vld [vmem:[%s173 + $0xd98] sm:$0xff]
                %614 = vst [vmem:[%s174 + $0x6d8] sm:$0xff] %v613
                %v615 = vld [vmem:[%s173 + $0xda0] sm:$0xff]
                %616 = vst [vmem:[%s174 + $0x6e0] sm:$0xff] %v615
                %v617 = vld [vmem:[%s173 + $0xda8] sm:$0xff]
                %618 = vst [vmem:[%s174 + $0x6e8] sm:$0xff] %v617
                %v619 = vld [vmem:[%s173 + $0xdb0] sm:$0xff]
                %620 = vst [vmem:[%s174 + $0x6f0] sm:$0xff] %v619
                %v621 = vld [vmem:[%s173 + $0xdb8] sm:$0xff]
                %622 = vst [vmem:[%s174 + $0x6f8] sm:$0xff] %v621
                %v623 = vld [vmem:[%s173 + $0xe00] sm:$0xff]
                %624 = vst [vmem:[%s174 + $0x700] sm:$0xff] %v623
                %v625 = vld [vmem:[%s173 + $0xe08] sm:$0xff]
                %626 = vst [vmem:[%s174 + $0x708] sm:$0xff] %v625
                %v627 = vld [vmem:[%s173 + $0xe10] sm:$0xff]
                %628 = vst [vmem:[%s174 + $0x710] sm:$0xff] %v627
                %v629 = vld [vmem:[%s173 + $0xe18] sm:$0xff]
                %630 = vst [vmem:[%s174 + $0x718] sm:$0xff] %v629
                %v631 = vld [vmem:[%s173 + $0xe20] sm:$0xff]
                %632 = vst [vmem:[%s174 + $0x720] sm:$0xff] %v631
                %v633 = vld [vmem:[%s173 + $0xe28] sm:$0xff]
                %634 = vst [vmem:[%s174 + $0x728] sm:$0xff] %v633
                %v635 = vld [vmem:[%s173 + $0xe30] sm:$0xff]
                %636 = vst [vmem:[%s174 + $0x730] sm:$0xff] %v635
                %v637 = vld [vmem:[%s173 + $0xe38] sm:$0xff]
                %638 = vst [vmem:[%s174 + $0x738] sm:$0xff] %v637
                %v639 = vld [vmem:[%s173 + $0xe80] sm:$0xff]
                %640 = vst [vmem:[%s174 + $0x740] sm:$0xff] %v639
                %v641 = vld [vmem:[%s173 + $0xe88] sm:$0xff]
                %642 = vst [vmem:[%s174 + $0x748] sm:$0xff] %v641
                %v643 = vld [vmem:[%s173 + $0xe90] sm:$0xff]
                %644 = vst [vmem:[%s174 + $0x750] sm:$0xff] %v643
                %v645 = vld [vmem:[%s173 + $0xe98] sm:$0xff]
                %646 = vst [vmem:[%s174 + $0x758] sm:$0xff] %v645
                %v647 = vld [vmem:[%s173 + $0xea0] sm:$0xff]
                %648 = vst [vmem:[%s174 + $0x760] sm:$0xff] %v647
                %v649 = vld [vmem:[%s173 + $0xea8] sm:$0xff]
                %650 = vst [vmem:[%s174 + $0x768] sm:$0xff] %v649
                %v651 = vld [vmem:[%s173 + $0xeb0] sm:$0xff]
                %652 = vst [vmem:[%s174 + $0x770] sm:$0xff] %v651
                %v653 = vld [vmem:[%s173 + $0xeb8] sm:$0xff]
                %654 = vst [vmem:[%s174 + $0x778] sm:$0xff] %v653
                %v655 = vld [vmem:[%s173 + $0xf00] sm:$0xff]
                %656 = vst [vmem:[%s174 + $0x780] sm:$0xff] %v655
                %v657 = vld [vmem:[%s173 + $0xf08] sm:$0xff]
                %658 = vst [vmem:[%s174 + $0x788] sm:$0xff] %v657
                %v659 = vld [vmem:[%s173 + $0xf10] sm:$0xff]
                %660 = vst [vmem:[%s174 + $0x790] sm:$0xff] %v659
                %v661 = vld [vmem:[%s173 + $0xf18] sm:$0xff]
                %662 = vst [vmem:[%s174 + $0x798] sm:$0xff] %v661
                %v663 = vld [vmem:[%s173 + $0xf20] sm:$0xff]
                %664 = vst [vmem:[%s174 + $0x7a0] sm:$0xff] %v663
                %v665 = vld [vmem:[%s173 + $0xf28] sm:$0xff]
                %666 = vst [vmem:[%s174 + $0x7a8] sm:$0xff] %v665
                %v667 = vld [vmem:[%s173 + $0xf30] sm:$0xff]
                %668 = vst [vmem:[%s174 + $0x7b0] sm:$0xff] %v667
                %v669 = vld [vmem:[%s173 + $0xf38] sm:$0xff]
                %670 = vst [vmem:[%s174 + $0x7b8] sm:$0xff] %v669
                %v671 = vld [vmem:[%s173 + $0xf80] sm:$0xff]
                %672 = vst [vmem:[%s174 + $0x7c0] sm:$0xff] %v671
                %v673 = vld [vmem:[%s173 + $0xf88] sm:$0xff]
                %674 = vst [vmem:[%s174 + $0x7c8] sm:$0xff] %v673
                %v675 = vld [vmem:[%s173 + $0xf90] sm:$0xff]
                %676 = vst [vmem:[%s174 + $0x7d0] sm:$0xff] %v675
                %v677 = vld [vmem:[%s173 + $0xf98] sm:$0xff]
                %678 = vst [vmem:[%s174 + $0x7d8] sm:$0xff] %v677
                %v679 = vld [vmem:[%s173 + $0xfa0] sm:$0xff]
                %680 = vst [vmem:[%s174 + $0x7e0] sm:$0xff] %v679
                %v681 = vld [vmem:[%s173 + $0xfa8] sm:$0xff]
                %682 = vst [vmem:[%s174 + $0x7e8] sm:$0xff] %v681
                %v683 = vld [vmem:[%s173 + $0xfb0] sm:$0xff]
                %684 = vst [vmem:[%s174 + $0x7f0] sm:$0xff] %v683
                %v685 = vld [vmem:[%s173 + $0xfb8] sm:$0xff]
                %686 = vst [vmem:[%s174 + $0x7f8] sm:$0xff] %v685
                %v687 = vld [vmem:[%s173 + $0x1000] sm:$0xff]
                %688 = vst [vmem:[%s174 + $0x800] sm:$0xff] %v687
                %v689 = vld [vmem:[%s173 + $0x1008] sm:$0xff]
                %690 = vst [vmem:[%s174 + $0x808] sm:$0xff] %v689
                %v691 = vld [vmem:[%s173 + $0x1010] sm:$0xff]
                %692 = vst [vmem:[%s174 + $0x810] sm:$0xff] %v691
                %v693 = vld [vmem:[%s173 + $0x1018] sm:$0xff]
                %694 = vst [vmem:[%s174 + $0x818] sm:$0xff] %v693
                %v695 = vld [vmem:[%s173 + $0x1020] sm:$0xff]
                %696 = vst [vmem:[%s174 + $0x820] sm:$0xff] %v695
                %v697 = vld [vmem:[%s173 + $0x1028] sm:$0xff]
                %698 = vst [vmem:[%s174 + $0x828] sm:$0xff] %v697
                %v699 = vld [vmem:[%s173 + $0x1030] sm:$0xff]
                %700 = vst [vmem:[%s174 + $0x830] sm:$0xff] %v699
                %v701 = vld [vmem:[%s173 + $0x1038] sm:$0xff]
                %702 = vst [vmem:[%s174 + $0x838] sm:$0xff] %v701
                %v703 = vld [vmem:[%s173 + $0x1080] sm:$0xff]
                %704 = vst [vmem:[%s174 + $0x840] sm:$0xff] %v703
                %v705 = vld [vmem:[%s173 + $0x1088] sm:$0xff]
                %706 = vst [vmem:[%s174 + $0x848] sm:$0xff] %v705
                %v707 = vld [vmem:[%s173 + $0x1090] sm:$0xff]
                %708 = vst [vmem:[%s174 + $0x850] sm:$0xff] %v707
                %v709 = vld [vmem:[%s173 + $0x1098] sm:$0xff]
                %710 = vst [vmem:[%s174 + $0x858] sm:$0xff] %v709
                %v711 = vld [vmem:[%s173 + $0x10a0] sm:$0xff]
                %712 = vst [vmem:[%s174 + $0x860] sm:$0xff] %v711
                %v713 = vld [vmem:[%s173 + $0x10a8] sm:$0xff]
                %714 = vst [vmem:[%s174 + $0x868] sm:$0xff] %v713
                %v715 = vld [vmem:[%s173 + $0x10b0] sm:$0xff]
                %716 = vst [vmem:[%s174 + $0x870] sm:$0xff] %v715
                %v717 = vld [vmem:[%s173 + $0x10b8] sm:$0xff]
                %718 = vst [vmem:[%s174 + $0x878] sm:$0xff] %v717
                %v719 = vld [vmem:[%s173 + $0x1100] sm:$0xff]
                %720 = vst [vmem:[%s174 + $0x880] sm:$0xff] %v719
                %v721 = vld [vmem:[%s173 + $0x1108] sm:$0xff]
                %722 = vst [vmem:[%s174 + $0x888] sm:$0xff] %v721
                %v723 = vld [vmem:[%s173 + $0x1110] sm:$0xff]
                %724 = vst [vmem:[%s174 + $0x890] sm:$0xff] %v723
                %v725 = vld [vmem:[%s173 + $0x1118] sm:$0xff]
                %726 = vst [vmem:[%s174 + $0x898] sm:$0xff] %v725
                %v727 = vld [vmem:[%s173 + $0x1120] sm:$0xff]
                %728 = vst [vmem:[%s174 + $0x8a0] sm:$0xff] %v727
                %v729 = vld [vmem:[%s173 + $0x1128] sm:$0xff]
                %730 = vst [vmem:[%s174 + $0x8a8] sm:$0xff] %v729
                %v731 = vld [vmem:[%s173 + $0x1130] sm:$0xff]
                %732 = vst [vmem:[%s174 + $0x8b0] sm:$0xff] %v731
                %v733 = vld [vmem:[%s173 + $0x1138] sm:$0xff]
                %734 = vst [vmem:[%s174 + $0x8b8] sm:$0xff] %v733
                %v735 = vld [vmem:[%s173 + $0x1180] sm:$0xff]
                %736 = vst [vmem:[%s174 + $0x8c0] sm:$0xff] %v735
                %v737 = vld [vmem:[%s173 + $0x1188] sm:$0xff]
                %738 = vst [vmem:[%s174 + $0x8c8] sm:$0xff] %v737
                %v739 = vld [vmem:[%s173 + $0x1190] sm:$0xff]
                %740 = vst [vmem:[%s174 + $0x8d0] sm:$0xff] %v739
                %v741 = vld [vmem:[%s173 + $0x1198] sm:$0xff]
                %742 = vst [vmem:[%s174 + $0x8d8] sm:$0xff] %v741
                %v743 = vld [vmem:[%s173 + $0x11a0] sm:$0xff]
                %744 = vst [vmem:[%s174 + $0x8e0] sm:$0xff] %v743
                %v745 = vld [vmem:[%s173 + $0x11a8] sm:$0xff]
                %746 = vst [vmem:[%s174 + $0x8e8] sm:$0xff] %v745
                %v747 = vld [vmem:[%s173 + $0x11b0] sm:$0xff]
                %748 = vst [vmem:[%s174 + $0x8f0] sm:$0xff] %v747
                %v749 = vld [vmem:[%s173 + $0x11b8] sm:$0xff]
                %750 = vst [vmem:[%s174 + $0x8f8] sm:$0xff] %v749
                %v751 = vld [vmem:[%s173 + $0x1200] sm:$0xff]
                %752 = vst [vmem:[%s174 + $0x900] sm:$0xff] %v751
                %v753 = vld [vmem:[%s173 + $0x1208] sm:$0xff]
                %754 = vst [vmem:[%s174 + $0x908] sm:$0xff] %v753
                %v755 = vld [vmem:[%s173 + $0x1210] sm:$0xff]
                %756 = vst [vmem:[%s174 + $0x910] sm:$0xff] %v755
                %v757 = vld [vmem:[%s173 + $0x1218] sm:$0xff]
                %758 = vst [vmem:[%s174 + $0x918] sm:$0xff] %v757
                %v759 = vld [vmem:[%s173 + $0x1220] sm:$0xff]
                %760 = vst [vmem:[%s174 + $0x920] sm:$0xff] %v759
                %v761 = vld [vmem:[%s173 + $0x1228] sm:$0xff]
                %762 = vst [vmem:[%s174 + $0x928] sm:$0xff] %v761
                %v763 = vld [vmem:[%s173 + $0x1230] sm:$0xff]
                %764 = vst [vmem:[%s174 + $0x930] sm:$0xff] %v763
                %v765 = vld [vmem:[%s173 + $0x1238] sm:$0xff]
                %766 = vst [vmem:[%s174 + $0x938] sm:$0xff] %v765
                %v767 = vld [vmem:[%s173 + $0x1280] sm:$0xff]
                %768 = vst [vmem:[%s174 + $0x940] sm:$0xff] %v767
                %v769 = vld [vmem:[%s173 + $0x1288] sm:$0xff]
                %770 = vst [vmem:[%s174 + $0x948] sm:$0xff] %v769
                %v771 = vld [vmem:[%s173 + $0x1290] sm:$0xff]
                %772 = vst [vmem:[%s174 + $0x950] sm:$0xff] %v771
                %v773 = vld [vmem:[%s173 + $0x1298] sm:$0xff]
                %774 = vst [vmem:[%s174 + $0x958] sm:$0xff] %v773
                %v775 = vld [vmem:[%s173 + $0x12a0] sm:$0xff]
                %776 = vst [vmem:[%s174 + $0x960] sm:$0xff] %v775
                %v777 = vld [vmem:[%s173 + $0x12a8] sm:$0xff]
                %778 = vst [vmem:[%s174 + $0x968] sm:$0xff] %v777
                %v779 = vld [vmem:[%s173 + $0x12b0] sm:$0xff]
                %780 = vst [vmem:[%s174 + $0x970] sm:$0xff] %v779
                %v781 = vld [vmem:[%s173 + $0x12b8] sm:$0xff]
                %782 = vst [vmem:[%s174 + $0x978] sm:$0xff] %v781
                %v783 = vld [vmem:[%s173 + $0x1300] sm:$0xff]
                %784 = vst [vmem:[%s174 + $0x980] sm:$0xff] %v783
                %v785 = vld [vmem:[%s173 + $0x1308] sm:$0xff]
                %786 = vst [vmem:[%s174 + $0x988] sm:$0xff] %v785
                %v787 = vld [vmem:[%s173 + $0x1310] sm:$0xff]
                %788 = vst [vmem:[%s174 + $0x990] sm:$0xff] %v787
                %v789 = vld [vmem:[%s173 + $0x1318] sm:$0xff]
                %790 = vst [vmem:[%s174 + $0x998] sm:$0xff] %v789
                %v791 = vld [vmem:[%s173 + $0x1320] sm:$0xff]
                %792 = vst [vmem:[%s174 + $0x9a0] sm:$0xff] %v791
                %v793 = vld [vmem:[%s173 + $0x1328] sm:$0xff]
                %794 = vst [vmem:[%s174 + $0x9a8] sm:$0xff] %v793
                %v795 = vld [vmem:[%s173 + $0x1330] sm:$0xff]
                %796 = vst [vmem:[%s174 + $0x9b0] sm:$0xff] %v795
                %v797 = vld [vmem:[%s173 + $0x1338] sm:$0xff]
                %798 = vst [vmem:[%s174 + $0x9b8] sm:$0xff] %v797
                %v799 = vld [vmem:[%s173 + $0x1380] sm:$0xff]
                %800 = vst [vmem:[%s174 + $0x9c0] sm:$0xff] %v799
                %v801 = vld [vmem:[%s173 + $0x1388] sm:$0xff]
                %802 = vst [vmem:[%s174 + $0x9c8] sm:$0xff] %v801
                %v803 = vld [vmem:[%s173 + $0x1390] sm:$0xff]
                %804 = vst [vmem:[%s174 + $0x9d0] sm:$0xff] %v803
                %v805 = vld [vmem:[%s173 + $0x1398] sm:$0xff]
                %806 = vst [vmem:[%s174 + $0x9d8] sm:$0xff] %v805
                %v807 = vld [vmem:[%s173 + $0x13a0] sm:$0xff]
                %808 = vst [vmem:[%s174 + $0x9e0] sm:$0xff] %v807
                %v809 = vld [vmem:[%s173 + $0x13a8] sm:$0xff]
                %810 = vst [vmem:[%s174 + $0x9e8] sm:$0xff] %v809
                %v811 = vld [vmem:[%s173 + $0x13b0] sm:$0xff]
                %812 = vst [vmem:[%s174 + $0x9f0] sm:$0xff] %v811
                %v813 = vld [vmem:[%s173 + $0x13b8] sm:$0xff]
                %814 = vst [vmem:[%s174 + $0x9f8] sm:$0xff] %v813
                %v815 = vld [vmem:[%s173 + $0x1400] sm:$0xff]
                %816 = vst [vmem:[%s174 + $0xa00] sm:$0xff] %v815
                %v817 = vld [vmem:[%s173 + $0x1408] sm:$0xff]
                %818 = vst [vmem:[%s174 + $0xa08] sm:$0xff] %v817
                %v819 = vld [vmem:[%s173 + $0x1410] sm:$0xff]
                %820 = vst [vmem:[%s174 + $0xa10] sm:$0xff] %v819
                %v821 = vld [vmem:[%s173 + $0x1418] sm:$0xff]
                %822 = vst [vmem:[%s174 + $0xa18] sm:$0xff] %v821
                %v823 = vld [vmem:[%s173 + $0x1420] sm:$0xff]
                %824 = vst [vmem:[%s174 + $0xa20] sm:$0xff] %v823
                %v825 = vld [vmem:[%s173 + $0x1428] sm:$0xff]
                %826 = vst [vmem:[%s174 + $0xa28] sm:$0xff] %v825
                %v827 = vld [vmem:[%s173 + $0x1430] sm:$0xff]
                %828 = vst [vmem:[%s174 + $0xa30] sm:$0xff] %v827
                %v829 = vld [vmem:[%s173 + $0x1438] sm:$0xff]
                %830 = vst [vmem:[%s174 + $0xa38] sm:$0xff] %v829
                %v831 = vld [vmem:[%s173 + $0x1480] sm:$0xff]
                %832 = vst [vmem:[%s174 + $0xa40] sm:$0xff] %v831
                %v833 = vld [vmem:[%s173 + $0x1488] sm:$0xff]
                %834 = vst [vmem:[%s174 + $0xa48] sm:$0xff] %v833
                %v835 = vld [vmem:[%s173 + $0x1490] sm:$0xff]
                %836 = vst [vmem:[%s174 + $0xa50] sm:$0xff] %v835
                %v837 = vld [vmem:[%s173 + $0x1498] sm:$0xff]
                %838 = vst [vmem:[%s174 + $0xa58] sm:$0xff] %v837
                %v839 = vld [vmem:[%s173 + $0x14a0] sm:$0xff]
                %840 = vst [vmem:[%s174 + $0xa60] sm:$0xff] %v839
                %v841 = vld [vmem:[%s173 + $0x14a8] sm:$0xff]
                %842 = vst [vmem:[%s174 + $0xa68] sm:$0xff] %v841
                %v843 = vld [vmem:[%s173 + $0x14b0] sm:$0xff]
                %844 = vst [vmem:[%s174 + $0xa70] sm:$0xff] %v843
                %v845 = vld [vmem:[%s173 + $0x14b8] sm:$0xff]
                %846 = vst [vmem:[%s174 + $0xa78] sm:$0xff] %v845
                %v847 = vld [vmem:[%s173 + $0x1500] sm:$0xff]
                %848 = vst [vmem:[%s174 + $0xa80] sm:$0xff] %v847
                %v849 = vld [vmem:[%s173 + $0x1508] sm:$0xff]
                %850 = vst [vmem:[%s174 + $0xa88] sm:$0xff] %v849
                %v851 = vld [vmem:[%s173 + $0x1510] sm:$0xff]
                %852 = vst [vmem:[%s174 + $0xa90] sm:$0xff] %v851
                %v853 = vld [vmem:[%s173 + $0x1518] sm:$0xff]
                %854 = vst [vmem:[%s174 + $0xa98] sm:$0xff] %v853
                %v855 = vld [vmem:[%s173 + $0x1520] sm:$0xff]
                %856 = vst [vmem:[%s174 + $0xaa0] sm:$0xff] %v855
                %v857 = vld [vmem:[%s173 + $0x1528] sm:$0xff]
                %858 = vst [vmem:[%s174 + $0xaa8] sm:$0xff] %v857
                %v859 = vld [vmem:[%s173 + $0x1530] sm:$0xff]
                %860 = vst [vmem:[%s174 + $0xab0] sm:$0xff] %v859
                %v861 = vld [vmem:[%s173 + $0x1538] sm:$0xff]
                %862 = vst [vmem:[%s174 + $0xab8] sm:$0xff] %v861
                %v863 = vld [vmem:[%s173 + $0x1580] sm:$0xff]
                %864 = vst [vmem:[%s174 + $0xac0] sm:$0xff] %v863
                %v865 = vld [vmem:[%s173 + $0x1588] sm:$0xff]
                %866 = vst [vmem:[%s174 + $0xac8] sm:$0xff] %v865
                %v867 = vld [vmem:[%s173 + $0x1590] sm:$0xff]
                %868 = vst [vmem:[%s174 + $0xad0] sm:$0xff] %v867
                %v869 = vld [vmem:[%s173 + $0x1598] sm:$0xff]
                %870 = vst [vmem:[%s174 + $0xad8] sm:$0xff] %v869
                %v871 = vld [vmem:[%s173 + $0x15a0] sm:$0xff]
                %872 = vst [vmem:[%s174 + $0xae0] sm:$0xff] %v871
                %v873 = vld [vmem:[%s173 + $0x15a8] sm:$0xff]
                %874 = vst [vmem:[%s174 + $0xae8] sm:$0xff] %v873
                %v875 = vld [vmem:[%s173 + $0x15b0] sm:$0xff]
                %876 = vst [vmem:[%s174 + $0xaf0] sm:$0xff] %v875
                %v877 = vld [vmem:[%s173 + $0x15b8] sm:$0xff]
                %878 = vst [vmem:[%s174 + $0xaf8] sm:$0xff] %v877
                %v879 = vld [vmem:[%s173 + $0x1600] sm:$0xff]
                %880 = vst [vmem:[%s174 + $0xb00] sm:$0xff] %v879
                %v881 = vld [vmem:[%s173 + $0x1608] sm:$0xff]
                %882 = vst [vmem:[%s174 + $0xb08] sm:$0xff] %v881
                %v883 = vld [vmem:[%s173 + $0x1610] sm:$0xff]
                %884 = vst [vmem:[%s174 + $0xb10] sm:$0xff] %v883
                %v885 = vld [vmem:[%s173 + $0x1618] sm:$0xff]
                %886 = vst [vmem:[%s174 + $0xb18] sm:$0xff] %v885
                %v887 = vld [vmem:[%s173 + $0x1620] sm:$0xff]
                %888 = vst [vmem:[%s174 + $0xb20] sm:$0xff] %v887
                %v889 = vld [vmem:[%s173 + $0x1628] sm:$0xff]
                %890 = vst [vmem:[%s174 + $0xb28] sm:$0xff] %v889
                %v891 = vld [vmem:[%s173 + $0x1630] sm:$0xff]
                %892 = vst [vmem:[%s174 + $0xb30] sm:$0xff] %v891
                %v893 = vld [vmem:[%s173 + $0x1638] sm:$0xff]
                %894 = vst [vmem:[%s174 + $0xb38] sm:$0xff] %v893
                %v895 = vld [vmem:[%s173 + $0x1680] sm:$0xff]
                %896 = vst [vmem:[%s174 + $0xb40] sm:$0xff] %v895
                %v897 = vld [vmem:[%s173 + $0x1688] sm:$0xff]
                %898 = vst [vmem:[%s174 + $0xb48] sm:$0xff] %v897
                %v899 = vld [vmem:[%s173 + $0x1690] sm:$0xff]
                %900 = vst [vmem:[%s174 + $0xb50] sm:$0xff] %v899
                %v901 = vld [vmem:[%s173 + $0x1698] sm:$0xff]
                %902 = vst [vmem:[%s174 + $0xb58] sm:$0xff] %v901
                %v903 = vld [vmem:[%s173 + $0x16a0] sm:$0xff]
                %904 = vst [vmem:[%s174 + $0xb60] sm:$0xff] %v903
                %v905 = vld [vmem:[%s173 + $0x16a8] sm:$0xff]
                %906 = vst [vmem:[%s174 + $0xb68] sm:$0xff] %v905
                %v907 = vld [vmem:[%s173 + $0x16b0] sm:$0xff]
                %908 = vst [vmem:[%s174 + $0xb70] sm:$0xff] %v907
                %v909 = vld [vmem:[%s173 + $0x16b8] sm:$0xff]
                %910 = vst [vmem:[%s174 + $0xb78] sm:$0xff] %v909
                %v911 = vld [vmem:[%s173 + $0x1700] sm:$0xff]
                %912 = vst [vmem:[%s174 + $0xb80] sm:$0xff] %v911
                %v913 = vld [vmem:[%s173 + $0x1708] sm:$0xff]
                %914 = vst [vmem:[%s174 + $0xb88] sm:$0xff] %v913
                %v915 = vld [vmem:[%s173 + $0x1710] sm:$0xff]
                %916 = vst [vmem:[%s174 + $0xb90] sm:$0xff] %v915
                %v917 = vld [vmem:[%s173 + $0x1718] sm:$0xff]
                %918 = vst [vmem:[%s174 + $0xb98] sm:$0xff] %v917
                %v919 = vld [vmem:[%s173 + $0x1720] sm:$0xff]
                %920 = vst [vmem:[%s174 + $0xba0] sm:$0xff] %v919
                %v921 = vld [vmem:[%s173 + $0x1728] sm:$0xff]
                %922 = vst [vmem:[%s174 + $0xba8] sm:$0xff] %v921
                %v923 = vld [vmem:[%s173 + $0x1730] sm:$0xff]
                %924 = vst [vmem:[%s174 + $0xbb0] sm:$0xff] %v923
                %v925 = vld [vmem:[%s173 + $0x1738] sm:$0xff]
                %926 = vst [vmem:[%s174 + $0xbb8] sm:$0xff] %v925
                %v927 = vld [vmem:[%s173 + $0x1780] sm:$0xff]
                %928 = vst [vmem:[%s174 + $0xbc0] sm:$0xff] %v927
                %v929 = vld [vmem:[%s173 + $0x1788] sm:$0xff]
                %930 = vst [vmem:[%s174 + $0xbc8] sm:$0xff] %v929
                %v931 = vld [vmem:[%s173 + $0x1790] sm:$0xff]
                %932 = vst [vmem:[%s174 + $0xbd0] sm:$0xff] %v931
                %v933 = vld [vmem:[%s173 + $0x1798] sm:$0xff]
                %934 = vst [vmem:[%s174 + $0xbd8] sm:$0xff] %v933
                %v935 = vld [vmem:[%s173 + $0x17a0] sm:$0xff]
                %936 = vst [vmem:[%s174 + $0xbe0] sm:$0xff] %v935
                %v937 = vld [vmem:[%s173 + $0x17a8] sm:$0xff]
                %938 = vst [vmem:[%s174 + $0xbe8] sm:$0xff] %v937
                %v939 = vld [vmem:[%s173 + $0x17b0] sm:$0xff]
                %940 = vst [vmem:[%s174 + $0xbf0] sm:$0xff] %v939
                %v941 = vld [vmem:[%s173 + $0x17b8] sm:$0xff]
                %942 = vst [vmem:[%s174 + $0xbf8] sm:$0xff] %v941
              $region45: #{alexnet_legacy_forward.7} parent=39 // loop_footer
                %s172 = sadd.s32 1, %s168
              $region46: #{alexnet_legacy_forward.7} parent=39 // loop_footer_branch
                %167 = sbr.rel target = $region42
              $region47: #{alexnet_legacy_forward.7} parent=39 // loop_exit
                _
            $region40: #{alexnet_legacy_forward.7} parent=35 // pred_fallthru
              _
            // Predicated region
            $region48: #{alexnet_legacy_forward.7} parent=35 // pred_check
              _
            $region49: #{alexnet_legacy_forward.7} parent=35 // pred_check_branch
              %944 = sbr.rel target = $region51
            $region50: #{alexnet_legacy_forward.7} parent=35 // pred_region
              _
            $region51: #{alexnet_legacy_forward.7} parent=35 // pred_fallthru
              _
          $region36: #{alexnet_legacy_forward.7} parent=31 // pred_fallthru
            _
          %945 = vnop
        $region32: #{alexnet_legacy_forward.7} parent=27 // pred_fallthru
          _
      $region28: #{alexnet_legacy_forward.7} parent=5 // pred_fallthru
        _
      %p946 = scmp.le.s32.totalorder 1, %s10
      %p947 = scmp.lt.s32.totalorder %s10, 3
      %p948 = pnand %p946, %p947
      %p949 = pneg %p948
      // Predicated region
      $region52: #{alexnet_legacy_forward.7} parent=5 // pred_check
        _
      $region53: #{alexnet_legacy_forward.7} parent=5 // pred_check_branch
        %951 = sbr.rel (%p948) target = $region55
      $region54: #{alexnet_legacy_forward.7} parent=5 // pred_region
        %s952 = ssub.s32 %s10, 1
        %s953 = sand.u32 %s44, 1
        %s954 = sand.u32 %s44, 1
        %s955 = smul.addr %s954, 3072
        %s956 = scalar_lea.vmem [#allocation2], %s955
        // Predicated region
        $region56: #{alexnet_legacy_forward.7} parent=54 // pred_check
          %p957 = pneg %p57
        $region57: #{alexnet_legacy_forward.7} parent=54 // pred_check_branch
          %959 = sbr.rel (%p957) target = $region59
        $region58: #{alexnet_legacy_forward.7} parent=54 // pred_region
          _
        $region59: #{alexnet_legacy_forward.7} parent=54 // pred_fallthru
          _
        %p960 = pneg %p31
        %p961 = pneg %p28
        %s962 = sand.u32 %s44, 1
        %s963 = sand.u32 %s44, 1
        %s964 = smul.addr %s963, 3072
        %s965 = scalar_lea.vmem [#allocation2], %s964
        %p966 = pneg %p57
        %p967 = pneg %p54
        %p968 = pneg %p78
        %p969 = pneg %p75
        %p970 = pneg %p99
        %p971 = pneg %p96
        %p972 = pneg %p125
        %p973 = pneg %p122
        %s974 = smul.u32 16, %s15
        %p975 = scmp.lt.s32.totalorder %s974, 31
        %s976 = scalar_select %p975, %s974, 31
        %s977 = smul.addr %s976, 8
        %s978 = scalar_lea.vmem %s4, %s977
        %s979 = smul.u32 16, %s15
        %s980 = smul.u32 16, %s15
        %p981 = scmp.lt.s32.totalorder %s980, 31
        %s982 = scalar_select %p981, %s980, 31
        %s983 = smul.addr %s982, 8
        %s984 = scalar_lea.vmem %s4, %s983
        %s985 = smul.u32 16, %s15
        %v987 = vld [vmem:[%s0] sm:$0x77]
        %v988 = vld [vmem:[%s0 + $0x8] sm:$0x7]
        %v989 = vld [vmem:[%s956] sm:$0xff]
        %v990 = vld [vmem:[%s956 + $0x8] sm:$0xff]
        %v991 = vld [vmem:[%s956 + $0x10] sm:$0xff]
        %v992 = vld [vmem:[%s956 + $0x18] sm:$0xff]
        %v993 = vld [vmem:[%s956 + $0x20] sm:$0xff]
        %v994 = vld [vmem:[%s956 + $0x28] sm:$0xff]
        %v995 = vld [vmem:[%s956 + $0x30] sm:$0xff]
        %v996 = vld [vmem:[%s956 + $0x38] sm:$0xff]
        %v997 = vld [vmem:[%s956 + $0x40] sm:$0xff]
        %v998 = vld [vmem:[%s956 + $0x48] sm:$0xff]
        %v999 = vld [vmem:[%s956 + $0x50] sm:$0xff]
        %v1000 = vld [vmem:[%s956 + $0x58] sm:$0xff]
        %v1001 = vld [vmem:[%s956 + $0x60] sm:$0xff]
        %v1002 = vld [vmem:[%s956 + $0x68] sm:$0xff]
        %v1003 = vld [vmem:[%s956 + $0x70] sm:$0xff]
        %v1004 = vld [vmem:[%s956 + $0x78] sm:$0xff]
        %v1005 = vld [vmem:[%s956 + $0x80] sm:$0xff]
        %v1006 = vld [vmem:[%s956 + $0x88] sm:$0xff]
        %v1007 = vld [vmem:[%s956 + $0x90] sm:$0xff]
        %v1008 = vld [vmem:[%s956 + $0x98] sm:$0xff]
        %v1009 = vld [vmem:[%s956 + $0xa0] sm:$0xff]
        %v1010 = vld [vmem:[%s956 + $0xa8] sm:$0xff]
        %v1011 = vld [vmem:[%s956 + $0xb0] sm:$0xff]
        %v1012 = vld [vmem:[%s956 + $0xb8] sm:$0xff]
        %v1013 = vld [vmem:[%s956 + $0xc0] sm:$0xff]
        %v1014 = vld [vmem:[%s956 + $0xc8] sm:$0xff]
        %v1015 = vld [vmem:[%s956 + $0xd0] sm:$0xff]
        %v1016 = vld [vmem:[%s956 + $0xd8] sm:$0xff]
        %v1017 = vld [vmem:[%s956 + $0xe0] sm:$0xff]
        %v1018 = vld [vmem:[%s956 + $0xe8] sm:$0xff]
        %v1019 = vld [vmem:[%s956 + $0xf0] sm:$0xff]
        %v1020 = vld [vmem:[%s956 + $0xf8] sm:$0xff]
        %v1021 = vld [vmem:[%s956 + $0x100] sm:$0xff]
        %v1022 = vld [vmem:[%s956 + $0x108] sm:$0xff]
        %v1023 = vld [vmem:[%s956 + $0x110] sm:$0xff]
        %v1024 = vld [vmem:[%s956 + $0x118] sm:$0xff]
        %v1025 = vld [vmem:[%s956 + $0x120] sm:$0xff]
        %v1026 = vld [vmem:[%s956 + $0x128] sm:$0xff]
        %v1027 = vld [vmem:[%s956 + $0x130] sm:$0xff]
        %v1028 = vld [vmem:[%s956 + $0x138] sm:$0xff]
        %v1029 = vld [vmem:[%s956 + $0x140] sm:$0xff]
        %v1030 = vld [vmem:[%s956 + $0x148] sm:$0xff]
        %v1031 = vld [vmem:[%s956 + $0x150] sm:$0xff]
        %v1032 = vld [vmem:[%s956 + $0x158] sm:$0xff]
        %v1033 = vld [vmem:[%s956 + $0x160] sm:$0xff]
        %v1034 = vld [vmem:[%s956 + $0x168] sm:$0xff]
        %v1035 = vld [vmem:[%s956 + $0x170] sm:$0xff]
        %v1036 = vld [vmem:[%s956 + $0x178] sm:$0xff]
        %v1037 = vld [vmem:[%s956 + $0x180] sm:$0xff]
        %v1038 = vld [vmem:[%s956 + $0x188] sm:$0xff]
        %v1039 = vld [vmem:[%s956 + $0x190] sm:$0xff]
        %v1040 = vld [vmem:[%s956 + $0x198] sm:$0xff]
        %v1041 = vld [vmem:[%s956 + $0x1a0] sm:$0xff]
        %v1042 = vld [vmem:[%s956 + $0x1a8] sm:$0xff]
        %v1043 = vld [vmem:[%s956 + $0x1b0] sm:$0xff]
        %v1044 = vld [vmem:[%s956 + $0x1b8] sm:$0xff]
        %v1045 = vld [vmem:[%s956 + $0x1c0] sm:$0xff]
        %v1046 = vld [vmem:[%s956 + $0x1c8] sm:$0xff]
        %v1047 = vld [vmem:[%s956 + $0x1d0] sm:$0xff]
        %v1048 = vld [vmem:[%s956 + $0x1d8] sm:$0xff]
        %v1049 = vld [vmem:[%s956 + $0x1e0] sm:$0xff]
        %v1050 = vld [vmem:[%s956 + $0x1e8] sm:$0xff]
        %v1051 = vld [vmem:[%s956 + $0x1f0] sm:$0xff]
        %v1052 = vld [vmem:[%s956 + $0x1f8] sm:$0xff]
        %v1053 = vld [vmem:[%s956 + $0x200] sm:$0xff]
        %v1054 = vld [vmem:[%s956 + $0x208] sm:$0xff]
        %v1055 = vld [vmem:[%s956 + $0x210] sm:$0xff]
        %v1056 = vld [vmem:[%s956 + $0x218] sm:$0xff]
        %v1057 = vld [vmem:[%s956 + $0x220] sm:$0xff]
        %v1058 = vld [vmem:[%s956 + $0x228] sm:$0xff]
        %v1059 = vld [vmem:[%s956 + $0x230] sm:$0xff]
        %v1060 = vld [vmem:[%s956 + $0x238] sm:$0xff]
        %v1061 = vld [vmem:[%s956 + $0x240] sm:$0xff]
        %v1062 = vld [vmem:[%s956 + $0x248] sm:$0xff]
        %v1063 = vld [vmem:[%s956 + $0x250] sm:$0xff]
        %v1064 = vld [vmem:[%s956 + $0x258] sm:$0xff]
        %v1065 = vld [vmem:[%s956 + $0x260] sm:$0xff]
        %v1066 = vld [vmem:[%s956 + $0x268] sm:$0xff]
        %v1067 = vld [vmem:[%s956 + $0x270] sm:$0xff]
        %v1068 = vld [vmem:[%s956 + $0x278] sm:$0xff]
        %v1069 = vld [vmem:[%s956 + $0x280] sm:$0xff]
        %v1070 = vld [vmem:[%s956 + $0x288] sm:$0xff]
        %v1071 = vld [vmem:[%s956 + $0x290] sm:$0xff]
        %v1072 = vld [vmem:[%s956 + $0x298] sm:$0xff]
        %v1073 = vld [vmem:[%s956 + $0x2a0] sm:$0xff]
        %v1074 = vld [vmem:[%s956 + $0x2a8] sm:$0xff]
        %v1075 = vld [vmem:[%s956 + $0x2b0] sm:$0xff]
        %v1076 = vld [vmem:[%s956 + $0x2b8] sm:$0xff]
        %v1077 = vld [vmem:[%s956 + $0x2c0] sm:$0xff]
        %v1078 = vld [vmem:[%s956 + $0x2c8] sm:$0xff]
        %v1079 = vld [vmem:[%s956 + $0x2d0] sm:$0xff]
        %v1080 = vld [vmem:[%s956 + $0x2d8] sm:$0xff]
        %v1081 = vld [vmem:[%s956 + $0x2e0] sm:$0xff]
        %v1082 = vld [vmem:[%s956 + $0x2e8] sm:$0xff]
        %v1083 = vld [vmem:[%s956 + $0x2f0] sm:$0xff]
        %v1084 = vld [vmem:[%s956 + $0x2f8] sm:$0xff]
        %v1085 = vld [vmem:[%s956 + $0x300] sm:$0xff]
        %v1086 = vld [vmem:[%s956 + $0x308] sm:$0xff]
        %v1087 = vld [vmem:[%s956 + $0x310] sm:$0xff]
        %v1088 = vld [vmem:[%s956 + $0x318] sm:$0xff]
        %v1089 = vld [vmem:[%s956 + $0x320] sm:$0xff]
        %v1090 = vld [vmem:[%s956 + $0x328] sm:$0xff]
        %v1091 = vld [vmem:[%s956 + $0x330] sm:$0xff]
        %v1092 = vld [vmem:[%s956 + $0x338] sm:$0xff]
        %v1093 = vld [vmem:[%s956 + $0x340] sm:$0xff]
        %v1094 = vld [vmem:[%s956 + $0x348] sm:$0xff]
        %v1095 = vld [vmem:[%s956 + $0x350] sm:$0xff]
        %v1096 = vld [vmem:[%s956 + $0x358] sm:$0xff]
        %v1097 = vld [vmem:[%s956 + $0x360] sm:$0xff]
        %v1098 = vld [vmem:[%s956 + $0x368] sm:$0xff]
        %v1099 = vld [vmem:[%s956 + $0x370] sm:$0xff]
        %v1100 = vld [vmem:[%s956 + $0x378] sm:$0xff]
        %v1101 = vld [vmem:[%s956 + $0x380] sm:$0xff]
        %v1102 = vld [vmem:[%s956 + $0x388] sm:$0xff]
        %v1103 = vld [vmem:[%s956 + $0x390] sm:$0xff]
        %v1104 = vld [vmem:[%s956 + $0x398] sm:$0xff]
        %v1105 = vld [vmem:[%s956 + $0x3a0] sm:$0xff]
        %v1106 = vld [vmem:[%s956 + $0x3a8] sm:$0xff]
        %v1107 = vld [vmem:[%s956 + $0x3b0] sm:$0xff]
        %v1108 = vld [vmem:[%s956 + $0x3b8] sm:$0xff]
        %v1109 = vld [vmem:[%s956 + $0x3c0] sm:$0xff]
        %v1110 = vld [vmem:[%s956 + $0x3c8] sm:$0xff]
        %v1111 = vld [vmem:[%s956 + $0x3d0] sm:$0xff]
        %v1112 = vld [vmem:[%s956 + $0x3d8] sm:$0xff]
        %v1113 = vld [vmem:[%s956 + $0x3e0] sm:$0xff]
        %v1114 = vld [vmem:[%s956 + $0x3e8] sm:$0xff]
        %v1115 = vld [vmem:[%s956 + $0x3f0] sm:$0xff]
        %v1116 = vld [vmem:[%s956 + $0x3f8] sm:$0xff]
        %v1117 = vld [vmem:[%s956 + $0x400] sm:$0xff]
        %v1118 = vld [vmem:[%s956 + $0x408] sm:$0xff]
        %v1119 = vld [vmem:[%s956 + $0x410] sm:$0xff]
        %v1120 = vld [vmem:[%s956 + $0x418] sm:$0xff]
        %v1121 = vld [vmem:[%s956 + $0x420] sm:$0xff]
        %v1122 = vld [vmem:[%s956 + $0x428] sm:$0xff]
        %v1123 = vld [vmem:[%s956 + $0x430] sm:$0xff]
        %v1124 = vld [vmem:[%s956 + $0x438] sm:$0xff]
        %v1125 = vld [vmem:[%s956 + $0x440] sm:$0xff]
        %v1126 = vld [vmem:[%s956 + $0x448] sm:$0xff]
        %v1127 = vld [vmem:[%s956 + $0x450] sm:$0xff]
        %v1128 = vld [vmem:[%s956 + $0x458] sm:$0xff]
        %v1129 = vld [vmem:[%s956 + $0x460] sm:$0xff]
        %v1130 = vld [vmem:[%s956 + $0x468] sm:$0xff]
        %v1131 = vld [vmem:[%s956 + $0x470] sm:$0xff]
        %v1132 = vld [vmem:[%s956 + $0x478] sm:$0xff]
        %v1133 = vld [vmem:[%s956 + $0x480] sm:$0xff]
        %v1134 = vld [vmem:[%s956 + $0x488] sm:$0xff]
        %v1135 = vld [vmem:[%s956 + $0x490] sm:$0xff]
        %v1136 = vld [vmem:[%s956 + $0x498] sm:$0xff]
        %v1137 = vld [vmem:[%s956 + $0x4a0] sm:$0xff]
        %v1138 = vld [vmem:[%s956 + $0x4a8] sm:$0xff]
        %v1139 = vld [vmem:[%s956 + $0x4b0] sm:$0xff]
        %v1140 = vld [vmem:[%s956 + $0x4b8] sm:$0xff]
        %v1141 = vld [vmem:[%s956 + $0x4c0] sm:$0xff]
        %v1142 = vld [vmem:[%s956 + $0x4c8] sm:$0xff]
        %v1143 = vld [vmem:[%s956 + $0x4d0] sm:$0xff]
        %v1144 = vld [vmem:[%s956 + $0x4d8] sm:$0xff]
        %v1145 = vld [vmem:[%s956 + $0x4e0] sm:$0xff]
        %v1146 = vld [vmem:[%s956 + $0x4e8] sm:$0xff]
        %v1147 = vld [vmem:[%s956 + $0x4f0] sm:$0xff]
        %v1148 = vld [vmem:[%s956 + $0x4f8] sm:$0xff]
        %v1149 = vld [vmem:[%s956 + $0x500] sm:$0xff]
        %v1150 = vld [vmem:[%s956 + $0x508] sm:$0xff]
        %v1151 = vld [vmem:[%s956 + $0x510] sm:$0xff]
        %v1152 = vld [vmem:[%s956 + $0x518] sm:$0xff]
        %v1153 = vld [vmem:[%s956 + $0x520] sm:$0xff]
        %v1154 = vld [vmem:[%s956 + $0x528] sm:$0xff]
        %v1155 = vld [vmem:[%s956 + $0x530] sm:$0xff]
        %v1156 = vld [vmem:[%s956 + $0x538] sm:$0xff]
        %v1157 = vld [vmem:[%s956 + $0x540] sm:$0xff]
        %v1158 = vld [vmem:[%s956 + $0x548] sm:$0xff]
        %v1159 = vld [vmem:[%s956 + $0x550] sm:$0xff]
        %v1160 = vld [vmem:[%s956 + $0x558] sm:$0xff]
        %v1161 = vld [vmem:[%s956 + $0x560] sm:$0xff]
        %v1162 = vld [vmem:[%s956 + $0x568] sm:$0xff]
        %v1163 = vld [vmem:[%s956 + $0x570] sm:$0xff]
        %v1164 = vld [vmem:[%s956 + $0x578] sm:$0xff]
        %v1165 = vld [vmem:[%s956 + $0x580] sm:$0xff]
        %v1166 = vld [vmem:[%s956 + $0x588] sm:$0xff]
        %v1167 = vld [vmem:[%s956 + $0x590] sm:$0xff]
        %v1168 = vld [vmem:[%s956 + $0x598] sm:$0xff]
        %v1169 = vld [vmem:[%s956 + $0x5a0] sm:$0xff]
        %v1170 = vld [vmem:[%s956 + $0x5a8] sm:$0xff]
        %v1171 = vld [vmem:[%s956 + $0x5b0] sm:$0xff]
        %v1172 = vld [vmem:[%s956 + $0x5b8] sm:$0xff]
        %v1173 = vld [vmem:[%s956 + $0x5c0] sm:$0xff]
        %v1174 = vld [vmem:[%s956 + $0x5c8] sm:$0xff]
        %v1175 = vld [vmem:[%s956 + $0x5d0] sm:$0xff]
        %v1176 = vld [vmem:[%s956 + $0x5d8] sm:$0xff]
        %v1177 = vld [vmem:[%s956 + $0x5e0] sm:$0xff]
        %v1178 = vld [vmem:[%s956 + $0x5e8] sm:$0xff]
        %v1179 = vld [vmem:[%s956 + $0x5f0] sm:$0xff]
        %v1180 = vld [vmem:[%s956 + $0x5f8] sm:$0xff]
        %v1181 = vld [vmem:[%s956 + $0x600] sm:$0xff]
        %v1182 = vld [vmem:[%s956 + $0x608] sm:$0xff]
        %v1183 = vld [vmem:[%s956 + $0x610] sm:$0xff]
        %v1184 = vld [vmem:[%s956 + $0x618] sm:$0xff]
        %v1185 = vld [vmem:[%s956 + $0x620] sm:$0xff]
        %v1186 = vld [vmem:[%s956 + $0x628] sm:$0xff]
        %v1187 = vld [vmem:[%s956 + $0x630] sm:$0xff]
        %v1188 = vld [vmem:[%s956 + $0x638] sm:$0xff]
        %v1189 = vld [vmem:[%s956 + $0x640] sm:$0xff]
        %v1190 = vld [vmem:[%s956 + $0x648] sm:$0xff]
        %v1191 = vld [vmem:[%s956 + $0x650] sm:$0xff]
        %v1192 = vld [vmem:[%s956 + $0x658] sm:$0xff]
        %v1193 = vld [vmem:[%s956 + $0x660] sm:$0xff]
        %v1194 = vld [vmem:[%s956 + $0x668] sm:$0xff]
        %v1195 = vld [vmem:[%s956 + $0x670] sm:$0xff]
        %v1196 = vld [vmem:[%s956 + $0x678] sm:$0xff]
        %v1197 = vld [vmem:[%s956 + $0x680] sm:$0xff]
        %v1198 = vld [vmem:[%s956 + $0x688] sm:$0xff]
        %v1199 = vld [vmem:[%s956 + $0x690] sm:$0xff]
        %v1200 = vld [vmem:[%s956 + $0x698] sm:$0xff]
        %v1201 = vld [vmem:[%s956 + $0x6a0] sm:$0xff]
        %v1202 = vld [vmem:[%s956 + $0x6a8] sm:$0xff]
        %v1203 = vld [vmem:[%s956 + $0x6b0] sm:$0xff]
        %v1204 = vld [vmem:[%s956 + $0x6b8] sm:$0xff]
        %v1205 = vld [vmem:[%s956 + $0x6c0] sm:$0xff]
        %v1206 = vld [vmem:[%s956 + $0x6c8] sm:$0xff]
        %v1207 = vld [vmem:[%s956 + $0x6d0] sm:$0xff]
        %v1208 = vld [vmem:[%s956 + $0x6d8] sm:$0xff]
        %v1209 = vld [vmem:[%s956 + $0x6e0] sm:$0xff]
        %v1210 = vld [vmem:[%s956 + $0x6e8] sm:$0xff]
        %v1211 = vld [vmem:[%s956 + $0x6f0] sm:$0xff]
        %v1212 = vld [vmem:[%s956 + $0x6f8] sm:$0xff]
        %v1213 = vld [vmem:[%s956 + $0x700] sm:$0xff]
        %v1214 = vld [vmem:[%s956 + $0x708] sm:$0xff]
        %v1215 = vld [vmem:[%s956 + $0x710] sm:$0xff]
        %v1216 = vld [vmem:[%s956 + $0x718] sm:$0xff]
        %v1217 = vld [vmem:[%s956 + $0x720] sm:$0xff]
        %v1218 = vld [vmem:[%s956 + $0x728] sm:$0xff]
        %v1219 = vld [vmem:[%s956 + $0x730] sm:$0xff]
        %v1220 = vld [vmem:[%s956 + $0x738] sm:$0xff]
        %v1221 = vld [vmem:[%s956 + $0x740] sm:$0xff]
        %v1222 = vld [vmem:[%s956 + $0x748] sm:$0xff]
        %v1223 = vld [vmem:[%s956 + $0x750] sm:$0xff]
        %v1224 = vld [vmem:[%s956 + $0x758] sm:$0xff]
        %v1225 = vld [vmem:[%s956 + $0x760] sm:$0xff]
        %v1226 = vld [vmem:[%s956 + $0x768] sm:$0xff]
        %v1227 = vld [vmem:[%s956 + $0x770] sm:$0xff]
        %v1228 = vld [vmem:[%s956 + $0x778] sm:$0xff]
        %v1229 = vld [vmem:[%s956 + $0x780] sm:$0xff]
        %v1230 = vld [vmem:[%s956 + $0x788] sm:$0xff]
        %v1231 = vld [vmem:[%s956 + $0x790] sm:$0xff]
        %v1232 = vld [vmem:[%s956 + $0x798] sm:$0xff]
        %v1233 = vld [vmem:[%s956 + $0x7a0] sm:$0xff]
        %v1234 = vld [vmem:[%s956 + $0x7a8] sm:$0xff]
        %v1235 = vld [vmem:[%s956 + $0x7b0] sm:$0xff]
        %v1236 = vld [vmem:[%s956 + $0x7b8] sm:$0xff]
        %v1237 = vld [vmem:[%s956 + $0x7c0] sm:$0xff]
        %v1238 = vld [vmem:[%s956 + $0x7c8] sm:$0xff]
        %v1239 = vld [vmem:[%s956 + $0x7d0] sm:$0xff]
        %v1240 = vld [vmem:[%s956 + $0x7d8] sm:$0xff]
        %v1241 = vld [vmem:[%s956 + $0x7e0] sm:$0xff]
        %v1242 = vld [vmem:[%s956 + $0x7e8] sm:$0xff]
        %v1243 = vld [vmem:[%s956 + $0x7f0] sm:$0xff]
        %v1244 = vld [vmem:[%s956 + $0x7f8] sm:$0xff]
        %v1245 = vld [vmem:[%s956 + $0x800] sm:$0xff]
        %v1246 = vld [vmem:[%s956 + $0x808] sm:$0xff]
        %v1247 = vld [vmem:[%s956 + $0x810] sm:$0xff]
        %v1248 = vld [vmem:[%s956 + $0x818] sm:$0xff]
        %v1249 = vld [vmem:[%s956 + $0x820] sm:$0xff]
        %v1250 = vld [vmem:[%s956 + $0x828] sm:$0xff]
        %v1251 = vld [vmem:[%s956 + $0x830] sm:$0xff]
        %v1252 = vld [vmem:[%s956 + $0x838] sm:$0xff]
        %v1253 = vld [vmem:[%s956 + $0x840] sm:$0xff]
        %v1254 = vld [vmem:[%s956 + $0x848] sm:$0xff]
        %v1255 = vld [vmem:[%s956 + $0x850] sm:$0xff]
        %v1256 = vld [vmem:[%s956 + $0x858] sm:$0xff]
        %v1257 = vld [vmem:[%s956 + $0x860] sm:$0xff]
        %v1258 = vld [vmem:[%s956 + $0x868] sm:$0xff]
        %v1259 = vld [vmem:[%s956 + $0x870] sm:$0xff]
        %v1260 = vld [vmem:[%s956 + $0x878] sm:$0xff]
        %v1261 = vld [vmem:[%s956 + $0x880] sm:$0xff]
        %v1262 = vld [vmem:[%s956 + $0x888] sm:$0xff]
        %v1263 = vld [vmem:[%s956 + $0x890] sm:$0xff]
        %v1264 = vld [vmem:[%s956 + $0x898] sm:$0xff]
        %v1265 = vld [vmem:[%s956 + $0x8a0] sm:$0xff]
        %v1266 = vld [vmem:[%s956 + $0x8a8] sm:$0xff]
        %v1267 = vld [vmem:[%s956 + $0x8b0] sm:$0xff]
        %v1268 = vld [vmem:[%s956 + $0x8b8] sm:$0xff]
        %v1269 = vld [vmem:[%s956 + $0x8c0] sm:$0xff]
        %v1270 = vld [vmem:[%s956 + $0x8c8] sm:$0xff]
        %v1271 = vld [vmem:[%s956 + $0x8d0] sm:$0xff]
        %v1272 = vld [vmem:[%s956 + $0x8d8] sm:$0xff]
        %v1273 = vld [vmem:[%s956 + $0x8e0] sm:$0xff]
        %v1274 = vld [vmem:[%s956 + $0x8e8] sm:$0xff]
        %v1275 = vld [vmem:[%s956 + $0x8f0] sm:$0xff]
        %v1276 = vld [vmem:[%s956 + $0x8f8] sm:$0xff]
        %v1277 = vld [vmem:[%s956 + $0x900] sm:$0xff]
        %v1278 = vld [vmem:[%s956 + $0x908] sm:$0xff]
        %v1279 = vld [vmem:[%s956 + $0x910] sm:$0xff]
        %v1280 = vld [vmem:[%s956 + $0x918] sm:$0xff]
        %v1281 = vld [vmem:[%s956 + $0x920] sm:$0xff]
        %v1282 = vld [vmem:[%s956 + $0x928] sm:$0xff]
        %v1283 = vld [vmem:[%s956 + $0x930] sm:$0xff]
        %v1284 = vld [vmem:[%s956 + $0x938] sm:$0xff]
        %v1285 = vld [vmem:[%s956 + $0x940] sm:$0xff]
        %v1286 = vld [vmem:[%s956 + $0x948] sm:$0xff]
        %v1287 = vld [vmem:[%s956 + $0x950] sm:$0xff]
        %v1288 = vld [vmem:[%s956 + $0x958] sm:$0xff]
        %v1289 = vld [vmem:[%s956 + $0x960] sm:$0xff]
        %v1290 = vld [vmem:[%s956 + $0x968] sm:$0xff]
        %v1291 = vld [vmem:[%s956 + $0x970] sm:$0xff]
        %v1292 = vld [vmem:[%s956 + $0x978] sm:$0xff]
        %v1293 = vld [vmem:[%s956 + $0x980] sm:$0xff]
        %v1294 = vld [vmem:[%s956 + $0x988] sm:$0xff]
        %v1295 = vld [vmem:[%s956 + $0x990] sm:$0xff]
        %v1296 = vld [vmem:[%s956 + $0x998] sm:$0xff]
        %v1297 = vld [vmem:[%s956 + $0x9a0] sm:$0xff]
        %v1298 = vld [vmem:[%s956 + $0x9a8] sm:$0xff]
        %v1299 = vld [vmem:[%s956 + $0x9b0] sm:$0xff]
        %v1300 = vld [vmem:[%s956 + $0x9b8] sm:$0xff]
        %v1301 = vld [vmem:[%s956 + $0x9c0] sm:$0xff]
        %v1302 = vld [vmem:[%s956 + $0x9c8] sm:$0xff]
        %v1303 = vld [vmem:[%s956 + $0x9d0] sm:$0xff]
        %v1304 = vld [vmem:[%s956 + $0x9d8] sm:$0xff]
        %v1305 = vld [vmem:[%s956 + $0x9e0] sm:$0xff]
        %v1306 = vld [vmem:[%s956 + $0x9e8] sm:$0xff]
        %v1307 = vld [vmem:[%s956 + $0x9f0] sm:$0xff]
        %v1308 = vld [vmem:[%s956 + $0x9f8] sm:$0xff]
        %v1309 = vld [vmem:[%s956 + $0xa00] sm:$0xff]
        %v1310 = vld [vmem:[%s956 + $0xa08] sm:$0xff]
        %v1311 = vld [vmem:[%s956 + $0xa10] sm:$0xff]
        %v1312 = vld [vmem:[%s956 + $0xa18] sm:$0xff]
        %v1313 = vld [vmem:[%s956 + $0xa20] sm:$0xff]
        %v1314 = vld [vmem:[%s956 + $0xa28] sm:$0xff]
        %v1315 = vld [vmem:[%s956 + $0xa30] sm:$0xff]
        %v1316 = vld [vmem:[%s956 + $0xa38] sm:$0xff]
        %v1317 = vld [vmem:[%s956 + $0xa40] sm:$0xff]
        %v1318 = vld [vmem:[%s956 + $0xa48] sm:$0xff]
        %v1319 = vld [vmem:[%s956 + $0xa50] sm:$0xff]
        %v1320 = vld [vmem:[%s956 + $0xa58] sm:$0xff]
        %v1321 = vld [vmem:[%s956 + $0xa60] sm:$0xff]
        %v1322 = vld [vmem:[%s956 + $0xa68] sm:$0xff]
        %v1323 = vld [vmem:[%s956 + $0xa70] sm:$0xff]
        %v1324 = vld [vmem:[%s956 + $0xa78] sm:$0xff]
        %v1325 = vld [vmem:[%s956 + $0xa80] sm:$0xff]
        %v1326 = vld [vmem:[%s956 + $0xa88] sm:$0xff]
        %v1327 = vld [vmem:[%s956 + $0xa90] sm:$0xff]
        %v1328 = vld [vmem:[%s956 + $0xa98] sm:$0xff]
        %v1329 = vld [vmem:[%s956 + $0xaa0] sm:$0xff]
        %v1330 = vld [vmem:[%s956 + $0xaa8] sm:$0xff]
        %v1331 = vld [vmem:[%s956 + $0xab0] sm:$0xff]
        %v1332 = vld [vmem:[%s956 + $0xab8] sm:$0xff]
        %v1333 = vld [vmem:[%s956 + $0xac0] sm:$0xff]
        %v1334 = vld [vmem:[%s956 + $0xac8] sm:$0xff]
        %v1335 = vld [vmem:[%s956 + $0xad0] sm:$0xff]
        %v1336 = vld [vmem:[%s956 + $0xad8] sm:$0xff]
        %v1337 = vld [vmem:[%s956 + $0xae0] sm:$0xff]
        %v1338 = vld [vmem:[%s956 + $0xae8] sm:$0xff]
        %v1339 = vld [vmem:[%s956 + $0xaf0] sm:$0xff]
        %v1340 = vld [vmem:[%s956 + $0xaf8] sm:$0xff]
        %v1341 = vld [vmem:[%s956 + $0xb00] sm:$0xff]
        %v1342 = vld [vmem:[%s956 + $0xb08] sm:$0xff]
        %v1343 = vld [vmem:[%s956 + $0xb10] sm:$0xff]
        %v1344 = vld [vmem:[%s956 + $0xb18] sm:$0xff]
        %v1345 = vld [vmem:[%s956 + $0xb20] sm:$0xff]
        %v1346 = vld [vmem:[%s956 + $0xb28] sm:$0xff]
        %v1347 = vld [vmem:[%s956 + $0xb30] sm:$0xff]
        %v1348 = vld [vmem:[%s956 + $0xb38] sm:$0xff]
        %v1349 = vld [vmem:[%s956 + $0xb40] sm:$0xff]
        %v1350 = vld [vmem:[%s956 + $0xb48] sm:$0xff]
        %v1351 = vld [vmem:[%s956 + $0xb50] sm:$0xff]
        %v1352 = vld [vmem:[%s956 + $0xb58] sm:$0xff]
        %v1353 = vld [vmem:[%s956 + $0xb60] sm:$0xff]
        %v1354 = vld [vmem:[%s956 + $0xb68] sm:$0xff]
        %v1355 = vld [vmem:[%s956 + $0xb70] sm:$0xff]
        %v1356 = vld [vmem:[%s956 + $0xb78] sm:$0xff]
        %v1357 = vld [vmem:[%s956 + $0xb80] sm:$0xff]
        %v1358 = vld [vmem:[%s956 + $0xb88] sm:$0xff]
        %v1359 = vld [vmem:[%s956 + $0xb90] sm:$0xff]
        %v1360 = vld [vmem:[%s956 + $0xb98] sm:$0xff]
        %v1361 = vld [vmem:[%s956 + $0xba0] sm:$0xff]
        %v1362 = vld [vmem:[%s956 + $0xba8] sm:$0xff]
        %v1363 = vld [vmem:[%s956 + $0xbb0] sm:$0xff]
        %v1364 = vld [vmem:[%s956 + $0xbb8] sm:$0xff]
        %v1365 = vld [vmem:[%s956 + $0xbc0] sm:$0xff]
        %v1366 = vld [vmem:[%s956 + $0xbc8] sm:$0xff]
        %v1367 = vld [vmem:[%s956 + $0xbd0] sm:$0xff]
        %v1368 = vld [vmem:[%s956 + $0xbd8] sm:$0xff]
        %v1369 = vld [vmem:[%s956 + $0xbe0] sm:$0xff]
        %v1370 = vld [vmem:[%s956 + $0xbe8] sm:$0xff]
        %v1371 = vld [vmem:[%s956 + $0xbf0] sm:$0xff]
        %v1372 = vld [vmem:[%s956 + $0xbf8] sm:$0xff]
        %v1375 = vunpack.c.l.b16 %v987
        %v1376 = vunpack.c.h.b16 %v987
        %v1377 = vunpack.c.l.b16 %v988
        %v1378 = vpack.c.b16 %v1375, %v1375
        %v1379 = vpack.c.b16 %v1376, %v1376
        %v1380 = vpack.c.b16 %v1377, %v1377
        %v1768 = vunpack.c.l.b16 %v989
        %v1769 = vunpack.c.h.b16 %v989
        %v1770 = vunpack.c.l.b16 %v990
        %v1771 = vunpack.c.h.b16 %v990
        %v1772 = vunpack.c.l.b16 %v991
        %v1773 = vunpack.c.h.b16 %v991
        %v1774 = vunpack.c.l.b16 %v992
        %v1775 = vunpack.c.h.b16 %v992
        %v1776 = vunpack.c.l.b16 %v993
        %v1777 = vunpack.c.h.b16 %v993
        %v1778 = vunpack.c.l.b16 %v994
        %v1779 = vunpack.c.h.b16 %v994
        %v1780 = vunpack.c.l.b16 %v995
        %v1781 = vunpack.c.h.b16 %v995
        %v1782 = vunpack.c.l.b16 %v996
        %v1783 = vunpack.c.h.b16 %v996
        %v1784 = vunpack.c.l.b16 %v997
        %v1785 = vunpack.c.h.b16 %v997
        %v1786 = vunpack.c.l.b16 %v998
        %v1787 = vunpack.c.h.b16 %v998
        %v1788 = vunpack.c.l.b16 %v999
        %v1789 = vunpack.c.h.b16 %v999
        %v1790 = vunpack.c.l.b16 %v1000
        %v1791 = vunpack.c.h.b16 %v1000
        %v1792 = vunpack.c.l.b16 %v1001
        %v1793 = vunpack.c.h.b16 %v1001
        %v1794 = vunpack.c.l.b16 %v1002
        %v1795 = vunpack.c.h.b16 %v1002
        %v1796 = vunpack.c.l.b16 %v1003
        %v1797 = vunpack.c.h.b16 %v1003
        %v1798 = vunpack.c.l.b16 %v1004
        %v1799 = vunpack.c.h.b16 %v1004
        %v1800 = vunpack.c.l.b16 %v1005
        %v1801 = vunpack.c.h.b16 %v1005
        %v1802 = vunpack.c.l.b16 %v1006
        %v1803 = vunpack.c.h.b16 %v1006
        %v1804 = vunpack.c.l.b16 %v1007
        %v1805 = vunpack.c.h.b16 %v1007
        %v1806 = vunpack.c.l.b16 %v1008
        %v1807 = vunpack.c.h.b16 %v1008
        %v1808 = vunpack.c.l.b16 %v1009
        %v1809 = vunpack.c.h.b16 %v1009
        %v1810 = vunpack.c.l.b16 %v1010
        %v1811 = vunpack.c.h.b16 %v1010
        %v1812 = vunpack.c.l.b16 %v1011
        %v1813 = vunpack.c.h.b16 %v1011
        %v1814 = vunpack.c.l.b16 %v1012
        %v1815 = vunpack.c.h.b16 %v1012
        %v1816 = vunpack.c.l.b16 %v1013
        %v1817 = vunpack.c.h.b16 %v1013
        %v1818 = vunpack.c.l.b16 %v1014
        %v1819 = vunpack.c.h.b16 %v1014
        %v1820 = vunpack.c.l.b16 %v1015
        %v1821 = vunpack.c.h.b16 %v1015
        %v1822 = vunpack.c.l.b16 %v1016
        %v1823 = vunpack.c.h.b16 %v1016
        %v1824 = vunpack.c.l.b16 %v1017
        %v1825 = vunpack.c.h.b16 %v1017
        %v1826 = vunpack.c.l.b16 %v1018
        %v1827 = vunpack.c.h.b16 %v1018
        %v1828 = vunpack.c.l.b16 %v1019
        %v1829 = vunpack.c.h.b16 %v1019
        %v1830 = vunpack.c.l.b16 %v1020
        %v1831 = vunpack.c.h.b16 %v1020
        %v1832 = vunpack.c.l.b16 %v1021
        %v1833 = vunpack.c.h.b16 %v1021
        %v1834 = vunpack.c.l.b16 %v1022
        %v1835 = vunpack.c.h.b16 %v1022
        %v1836 = vunpack.c.l.b16 %v1023
        %v1837 = vunpack.c.h.b16 %v1023
        %v1838 = vunpack.c.l.b16 %v1024
        %v1839 = vunpack.c.h.b16 %v1024
        %v1840 = vunpack.c.l.b16 %v1025
        %v1841 = vunpack.c.h.b16 %v1025
        %v1842 = vunpack.c.l.b16 %v1026
        %v1843 = vunpack.c.h.b16 %v1026
        %v1844 = vunpack.c.l.b16 %v1027
        %v1845 = vunpack.c.h.b16 %v1027
        %v1846 = vunpack.c.l.b16 %v1028
        %v1847 = vunpack.c.h.b16 %v1028
        %v1848 = vunpack.c.l.b16 %v1029
        %v1849 = vunpack.c.h.b16 %v1029
        %v1850 = vunpack.c.l.b16 %v1030
        %v1851 = vunpack.c.h.b16 %v1030
        %v1852 = vunpack.c.l.b16 %v1031
        %v1853 = vunpack.c.h.b16 %v1031
        %v1854 = vunpack.c.l.b16 %v1032
        %v1855 = vunpack.c.h.b16 %v1032
        %v1856 = vunpack.c.l.b16 %v1033
        %v1857 = vunpack.c.h.b16 %v1033
        %v1858 = vunpack.c.l.b16 %v1034
        %v1859 = vunpack.c.h.b16 %v1034
        %v1860 = vunpack.c.l.b16 %v1035
        %v1861 = vunpack.c.h.b16 %v1035
        %v1862 = vunpack.c.l.b16 %v1036
        %v1863 = vunpack.c.h.b16 %v1036
        %v1864 = vunpack.c.l.b16 %v1037
        %v1865 = vunpack.c.h.b16 %v1037
        %v1866 = vunpack.c.l.b16 %v1038
        %v1867 = vunpack.c.h.b16 %v1038
        %v1868 = vunpack.c.l.b16 %v1039
        %v1869 = vunpack.c.h.b16 %v1039
        %v1870 = vunpack.c.l.b16 %v1040
        %v1871 = vunpack.c.h.b16 %v1040
        %v1872 = vunpack.c.l.b16 %v1041
        %v1873 = vunpack.c.h.b16 %v1041
        %v1874 = vunpack.c.l.b16 %v1042
        %v1875 = vunpack.c.h.b16 %v1042
        %v1876 = vunpack.c.l.b16 %v1043
        %v1877 = vunpack.c.h.b16 %v1043
        %v1878 = vunpack.c.l.b16 %v1044
        %v1879 = vunpack.c.h.b16 %v1044
        %v1880 = vunpack.c.l.b16 %v1045
        %v1881 = vunpack.c.h.b16 %v1045
        %v1882 = vunpack.c.l.b16 %v1046
        %v1883 = vunpack.c.h.b16 %v1046
        %v1884 = vunpack.c.l.b16 %v1047
        %v1885 = vunpack.c.h.b16 %v1047
        %v1886 = vunpack.c.l.b16 %v1048
        %v1887 = vunpack.c.h.b16 %v1048
        %v1888 = vunpack.c.l.b16 %v1049
        %v1889 = vunpack.c.h.b16 %v1049
        %v1890 = vunpack.c.l.b16 %v1050
        %v1891 = vunpack.c.h.b16 %v1050
        %v1892 = vunpack.c.l.b16 %v1051
        %v1893 = vunpack.c.h.b16 %v1051
        %v1894 = vunpack.c.l.b16 %v1052
        %v1895 = vunpack.c.h.b16 %v1052
        %v1896 = vunpack.c.l.b16 %v1053
        %v1897 = vunpack.c.h.b16 %v1053
        %v1898 = vunpack.c.l.b16 %v1054
        %v1899 = vunpack.c.h.b16 %v1054
        %v1900 = vunpack.c.l.b16 %v1055
        %v1901 = vunpack.c.h.b16 %v1055
        %v1902 = vunpack.c.l.b16 %v1056
        %v1903 = vunpack.c.h.b16 %v1056
        %v1904 = vunpack.c.l.b16 %v1057
        %v1905 = vunpack.c.h.b16 %v1057
        %v1906 = vunpack.c.l.b16 %v1058
        %v1907 = vunpack.c.h.b16 %v1058
        %v1908 = vunpack.c.l.b16 %v1059
        %v1909 = vunpack.c.h.b16 %v1059
        %v1910 = vunpack.c.l.b16 %v1060
        %v1911 = vunpack.c.h.b16 %v1060
        %v1912 = vunpack.c.l.b16 %v1061
        %v1913 = vunpack.c.h.b16 %v1061
        %v1914 = vunpack.c.l.b16 %v1062
        %v1915 = vunpack.c.h.b16 %v1062
        %v1916 = vunpack.c.l.b16 %v1063
        %v1917 = vunpack.c.h.b16 %v1063
        %v1918 = vunpack.c.l.b16 %v1064
        %v1919 = vunpack.c.h.b16 %v1064
        %v1920 = vunpack.c.l.b16 %v1065
        %v1921 = vunpack.c.h.b16 %v1065
        %v1922 = vunpack.c.l.b16 %v1066
        %v1923 = vunpack.c.h.b16 %v1066
        %v1924 = vunpack.c.l.b16 %v1067
        %v1925 = vunpack.c.h.b16 %v1067
        %v1926 = vunpack.c.l.b16 %v1068
        %v1927 = vunpack.c.h.b16 %v1068
        %v1928 = vunpack.c.l.b16 %v1069
        %v1929 = vunpack.c.h.b16 %v1069
        %v1930 = vunpack.c.l.b16 %v1070
        %v1931 = vunpack.c.h.b16 %v1070
        %v1932 = vunpack.c.l.b16 %v1071
        %v1933 = vunpack.c.h.b16 %v1071
        %v1934 = vunpack.c.l.b16 %v1072
        %v1935 = vunpack.c.h.b16 %v1072
        %v1936 = vunpack.c.l.b16 %v1073
        %v1937 = vunpack.c.h.b16 %v1073
        %v1938 = vunpack.c.l.b16 %v1074
        %v1939 = vunpack.c.h.b16 %v1074
        %v1940 = vunpack.c.l.b16 %v1075
        %v1941 = vunpack.c.h.b16 %v1075
        %v1942 = vunpack.c.l.b16 %v1076
        %v1943 = vunpack.c.h.b16 %v1076
        %v1944 = vunpack.c.l.b16 %v1077
        %v1945 = vunpack.c.h.b16 %v1077
        %v1946 = vunpack.c.l.b16 %v1078
        %v1947 = vunpack.c.h.b16 %v1078
        %v1948 = vunpack.c.l.b16 %v1079
        %v1949 = vunpack.c.h.b16 %v1079
        %v1950 = vunpack.c.l.b16 %v1080
        %v1951 = vunpack.c.h.b16 %v1080
        %v1952 = vunpack.c.l.b16 %v1081
        %v1953 = vunpack.c.h.b16 %v1081
        %v1954 = vunpack.c.l.b16 %v1082
        %v1955 = vunpack.c.h.b16 %v1082
        %v1956 = vunpack.c.l.b16 %v1083
        %v1957 = vunpack.c.h.b16 %v1083
        %v1958 = vunpack.c.l.b16 %v1084
        %v1959 = vunpack.c.h.b16 %v1084
        %v1960 = vunpack.c.l.b16 %v1085
        %v1961 = vunpack.c.h.b16 %v1085
        %v1962 = vunpack.c.l.b16 %v1086
        %v1963 = vunpack.c.h.b16 %v1086
        %v1964 = vunpack.c.l.b16 %v1087
        %v1965 = vunpack.c.h.b16 %v1087
        %v1966 = vunpack.c.l.b16 %v1088
        %v1967 = vunpack.c.h.b16 %v1088
        %v1968 = vunpack.c.l.b16 %v1089
        %v1969 = vunpack.c.h.b16 %v1089
        %v1970 = vunpack.c.l.b16 %v1090
        %v1971 = vunpack.c.h.b16 %v1090
        %v1972 = vunpack.c.l.b16 %v1091
        %v1973 = vunpack.c.h.b16 %v1091
        %v1974 = vunpack.c.l.b16 %v1092
        %v1975 = vunpack.c.h.b16 %v1092
        %v1976 = vunpack.c.l.b16 %v1093
        %v1977 = vunpack.c.h.b16 %v1093
        %v1978 = vunpack.c.l.b16 %v1094
        %v1979 = vunpack.c.h.b16 %v1094
        %v1980 = vunpack.c.l.b16 %v1095
        %v1981 = vunpack.c.h.b16 %v1095
        %v1982 = vunpack.c.l.b16 %v1096
        %v1983 = vunpack.c.h.b16 %v1096
        %v1984 = vunpack.c.l.b16 %v1097
        %v1985 = vunpack.c.h.b16 %v1097
        %v1986 = vunpack.c.l.b16 %v1098
        %v1987 = vunpack.c.h.b16 %v1098
        %v1988 = vunpack.c.l.b16 %v1099
        %v1989 = vunpack.c.h.b16 %v1099
        %v1990 = vunpack.c.l.b16 %v1100
        %v1991 = vunpack.c.h.b16 %v1100
        %v1992 = vunpack.c.l.b16 %v1101
        %v1993 = vunpack.c.h.b16 %v1101
        %v1994 = vunpack.c.l.b16 %v1102
        %v1995 = vunpack.c.h.b16 %v1102
        %v1996 = vunpack.c.l.b16 %v1103
        %v1997 = vunpack.c.h.b16 %v1103
        %v1998 = vunpack.c.l.b16 %v1104
        %v1999 = vunpack.c.h.b16 %v1104
        %v2000 = vunpack.c.l.b16 %v1105
        %v2001 = vunpack.c.h.b16 %v1105
        %v2002 = vunpack.c.l.b16 %v1106
        %v2003 = vunpack.c.h.b16 %v1106
        %v2004 = vunpack.c.l.b16 %v1107
        %v2005 = vunpack.c.h.b16 %v1107
        %v2006 = vunpack.c.l.b16 %v1108
        %v2007 = vunpack.c.h.b16 %v1108
        %v2008 = vunpack.c.l.b16 %v1109
        %v2009 = vunpack.c.h.b16 %v1109
        %v2010 = vunpack.c.l.b16 %v1110
        %v2011 = vunpack.c.h.b16 %v1110
        %v2012 = vunpack.c.l.b16 %v1111
        %v2013 = vunpack.c.h.b16 %v1111
        %v2014 = vunpack.c.l.b16 %v1112
        %v2015 = vunpack.c.h.b16 %v1112
        %v2016 = vunpack.c.l.b16 %v1113
        %v2017 = vunpack.c.h.b16 %v1113
        %v2018 = vunpack.c.l.b16 %v1114
        %v2019 = vunpack.c.h.b16 %v1114
        %v2020 = vunpack.c.l.b16 %v1115
        %v2021 = vunpack.c.h.b16 %v1115
        %v2022 = vunpack.c.l.b16 %v1116
        %v2023 = vunpack.c.h.b16 %v1116
        %v2024 = vunpack.c.l.b16 %v1117
        %v2025 = vunpack.c.h.b16 %v1117
        %v2026 = vunpack.c.l.b16 %v1118
        %v2027 = vunpack.c.h.b16 %v1118
        %v2028 = vunpack.c.l.b16 %v1119
        %v2029 = vunpack.c.h.b16 %v1119
        %v2030 = vunpack.c.l.b16 %v1120
        %v2031 = vunpack.c.h.b16 %v1120
        %v2032 = vunpack.c.l.b16 %v1121
        %v2033 = vunpack.c.h.b16 %v1121
        %v2034 = vunpack.c.l.b16 %v1122
        %v2035 = vunpack.c.h.b16 %v1122
        %v2036 = vunpack.c.l.b16 %v1123
        %v2037 = vunpack.c.h.b16 %v1123
        %v2038 = vunpack.c.l.b16 %v1124
        %v2039 = vunpack.c.h.b16 %v1124
        %v2040 = vunpack.c.l.b16 %v1125
        %v2041 = vunpack.c.h.b16 %v1125
        %v2042 = vunpack.c.l.b16 %v1126
        %v2043 = vunpack.c.h.b16 %v1126
        %v2044 = vunpack.c.l.b16 %v1127
        %v2045 = vunpack.c.h.b16 %v1127
        %v2046 = vunpack.c.l.b16 %v1128
        %v2047 = vunpack.c.h.b16 %v1128
        %v2048 = vunpack.c.l.b16 %v1129
        %v2049 = vunpack.c.h.b16 %v1129
        %v2050 = vunpack.c.l.b16 %v1130
        %v2051 = vunpack.c.h.b16 %v1130
        %v2052 = vunpack.c.l.b16 %v1131
        %v2053 = vunpack.c.h.b16 %v1131
        %v2054 = vunpack.c.l.b16 %v1132
        %v2055 = vunpack.c.h.b16 %v1132
        %v2056 = vunpack.c.l.b16 %v1133
        %v2057 = vunpack.c.h.b16 %v1133
        %v2058 = vunpack.c.l.b16 %v1134
        %v2059 = vunpack.c.h.b16 %v1134
        %v2060 = vunpack.c.l.b16 %v1135
        %v2061 = vunpack.c.h.b16 %v1135
        %v2062 = vunpack.c.l.b16 %v1136
        %v2063 = vunpack.c.h.b16 %v1136
        %v2064 = vunpack.c.l.b16 %v1137
        %v2065 = vunpack.c.h.b16 %v1137
        %v2066 = vunpack.c.l.b16 %v1138
        %v2067 = vunpack.c.h.b16 %v1138
        %v2068 = vunpack.c.l.b16 %v1139
        %v2069 = vunpack.c.h.b16 %v1139
        %v2070 = vunpack.c.l.b16 %v1140
        %v2071 = vunpack.c.h.b16 %v1140
        %v2072 = vunpack.c.l.b16 %v1141
        %v2073 = vunpack.c.h.b16 %v1141
        %v2074 = vunpack.c.l.b16 %v1142
        %v2075 = vunpack.c.h.b16 %v1142
        %v2076 = vunpack.c.l.b16 %v1143
        %v2077 = vunpack.c.h.b16 %v1143
        %v2078 = vunpack.c.l.b16 %v1144
        %v2079 = vunpack.c.h.b16 %v1144
        %v2080 = vunpack.c.l.b16 %v1145
        %v2081 = vunpack.c.h.b16 %v1145
        %v2082 = vunpack.c.l.b16 %v1146
        %v2083 = vunpack.c.h.b16 %v1146
        %v2084 = vunpack.c.l.b16 %v1147
        %v2085 = vunpack.c.h.b16 %v1147
        %v2086 = vunpack.c.l.b16 %v1148
        %v2087 = vunpack.c.h.b16 %v1148
        %v2088 = vunpack.c.l.b16 %v1149
        %v2089 = vunpack.c.h.b16 %v1149
        %v2090 = vunpack.c.l.b16 %v1150
        %v2091 = vunpack.c.h.b16 %v1150
        %v2092 = vunpack.c.l.b16 %v1151
        %v2093 = vunpack.c.h.b16 %v1151
        %v2094 = vunpack.c.l.b16 %v1152
        %v2095 = vunpack.c.h.b16 %v1152
        %v2096 = vunpack.c.l.b16 %v1153
        %v2097 = vunpack.c.h.b16 %v1153
        %v2098 = vunpack.c.l.b16 %v1154
        %v2099 = vunpack.c.h.b16 %v1154
        %v2100 = vunpack.c.l.b16 %v1155
        %v2101 = vunpack.c.h.b16 %v1155
        %v2102 = vunpack.c.l.b16 %v1156
        %v2103 = vunpack.c.h.b16 %v1156
        %v2104 = vunpack.c.l.b16 %v1157
        %v2105 = vunpack.c.h.b16 %v1157
        %v2106 = vunpack.c.l.b16 %v1158
        %v2107 = vunpack.c.h.b16 %v1158
        %v2108 = vunpack.c.l.b16 %v1159
        %v2109 = vunpack.c.h.b16 %v1159
        %v2110 = vunpack.c.l.b16 %v1160
        %v2111 = vunpack.c.h.b16 %v1160
        %v2112 = vunpack.c.l.b16 %v1161
        %v2113 = vunpack.c.h.b16 %v1161
        %v2114 = vunpack.c.l.b16 %v1162
        %v2115 = vunpack.c.h.b16 %v1162
        %v2116 = vunpack.c.l.b16 %v1163
        %v2117 = vunpack.c.h.b16 %v1163
        %v2118 = vunpack.c.l.b16 %v1164
        %v2119 = vunpack.c.h.b16 %v1164
        %v2120 = vunpack.c.l.b16 %v1165
        %v2121 = vunpack.c.h.b16 %v1165
        %v2122 = vunpack.c.l.b16 %v1166
        %v2123 = vunpack.c.h.b16 %v1166
        %v2124 = vunpack.c.l.b16 %v1167
        %v2125 = vunpack.c.h.b16 %v1167
        %v2126 = vunpack.c.l.b16 %v1168
        %v2127 = vunpack.c.h.b16 %v1168
        %v2128 = vunpack.c.l.b16 %v1169
        %v2129 = vunpack.c.h.b16 %v1169
        %v2130 = vunpack.c.l.b16 %v1170
        %v2131 = vunpack.c.h.b16 %v1170
        %v2132 = vunpack.c.l.b16 %v1171
        %v2133 = vunpack.c.h.b16 %v1171
        %v2134 = vunpack.c.l.b16 %v1172
        %v2135 = vunpack.c.h.b16 %v1172
        %v2136 = vunpack.c.l.b16 %v1173
        %v2137 = vunpack.c.h.b16 %v1173
        %v2138 = vunpack.c.l.b16 %v1174
        %v2139 = vunpack.c.h.b16 %v1174
        %v2140 = vunpack.c.l.b16 %v1175
        %v2141 = vunpack.c.h.b16 %v1175
        %v2142 = vunpack.c.l.b16 %v1176
        %v2143 = vunpack.c.h.b16 %v1176
        %v2144 = vunpack.c.l.b16 %v1177
        %v2145 = vunpack.c.h.b16 %v1177
        %v2146 = vunpack.c.l.b16 %v1178
        %v2147 = vunpack.c.h.b16 %v1178
        %v2148 = vunpack.c.l.b16 %v1179
        %v2149 = vunpack.c.h.b16 %v1179
        %v2150 = vunpack.c.l.b16 %v1180
        %v2151 = vunpack.c.h.b16 %v1180
        %v2152 = vunpack.c.l.b16 %v1181
        %v2153 = vunpack.c.h.b16 %v1181
        %v2154 = vunpack.c.l.b16 %v1182
        %v2155 = vunpack.c.h.b16 %v1182
        %v2156 = vunpack.c.l.b16 %v1183
        %v2157 = vunpack.c.h.b16 %v1183
        %v2158 = vunpack.c.l.b16 %v1184
        %v2159 = vunpack.c.h.b16 %v1184
        %v2160 = vunpack.c.l.b16 %v1185
        %v2161 = vunpack.c.h.b16 %v1185
        %v2162 = vunpack.c.l.b16 %v1186
        %v2163 = vunpack.c.h.b16 %v1186
        %v2164 = vunpack.c.l.b16 %v1187
        %v2165 = vunpack.c.h.b16 %v1187
        %v2166 = vunpack.c.l.b16 %v1188
        %v2167 = vunpack.c.h.b16 %v1188
        %v2168 = vunpack.c.l.b16 %v1189
        %v2169 = vunpack.c.h.b16 %v1189
        %v2170 = vunpack.c.l.b16 %v1190
        %v2171 = vunpack.c.h.b16 %v1190
        %v2172 = vunpack.c.l.b16 %v1191
        %v2173 = vunpack.c.h.b16 %v1191
        %v2174 = vunpack.c.l.b16 %v1192
        %v2175 = vunpack.c.h.b16 %v1192
        %v2176 = vunpack.c.l.b16 %v1193
        %v2177 = vunpack.c.h.b16 %v1193
        %v2178 = vunpack.c.l.b16 %v1194
        %v2179 = vunpack.c.h.b16 %v1194
        %v2180 = vunpack.c.l.b16 %v1195
        %v2181 = vunpack.c.h.b16 %v1195
        %v2182 = vunpack.c.l.b16 %v1196
        %v2183 = vunpack.c.h.b16 %v1196
        %v2184 = vunpack.c.l.b16 %v1197
        %v2185 = vunpack.c.h.b16 %v1197
        %v2186 = vunpack.c.l.b16 %v1198
        %v2187 = vunpack.c.h.b16 %v1198
        %v2188 = vunpack.c.l.b16 %v1199
        %v2189 = vunpack.c.h.b16 %v1199
        %v2190 = vunpack.c.l.b16 %v1200
        %v2191 = vunpack.c.h.b16 %v1200
        %v2192 = vunpack.c.l.b16 %v1201
        %v2193 = vunpack.c.h.b16 %v1201
        %v2194 = vunpack.c.l.b16 %v1202
        %v2195 = vunpack.c.h.b16 %v1202
        %v2196 = vunpack.c.l.b16 %v1203
        %v2197 = vunpack.c.h.b16 %v1203
        %v2198 = vunpack.c.l.b16 %v1204
        %v2199 = vunpack.c.h.b16 %v1204
        %v2200 = vunpack.c.l.b16 %v1205
        %v2201 = vunpack.c.h.b16 %v1205
        %v2202 = vunpack.c.l.b16 %v1206
        %v2203 = vunpack.c.h.b16 %v1206
        %v2204 = vunpack.c.l.b16 %v1207
        %v2205 = vunpack.c.h.b16 %v1207
        %v2206 = vunpack.c.l.b16 %v1208
        %v2207 = vunpack.c.h.b16 %v1208
        %v2208 = vunpack.c.l.b16 %v1209
        %v2209 = vunpack.c.h.b16 %v1209
        %v2210 = vunpack.c.l.b16 %v1210
        %v2211 = vunpack.c.h.b16 %v1210
        %v2212 = vunpack.c.l.b16 %v1211
        %v2213 = vunpack.c.h.b16 %v1211
        %v2214 = vunpack.c.l.b16 %v1212
        %v2215 = vunpack.c.h.b16 %v1212
        %v2216 = vunpack.c.l.b16 %v1213
        %v2217 = vunpack.c.h.b16 %v1213
        %v2218 = vunpack.c.l.b16 %v1214
        %v2219 = vunpack.c.h.b16 %v1214
        %v2220 = vunpack.c.l.b16 %v1215
        %v2221 = vunpack.c.h.b16 %v1215
        %v2222 = vunpack.c.l.b16 %v1216
        %v2223 = vunpack.c.h.b16 %v1216
        %v2224 = vunpack.c.l.b16 %v1217
        %v2225 = vunpack.c.h.b16 %v1217
        %v2226 = vunpack.c.l.b16 %v1218
        %v2227 = vunpack.c.h.b16 %v1218
        %v2228 = vunpack.c.l.b16 %v1219
        %v2229 = vunpack.c.h.b16 %v1219
        %v2230 = vunpack.c.l.b16 %v1220
        %v2231 = vunpack.c.h.b16 %v1220
        %v2232 = vunpack.c.l.b16 %v1221
        %v2233 = vunpack.c.h.b16 %v1221
        %v2234 = vunpack.c.l.b16 %v1222
        %v2235 = vunpack.c.h.b16 %v1222
        %v2236 = vunpack.c.l.b16 %v1223
        %v2237 = vunpack.c.h.b16 %v1223
        %v2238 = vunpack.c.l.b16 %v1224
        %v2239 = vunpack.c.h.b16 %v1224
        %v2240 = vunpack.c.l.b16 %v1225
        %v2241 = vunpack.c.h.b16 %v1225
        %v2242 = vunpack.c.l.b16 %v1226
        %v2243 = vunpack.c.h.b16 %v1226
        %v2244 = vunpack.c.l.b16 %v1227
        %v2245 = vunpack.c.h.b16 %v1227
        %v2246 = vunpack.c.l.b16 %v1228
        %v2247 = vunpack.c.h.b16 %v1228
        %v2248 = vunpack.c.l.b16 %v1229
        %v2249 = vunpack.c.h.b16 %v1229
        %v2250 = vunpack.c.l.b16 %v1230
        %v2251 = vunpack.c.h.b16 %v1230
        %v2252 = vunpack.c.l.b16 %v1231
        %v2253 = vunpack.c.h.b16 %v1231
        %v2254 = vunpack.c.l.b16 %v1232
        %v2255 = vunpack.c.h.b16 %v1232
        %v2256 = vunpack.c.l.b16 %v1233
        %v2257 = vunpack.c.h.b16 %v1233
        %v2258 = vunpack.c.l.b16 %v1234
        %v2259 = vunpack.c.h.b16 %v1234
        %v2260 = vunpack.c.l.b16 %v1235
        %v2261 = vunpack.c.h.b16 %v1235
        %v2262 = vunpack.c.l.b16 %v1236
        %v2263 = vunpack.c.h.b16 %v1236
        %v2264 = vunpack.c.l.b16 %v1237
        %v2265 = vunpack.c.h.b16 %v1237
        %v2266 = vunpack.c.l.b16 %v1238
        %v2267 = vunpack.c.h.b16 %v1238
        %v2268 = vunpack.c.l.b16 %v1239
        %v2269 = vunpack.c.h.b16 %v1239
        %v2270 = vunpack.c.l.b16 %v1240
        %v2271 = vunpack.c.h.b16 %v1240
        %v2272 = vunpack.c.l.b16 %v1241
        %v2273 = vunpack.c.h.b16 %v1241
        %v2274 = vunpack.c.l.b16 %v1242
        %v2275 = vunpack.c.h.b16 %v1242
        %v2276 = vunpack.c.l.b16 %v1243
        %v2277 = vunpack.c.h.b16 %v1243
        %v2278 = vunpack.c.l.b16 %v1244
        %v2279 = vunpack.c.h.b16 %v1244
        %v2280 = vunpack.c.l.b16 %v1245
        %v2281 = vunpack.c.h.b16 %v1245
        %v2282 = vunpack.c.l.b16 %v1246
        %v2283 = vunpack.c.h.b16 %v1246
        %v2284 = vunpack.c.l.b16 %v1247
        %v2285 = vunpack.c.h.b16 %v1247
        %v2286 = vunpack.c.l.b16 %v1248
        %v2287 = vunpack.c.h.b16 %v1248
        %v2288 = vunpack.c.l.b16 %v1249
        %v2289 = vunpack.c.h.b16 %v1249
        %v2290 = vunpack.c.l.b16 %v1250
        %v2291 = vunpack.c.h.b16 %v1250
        %v2292 = vunpack.c.l.b16 %v1251
        %v2293 = vunpack.c.h.b16 %v1251
        %v2294 = vunpack.c.l.b16 %v1252
        %v2295 = vunpack.c.h.b16 %v1252
        %v2296 = vunpack.c.l.b16 %v1253
        %v2297 = vunpack.c.h.b16 %v1253
        %v2298 = vunpack.c.l.b16 %v1254
        %v2299 = vunpack.c.h.b16 %v1254
        %v2300 = vunpack.c.l.b16 %v1255
        %v2301 = vunpack.c.h.b16 %v1255
        %v2302 = vunpack.c.l.b16 %v1256
        %v2303 = vunpack.c.h.b16 %v1256
        %v2304 = vunpack.c.l.b16 %v1257
        %v2305 = vunpack.c.h.b16 %v1257
        %v2306 = vunpack.c.l.b16 %v1258
        %v2307 = vunpack.c.h.b16 %v1258
        %v2308 = vunpack.c.l.b16 %v1259
        %v2309 = vunpack.c.h.b16 %v1259
        %v2310 = vunpack.c.l.b16 %v1260
        %v2311 = vunpack.c.h.b16 %v1260
        %v2312 = vunpack.c.l.b16 %v1261
        %v2313 = vunpack.c.h.b16 %v1261
        %v2314 = vunpack.c.l.b16 %v1262
        %v2315 = vunpack.c.h.b16 %v1262
        %v2316 = vunpack.c.l.b16 %v1263
        %v2317 = vunpack.c.h.b16 %v1263
        %v2318 = vunpack.c.l.b16 %v1264
        %v2319 = vunpack.c.h.b16 %v1264
        %v2320 = vunpack.c.l.b16 %v1265
        %v2321 = vunpack.c.h.b16 %v1265
        %v2322 = vunpack.c.l.b16 %v1266
        %v2323 = vunpack.c.h.b16 %v1266
        %v2324 = vunpack.c.l.b16 %v1267
        %v2325 = vunpack.c.h.b16 %v1267
        %v2326 = vunpack.c.l.b16 %v1268
        %v2327 = vunpack.c.h.b16 %v1268
        %v2328 = vunpack.c.l.b16 %v1269
        %v2329 = vunpack.c.h.b16 %v1269
        %v2330 = vunpack.c.l.b16 %v1270
        %v2331 = vunpack.c.h.b16 %v1270
        %v2332 = vunpack.c.l.b16 %v1271
        %v2333 = vunpack.c.h.b16 %v1271
        %v2334 = vunpack.c.l.b16 %v1272
        %v2335 = vunpack.c.h.b16 %v1272
        %v2336 = vunpack.c.l.b16 %v1273
        %v2337 = vunpack.c.h.b16 %v1273
        %v2338 = vunpack.c.l.b16 %v1274
        %v2339 = vunpack.c.h.b16 %v1274
        %v2340 = vunpack.c.l.b16 %v1275
        %v2341 = vunpack.c.h.b16 %v1275
        %v2342 = vunpack.c.l.b16 %v1276
        %v2343 = vunpack.c.h.b16 %v1276
        %v2344 = vunpack.c.l.b16 %v1277
        %v2345 = vunpack.c.h.b16 %v1277
        %v2346 = vunpack.c.l.b16 %v1278
        %v2347 = vunpack.c.h.b16 %v1278
        %v2348 = vunpack.c.l.b16 %v1279
        %v2349 = vunpack.c.h.b16 %v1279
        %v2350 = vunpack.c.l.b16 %v1280
        %v2351 = vunpack.c.h.b16 %v1280
        %v2352 = vunpack.c.l.b16 %v1281
        %v2353 = vunpack.c.h.b16 %v1281
        %v2354 = vunpack.c.l.b16 %v1282
        %v2355 = vunpack.c.h.b16 %v1282
        %v2356 = vunpack.c.l.b16 %v1283
        %v2357 = vunpack.c.h.b16 %v1283
        %v2358 = vunpack.c.l.b16 %v1284
        %v2359 = vunpack.c.h.b16 %v1284
        %v2360 = vunpack.c.l.b16 %v1285
        %v2361 = vunpack.c.h.b16 %v1285
        %v2362 = vunpack.c.l.b16 %v1286
        %v2363 = vunpack.c.h.b16 %v1286
        %v2364 = vunpack.c.l.b16 %v1287
        %v2365 = vunpack.c.h.b16 %v1287
        %v2366 = vunpack.c.l.b16 %v1288
        %v2367 = vunpack.c.h.b16 %v1288
        %v2368 = vunpack.c.l.b16 %v1289
        %v2369 = vunpack.c.h.b16 %v1289
        %v2370 = vunpack.c.l.b16 %v1290
        %v2371 = vunpack.c.h.b16 %v1290
        %v2372 = vunpack.c.l.b16 %v1291
        %v2373 = vunpack.c.h.b16 %v1291
        %v2374 = vunpack.c.l.b16 %v1292
        %v2375 = vunpack.c.h.b16 %v1292
        %v2376 = vunpack.c.l.b16 %v1293
        %v2377 = vunpack.c.h.b16 %v1293
        %v2378 = vunpack.c.l.b16 %v1294
        %v2379 = vunpack.c.h.b16 %v1294
        %v2380 = vunpack.c.l.b16 %v1295
        %v2381 = vunpack.c.h.b16 %v1295
        %v2382 = vunpack.c.l.b16 %v1296
        %v2383 = vunpack.c.h.b16 %v1296
        %v2384 = vunpack.c.l.b16 %v1297
        %v2385 = vunpack.c.h.b16 %v1297
        %v2386 = vunpack.c.l.b16 %v1298
        %v2387 = vunpack.c.h.b16 %v1298
        %v2388 = vunpack.c.l.b16 %v1299
        %v2389 = vunpack.c.h.b16 %v1299
        %v2390 = vunpack.c.l.b16 %v1300
        %v2391 = vunpack.c.h.b16 %v1300
        %v2392 = vunpack.c.l.b16 %v1301
        %v2393 = vunpack.c.h.b16 %v1301
        %v2394 = vunpack.c.l.b16 %v1302
        %v2395 = vunpack.c.h.b16 %v1302
        %v2396 = vunpack.c.l.b16 %v1303
        %v2397 = vunpack.c.h.b16 %v1303
        %v2398 = vunpack.c.l.b16 %v1304
        %v2399 = vunpack.c.h.b16 %v1304
        %v2400 = vunpack.c.l.b16 %v1305
        %v2401 = vunpack.c.h.b16 %v1305
        %v2402 = vunpack.c.l.b16 %v1306
        %v2403 = vunpack.c.h.b16 %v1306
        %v2404 = vunpack.c.l.b16 %v1307
        %v2405 = vunpack.c.h.b16 %v1307
        %v2406 = vunpack.c.l.b16 %v1308
        %v2407 = vunpack.c.h.b16 %v1308
        %v2408 = vunpack.c.l.b16 %v1309
        %v2409 = vunpack.c.h.b16 %v1309
        %v2410 = vunpack.c.l.b16 %v1310
        %v2411 = vunpack.c.h.b16 %v1310
        %v2412 = vunpack.c.l.b16 %v1311
        %v2413 = vunpack.c.h.b16 %v1311
        %v2414 = vunpack.c.l.b16 %v1312
        %v2415 = vunpack.c.h.b16 %v1312
        %v2416 = vunpack.c.l.b16 %v1313
        %v2417 = vunpack.c.h.b16 %v1313
        %v2418 = vunpack.c.l.b16 %v1314
        %v2419 = vunpack.c.h.b16 %v1314
        %v2420 = vunpack.c.l.b16 %v1315
        %v2421 = vunpack.c.h.b16 %v1315
        %v2422 = vunpack.c.l.b16 %v1316
        %v2423 = vunpack.c.h.b16 %v1316
        %v2424 = vunpack.c.l.b16 %v1317
        %v2425 = vunpack.c.h.b16 %v1317
        %v2426 = vunpack.c.l.b16 %v1318
        %v2427 = vunpack.c.h.b16 %v1318
        %v2428 = vunpack.c.l.b16 %v1319
        %v2429 = vunpack.c.h.b16 %v1319
        %v2430 = vunpack.c.l.b16 %v1320
        %v2431 = vunpack.c.h.b16 %v1320
        %v2432 = vunpack.c.l.b16 %v1321
        %v2433 = vunpack.c.h.b16 %v1321
        %v2434 = vunpack.c.l.b16 %v1322
        %v2435 = vunpack.c.h.b16 %v1322
        %v2436 = vunpack.c.l.b16 %v1323
        %v2437 = vunpack.c.h.b16 %v1323
        %v2438 = vunpack.c.l.b16 %v1324
        %v2439 = vunpack.c.h.b16 %v1324
        %v2440 = vunpack.c.l.b16 %v1325
        %v2441 = vunpack.c.h.b16 %v1325
        %v2442 = vunpack.c.l.b16 %v1326
        %v2443 = vunpack.c.h.b16 %v1326
        %v2444 = vunpack.c.l.b16 %v1327
        %v2445 = vunpack.c.h.b16 %v1327
        %v2446 = vunpack.c.l.b16 %v1328
        %v2447 = vunpack.c.h.b16 %v1328
        %v2448 = vunpack.c.l.b16 %v1329
        %v2449 = vunpack.c.h.b16 %v1329
        %v2450 = vunpack.c.l.b16 %v1330
        %v2451 = vunpack.c.h.b16 %v1330
        %v2452 = vunpack.c.l.b16 %v1331
        %v2453 = vunpack.c.h.b16 %v1331
        %v2454 = vunpack.c.l.b16 %v1332
        %v2455 = vunpack.c.h.b16 %v1332
        %v2456 = vunpack.c.l.b16 %v1333
        %v2457 = vunpack.c.h.b16 %v1333
        %v2458 = vunpack.c.l.b16 %v1334
        %v2459 = vunpack.c.h.b16 %v1334
        %v2460 = vunpack.c.l.b16 %v1335
        %v2461 = vunpack.c.h.b16 %v1335
        %v2462 = vunpack.c.l.b16 %v1336
        %v2463 = vunpack.c.h.b16 %v1336
        %v2464 = vunpack.c.l.b16 %v1337
        %v2465 = vunpack.c.h.b16 %v1337
        %v2466 = vunpack.c.l.b16 %v1338
        %v2467 = vunpack.c.h.b16 %v1338
        %v2468 = vunpack.c.l.b16 %v1339
        %v2469 = vunpack.c.h.b16 %v1339
        %v2470 = vunpack.c.l.b16 %v1340
        %v2471 = vunpack.c.h.b16 %v1340
        %v2472 = vunpack.c.l.b16 %v1341
        %v2473 = vunpack.c.h.b16 %v1341
        %v2474 = vunpack.c.l.b16 %v1342
        %v2475 = vunpack.c.h.b16 %v1342
        %v2476 = vunpack.c.l.b16 %v1343
        %v2477 = vunpack.c.h.b16 %v1343
        %v2478 = vunpack.c.l.b16 %v1344
        %v2479 = vunpack.c.h.b16 %v1344
        %v2480 = vunpack.c.l.b16 %v1345
        %v2481 = vunpack.c.h.b16 %v1345
        %v2482 = vunpack.c.l.b16 %v1346
        %v2483 = vunpack.c.h.b16 %v1346
        %v2484 = vunpack.c.l.b16 %v1347
        %v2485 = vunpack.c.h.b16 %v1347
        %v2486 = vunpack.c.l.b16 %v1348
        %v2487 = vunpack.c.h.b16 %v1348
        %v2488 = vunpack.c.l.b16 %v1349
        %v2489 = vunpack.c.h.b16 %v1349
        %v2490 = vunpack.c.l.b16 %v1350
        %v2491 = vunpack.c.h.b16 %v1350
        %v2492 = vunpack.c.l.b16 %v1351
        %v2493 = vunpack.c.h.b16 %v1351
        %v2494 = vunpack.c.l.b16 %v1352
        %v2495 = vunpack.c.h.b16 %v1352
        %v2496 = vunpack.c.l.b16 %v1353
        %v2497 = vunpack.c.h.b16 %v1353
        %v2498 = vunpack.c.l.b16 %v1354
        %v2499 = vunpack.c.h.b16 %v1354
        %v2500 = vunpack.c.l.b16 %v1355
        %v2501 = vunpack.c.h.b16 %v1355
        %v2502 = vunpack.c.l.b16 %v1356
        %v2503 = vunpack.c.h.b16 %v1356
        %v2504 = vunpack.c.l.b16 %v1357
        %v2505 = vunpack.c.h.b16 %v1357
        %v2506 = vunpack.c.l.b16 %v1358
        %v2507 = vunpack.c.h.b16 %v1358
        %v2508 = vunpack.c.l.b16 %v1359
        %v2509 = vunpack.c.h.b16 %v1359
        %v2510 = vunpack.c.l.b16 %v1360
        %v2511 = vunpack.c.h.b16 %v1360
        %v2512 = vunpack.c.l.b16 %v1361
        %v2513 = vunpack.c.h.b16 %v1361
        %v2514 = vunpack.c.l.b16 %v1362
        %v2515 = vunpack.c.h.b16 %v1362
        %v2516 = vunpack.c.l.b16 %v1363
        %v2517 = vunpack.c.h.b16 %v1363
        %v2518 = vunpack.c.l.b16 %v1364
        %v2519 = vunpack.c.h.b16 %v1364
        %v2520 = vunpack.c.l.b16 %v1365
        %v2521 = vunpack.c.h.b16 %v1365
        %v2522 = vunpack.c.l.b16 %v1366
        %v2523 = vunpack.c.h.b16 %v1366
        %v2524 = vunpack.c.l.b16 %v1367
        %v2525 = vunpack.c.h.b16 %v1367
        %v2526 = vunpack.c.l.b16 %v1368
        %v2527 = vunpack.c.h.b16 %v1368
        %v2528 = vunpack.c.l.b16 %v1369
        %v2529 = vunpack.c.h.b16 %v1369
        %v2530 = vunpack.c.l.b16 %v1370
        %v2531 = vunpack.c.h.b16 %v1370
        %v2532 = vunpack.c.l.b16 %v1371
        %v2533 = vunpack.c.h.b16 %v1371
        %v2534 = vunpack.c.l.b16 %v1372
        %v2535 = vunpack.c.h.b16 %v1372
        %v2536 = vpack.c.b16 %v1784, %v1768
        %v2537 = vpack.c.b16 %v1785, %v1769
        %v2538 = vpack.c.b16 %v1786, %v1770
        %v2539 = vpack.c.b16 %v1787, %v1771
        %v2540 = vpack.c.b16 %v1788, %v1772
        %v2541 = vpack.c.b16 %v1789, %v1773
        %v2542 = vpack.c.b16 %v1790, %v1774
        %v2543 = vpack.c.b16 %v1791, %v1775
        %v2544 = vpack.c.b16 %v1792, %v1776
        %v2545 = vpack.c.b16 %v1793, %v1777
        %v2546 = vpack.c.b16 %v1794, %v1778
        %v2547 = vpack.c.b16 %v1795, %v1779
        %v2548 = vpack.c.b16 %v1796, %v1780
        %v2549 = vpack.c.b16 %v1797, %v1781
        %v2550 = vpack.c.b16 %v1798, %v1782
        %v2551 = vpack.c.b16 %v1799, %v1783
        %v2552 = vpack.c.b16 %v1816, %v1800
        %v2553 = vpack.c.b16 %v1817, %v1801
        %v2554 = vpack.c.b16 %v1818, %v1802
        %v2555 = vpack.c.b16 %v1819, %v1803
        %v2556 = vpack.c.b16 %v1820, %v1804
        %v2557 = vpack.c.b16 %v1821, %v1805
        %v2558 = vpack.c.b16 %v1822, %v1806
        %v2559 = vpack.c.b16 %v1823, %v1807
        %v2560 = vpack.c.b16 %v1824, %v1808
        %v2561 = vpack.c.b16 %v1825, %v1809
        %v2562 = vpack.c.b16 %v1826, %v1810
        %v2563 = vpack.c.b16 %v1827, %v1811
        %v2564 = vpack.c.b16 %v1828, %v1812
        %v2565 = vpack.c.b16 %v1829, %v1813
        %v2566 = vpack.c.b16 %v1830, %v1814
        %v2567 = vpack.c.b16 %v1831, %v1815
        %v2568 = vpack.c.b16 %v1848, %v1832
        %v2569 = vpack.c.b16 %v1849, %v1833
        %v2570 = vpack.c.b16 %v1850, %v1834
        %v2571 = vpack.c.b16 %v1851, %v1835
        %v2572 = vpack.c.b16 %v1852, %v1836
        %v2573 = vpack.c.b16 %v1853, %v1837
        %v2574 = vpack.c.b16 %v1854, %v1838
        %v2575 = vpack.c.b16 %v1855, %v1839
        %v2576 = vpack.c.b16 %v1856, %v1840
        %v2577 = vpack.c.b16 %v1857, %v1841
        %v2578 = vpack.c.b16 %v1858, %v1842
        %v2579 = vpack.c.b16 %v1859, %v1843
        %v2580 = vpack.c.b16 %v1860, %v1844
        %v2581 = vpack.c.b16 %v1861, %v1845
        %v2582 = vpack.c.b16 %v1862, %v1846
        %v2583 = vpack.c.b16 %v1863, %v1847
        %v2584 = vpack.c.b16 %v1880, %v1864
        %v2585 = vpack.c.b16 %v1881, %v1865
        %v2586 = vpack.c.b16 %v1882, %v1866
        %v2587 = vpack.c.b16 %v1883, %v1867
        %v2588 = vpack.c.b16 %v1884, %v1868
        %v2589 = vpack.c.b16 %v1885, %v1869
        %v2590 = vpack.c.b16 %v1886, %v1870
        %v2591 = vpack.c.b16 %v1887, %v1871
        %v2592 = vpack.c.b16 %v1888, %v1872
        %v2593 = vpack.c.b16 %v1889, %v1873
        %v2594 = vpack.c.b16 %v1890, %v1874
        %v2595 = vpack.c.b16 %v1891, %v1875
        %v2596 = vpack.c.b16 %v1892, %v1876
        %v2597 = vpack.c.b16 %v1893, %v1877
        %v2598 = vpack.c.b16 %v1894, %v1878
        %v2599 = vpack.c.b16 %v1895, %v1879
        %v2600 = vpack.c.b16 %v1912, %v1896
        %v2601 = vpack.c.b16 %v1913, %v1897
        %v2602 = vpack.c.b16 %v1914, %v1898
        %v2603 = vpack.c.b16 %v1915, %v1899
        %v2604 = vpack.c.b16 %v1916, %v1900
        %v2605 = vpack.c.b16 %v1917, %v1901
        %v2606 = vpack.c.b16 %v1918, %v1902
        %v2607 = vpack.c.b16 %v1919, %v1903
        %v2608 = vpack.c.b16 %v1920, %v1904
        %v2609 = vpack.c.b16 %v1921, %v1905
        %v2610 = vpack.c.b16 %v1922, %v1906
        %v2611 = vpack.c.b16 %v1923, %v1907
        %v2612 = vpack.c.b16 %v1924, %v1908
        %v2613 = vpack.c.b16 %v1925, %v1909
        %v2614 = vpack.c.b16 %v1926, %v1910
        %v2615 = vpack.c.b16 %v1927, %v1911
        %v2616 = vpack.c.b16 %v1944, %v1928
        %v2617 = vpack.c.b16 %v1945, %v1929
        %v2618 = vpack.c.b16 %v1946, %v1930
        %v2619 = vpack.c.b16 %v1947, %v1931
        %v2620 = vpack.c.b16 %v1948, %v1932
        %v2621 = vpack.c.b16 %v1949, %v1933
        %v2622 = vpack.c.b16 %v1950, %v1934
        %v2623 = vpack.c.b16 %v1951, %v1935
        %v2624 = vpack.c.b16 %v1952, %v1936
        %v2625 = vpack.c.b16 %v1953, %v1937
        %v2626 = vpack.c.b16 %v1954, %v1938
        %v2627 = vpack.c.b16 %v1955, %v1939
        %v2628 = vpack.c.b16 %v1956, %v1940
        %v2629 = vpack.c.b16 %v1957, %v1941
        %v2630 = vpack.c.b16 %v1958, %v1942
        %v2631 = vpack.c.b16 %v1959, %v1943
        %v2632 = vpack.c.b16 %v1976, %v1960
        %v2633 = vpack.c.b16 %v1977, %v1961
        %v2634 = vpack.c.b16 %v1978, %v1962
        %v2635 = vpack.c.b16 %v1979, %v1963
        %v2636 = vpack.c.b16 %v1980, %v1964
        %v2637 = vpack.c.b16 %v1981, %v1965
        %v2638 = vpack.c.b16 %v1982, %v1966
        %v2639 = vpack.c.b16 %v1983, %v1967
        %v2640 = vpack.c.b16 %v1984, %v1968
        %v2641 = vpack.c.b16 %v1985, %v1969
        %v2642 = vpack.c.b16 %v1986, %v1970
        %v2643 = vpack.c.b16 %v1987, %v1971
        %v2644 = vpack.c.b16 %v1988, %v1972
        %v2645 = vpack.c.b16 %v1989, %v1973
        %v2646 = vpack.c.b16 %v1990, %v1974
        %v2647 = vpack.c.b16 %v1991, %v1975
        %v2648 = vpack.c.b16 %v2008, %v1992
        %v2649 = vpack.c.b16 %v2009, %v1993
        %v2650 = vpack.c.b16 %v2010, %v1994
        %v2651 = vpack.c.b16 %v2011, %v1995
        %v2652 = vpack.c.b16 %v2012, %v1996
        %v2653 = vpack.c.b16 %v2013, %v1997
        %v2654 = vpack.c.b16 %v2014, %v1998
        %v2655 = vpack.c.b16 %v2015, %v1999
        %v2656 = vpack.c.b16 %v2016, %v2000
        %v2657 = vpack.c.b16 %v2017, %v2001
        %v2658 = vpack.c.b16 %v2018, %v2002
        %v2659 = vpack.c.b16 %v2019, %v2003
        %v2660 = vpack.c.b16 %v2020, %v2004
        %v2661 = vpack.c.b16 %v2021, %v2005
        %v2662 = vpack.c.b16 %v2022, %v2006
        %v2663 = vpack.c.b16 %v2023, %v2007
        %v2664 = vpack.c.b16 %v2040, %v2024
        %v2665 = vpack.c.b16 %v2041, %v2025
        %v2666 = vpack.c.b16 %v2042, %v2026
        %v2667 = vpack.c.b16 %v2043, %v2027
        %v2668 = vpack.c.b16 %v2044, %v2028
        %v2669 = vpack.c.b16 %v2045, %v2029
        %v2670 = vpack.c.b16 %v2046, %v2030
        %v2671 = vpack.c.b16 %v2047, %v2031
        %v2672 = vpack.c.b16 %v2048, %v2032
        %v2673 = vpack.c.b16 %v2049, %v2033
        %v2674 = vpack.c.b16 %v2050, %v2034
        %v2675 = vpack.c.b16 %v2051, %v2035
        %v2676 = vpack.c.b16 %v2052, %v2036
        %v2677 = vpack.c.b16 %v2053, %v2037
        %v2678 = vpack.c.b16 %v2054, %v2038
        %v2679 = vpack.c.b16 %v2055, %v2039
        %v2680 = vpack.c.b16 %v2072, %v2056
        %v2681 = vpack.c.b16 %v2073, %v2057
        %v2682 = vpack.c.b16 %v2074, %v2058
        %v2683 = vpack.c.b16 %v2075, %v2059
        %v2684 = vpack.c.b16 %v2076, %v2060
        %v2685 = vpack.c.b16 %v2077, %v2061
        %v2686 = vpack.c.b16 %v2078, %v2062
        %v2687 = vpack.c.b16 %v2079, %v2063
        %v2688 = vpack.c.b16 %v2080, %v2064
        %v2689 = vpack.c.b16 %v2081, %v2065
        %v2690 = vpack.c.b16 %v2082, %v2066
        %v2691 = vpack.c.b16 %v2083, %v2067
        %v2692 = vpack.c.b16 %v2084, %v2068
        %v2693 = vpack.c.b16 %v2085, %v2069
        %v2694 = vpack.c.b16 %v2086, %v2070
        %v2695 = vpack.c.b16 %v2087, %v2071
        %v2696 = vpack.c.b16 %v2104, %v2088
        %v2697 = vpack.c.b16 %v2105, %v2089
        %v2698 = vpack.c.b16 %v2106, %v2090
        %v2699 = vpack.c.b16 %v2107, %v2091
        %v2700 = vpack.c.b16 %v2108, %v2092
        %v2701 = vpack.c.b16 %v2109, %v2093
        %v2702 = vpack.c.b16 %v2110, %v2094
        %v2703 = vpack.c.b16 %v2111, %v2095
        %v2704 = vpack.c.b16 %v2112, %v2096
        %v2705 = vpack.c.b16 %v2113, %v2097
        %v2706 = vpack.c.b16 %v2114, %v2098
        %v2707 = vpack.c.b16 %v2115, %v2099
        %v2708 = vpack.c.b16 %v2116, %v2100
        %v2709 = vpack.c.b16 %v2117, %v2101
        %v2710 = vpack.c.b16 %v2118, %v2102
        %v2711 = vpack.c.b16 %v2119, %v2103
        %v2712 = vpack.c.b16 %v2136, %v2120
        %v2713 = vpack.c.b16 %v2137, %v2121
        %v2714 = vpack.c.b16 %v2138, %v2122
        %v2715 = vpack.c.b16 %v2139, %v2123
        %v2716 = vpack.c.b16 %v2140, %v2124
        %v2717 = vpack.c.b16 %v2141, %v2125
        %v2718 = vpack.c.b16 %v2142, %v2126
        %v2719 = vpack.c.b16 %v2143, %v2127
        %v2720 = vpack.c.b16 %v2144, %v2128
        %v2721 = vpack.c.b16 %v2145, %v2129
        %v2722 = vpack.c.b16 %v2146, %v2130
        %v2723 = vpack.c.b16 %v2147, %v2131
        %v2724 = vpack.c.b16 %v2148, %v2132
        %v2725 = vpack.c.b16 %v2149, %v2133
        %v2726 = vpack.c.b16 %v2150, %v2134
        %v2727 = vpack.c.b16 %v2151, %v2135
        %v2728 = vpack.c.b16 %v2168, %v2152
        %v2729 = vpack.c.b16 %v2169, %v2153
        %v2730 = vpack.c.b16 %v2170, %v2154
        %v2731 = vpack.c.b16 %v2171, %v2155
        %v2732 = vpack.c.b16 %v2172, %v2156
        %v2733 = vpack.c.b16 %v2173, %v2157
        %v2734 = vpack.c.b16 %v2174, %v2158
        %v2735 = vpack.c.b16 %v2175, %v2159
        %v2736 = vpack.c.b16 %v2176, %v2160
        %v2737 = vpack.c.b16 %v2177, %v2161
        %v2738 = vpack.c.b16 %v2178, %v2162
        %v2739 = vpack.c.b16 %v2179, %v2163
        %v2740 = vpack.c.b16 %v2180, %v2164
        %v2741 = vpack.c.b16 %v2181, %v2165
        %v2742 = vpack.c.b16 %v2182, %v2166
        %v2743 = vpack.c.b16 %v2183, %v2167
        %v2744 = vpack.c.b16 %v2200, %v2184
        %v2745 = vpack.c.b16 %v2201, %v2185
        %v2746 = vpack.c.b16 %v2202, %v2186
        %v2747 = vpack.c.b16 %v2203, %v2187
        %v2748 = vpack.c.b16 %v2204, %v2188
        %v2749 = vpack.c.b16 %v2205, %v2189
        %v2750 = vpack.c.b16 %v2206, %v2190
        %v2751 = vpack.c.b16 %v2207, %v2191
        %v2752 = vpack.c.b16 %v2208, %v2192
        %v2753 = vpack.c.b16 %v2209, %v2193
        %v2754 = vpack.c.b16 %v2210, %v2194
        %v2755 = vpack.c.b16 %v2211, %v2195
        %v2756 = vpack.c.b16 %v2212, %v2196
        %v2757 = vpack.c.b16 %v2213, %v2197
        %v2758 = vpack.c.b16 %v2214, %v2198
        %v2759 = vpack.c.b16 %v2215, %v2199
        %v2760 = vpack.c.b16 %v2232, %v2216
        %v2761 = vpack.c.b16 %v2233, %v2217
        %v2762 = vpack.c.b16 %v2234, %v2218
        %v2763 = vpack.c.b16 %v2235, %v2219
        %v2764 = vpack.c.b16 %v2236, %v2220
        %v2765 = vpack.c.b16 %v2237, %v2221
        %v2766 = vpack.c.b16 %v2238, %v2222
        %v2767 = vpack.c.b16 %v2239, %v2223
        %v2768 = vpack.c.b16 %v2240, %v2224
        %v2769 = vpack.c.b16 %v2241, %v2225
        %v2770 = vpack.c.b16 %v2242, %v2226
        %v2771 = vpack.c.b16 %v2243, %v2227
        %v2772 = vpack.c.b16 %v2244, %v2228
        %v2773 = vpack.c.b16 %v2245, %v2229
        %v2774 = vpack.c.b16 %v2246, %v2230
        %v2775 = vpack.c.b16 %v2247, %v2231
        %v2776 = vpack.c.b16 %v2264, %v2248
        %v2777 = vpack.c.b16 %v2265, %v2249
        %v2778 = vpack.c.b16 %v2266, %v2250
        %v2779 = vpack.c.b16 %v2267, %v2251
        %v2780 = vpack.c.b16 %v2268, %v2252
        %v2781 = vpack.c.b16 %v2269, %v2253
        %v2782 = vpack.c.b16 %v2270, %v2254
        %v2783 = vpack.c.b16 %v2271, %v2255
        %v2784 = vpack.c.b16 %v2272, %v2256
        %v2785 = vpack.c.b16 %v2273, %v2257
        %v2786 = vpack.c.b16 %v2274, %v2258
        %v2787 = vpack.c.b16 %v2275, %v2259
        %v2788 = vpack.c.b16 %v2276, %v2260
        %v2789 = vpack.c.b16 %v2277, %v2261
        %v2790 = vpack.c.b16 %v2278, %v2262
        %v2791 = vpack.c.b16 %v2279, %v2263
        %v2792 = vpack.c.b16 %v2296, %v2280
        %v2793 = vpack.c.b16 %v2297, %v2281
        %v2794 = vpack.c.b16 %v2298, %v2282
        %v2795 = vpack.c.b16 %v2299, %v2283
        %v2796 = vpack.c.b16 %v2300, %v2284
        %v2797 = vpack.c.b16 %v2301, %v2285
        %v2798 = vpack.c.b16 %v2302, %v2286
        %v2799 = vpack.c.b16 %v2303, %v2287
        %v2800 = vpack.c.b16 %v2304, %v2288
        %v2801 = vpack.c.b16 %v2305, %v2289
        %v2802 = vpack.c.b16 %v2306, %v2290
        %v2803 = vpack.c.b16 %v2307, %v2291
        %v2804 = vpack.c.b16 %v2308, %v2292
        %v2805 = vpack.c.b16 %v2309, %v2293
        %v2806 = vpack.c.b16 %v2310, %v2294
        %v2807 = vpack.c.b16 %v2311, %v2295
        %v2808 = vpack.c.b16 %v2328, %v2312
        %v2809 = vpack.c.b16 %v2329, %v2313
        %v2810 = vpack.c.b16 %v2330, %v2314
        %v2811 = vpack.c.b16 %v2331, %v2315
        %v2812 = vpack.c.b16 %v2332, %v2316
        %v2813 = vpack.c.b16 %v2333, %v2317
        %v2814 = vpack.c.b16 %v2334, %v2318
        %v2815 = vpack.c.b16 %v2335, %v2319
        %v2816 = vpack.c.b16 %v2336, %v2320
        %v2817 = vpack.c.b16 %v2337, %v2321
        %v2818 = vpack.c.b16 %v2338, %v2322
        %v2819 = vpack.c.b16 %v2339, %v2323
        %v2820 = vpack.c.b16 %v2340, %v2324
        %v2821 = vpack.c.b16 %v2341, %v2325
        %v2822 = vpack.c.b16 %v2342, %v2326
        %v2823 = vpack.c.b16 %v2343, %v2327
        %v2824 = vpack.c.b16 %v2360, %v2344
        %v2825 = vpack.c.b16 %v2361, %v2345
        %v2826 = vpack.c.b16 %v2362, %v2346
        %v2827 = vpack.c.b16 %v2363, %v2347
        %v2828 = vpack.c.b16 %v2364, %v2348
        %v2829 = vpack.c.b16 %v2365, %v2349
        %v2830 = vpack.c.b16 %v2366, %v2350
        %v2831 = vpack.c.b16 %v2367, %v2351
        %v2832 = vpack.c.b16 %v2368, %v2352
        %v2833 = vpack.c.b16 %v2369, %v2353
        %v2834 = vpack.c.b16 %v2370, %v2354
        %v2835 = vpack.c.b16 %v2371, %v2355
        %v2836 = vpack.c.b16 %v2372, %v2356
        %v2837 = vpack.c.b16 %v2373, %v2357
        %v2838 = vpack.c.b16 %v2374, %v2358
        %v2839 = vpack.c.b16 %v2375, %v2359
        %v2840 = vpack.c.b16 %v2392, %v2376
        %v2841 = vpack.c.b16 %v2393, %v2377
        %v2842 = vpack.c.b16 %v2394, %v2378
        %v2843 = vpack.c.b16 %v2395, %v2379
        %v2844 = vpack.c.b16 %v2396, %v2380
        %v2845 = vpack.c.b16 %v2397, %v2381
        %v2846 = vpack.c.b16 %v2398, %v2382
        %v2847 = vpack.c.b16 %v2399, %v2383
        %v2848 = vpack.c.b16 %v2400, %v2384
        %v2849 = vpack.c.b16 %v2401, %v2385
        %v2850 = vpack.c.b16 %v2402, %v2386
        %v2851 = vpack.c.b16 %v2403, %v2387
        %v2852 = vpack.c.b16 %v2404, %v2388
        %v2853 = vpack.c.b16 %v2405, %v2389
        %v2854 = vpack.c.b16 %v2406, %v2390
        %v2855 = vpack.c.b16 %v2407, %v2391
        %v2856 = vpack.c.b16 %v2424, %v2408
        %v2857 = vpack.c.b16 %v2425, %v2409
        %v2858 = vpack.c.b16 %v2426, %v2410
        %v2859 = vpack.c.b16 %v2427, %v2411
        %v2860 = vpack.c.b16 %v2428, %v2412
        %v2861 = vpack.c.b16 %v2429, %v2413
        %v2862 = vpack.c.b16 %v2430, %v2414
        %v2863 = vpack.c.b16 %v2431, %v2415
        %v2864 = vpack.c.b16 %v2432, %v2416
        %v2865 = vpack.c.b16 %v2433, %v2417
        %v2866 = vpack.c.b16 %v2434, %v2418
        %v2867 = vpack.c.b16 %v2435, %v2419
        %v2868 = vpack.c.b16 %v2436, %v2420
        %v2869 = vpack.c.b16 %v2437, %v2421
        %v2870 = vpack.c.b16 %v2438, %v2422
        %v2871 = vpack.c.b16 %v2439, %v2423
        %v2872 = vpack.c.b16 %v2456, %v2440
        %v2873 = vpack.c.b16 %v2457, %v2441
        %v2874 = vpack.c.b16 %v2458, %v2442
        %v2875 = vpack.c.b16 %v2459, %v2443
        %v2876 = vpack.c.b16 %v2460, %v2444
        %v2877 = vpack.c.b16 %v2461, %v2445
        %v2878 = vpack.c.b16 %v2462, %v2446
        %v2879 = vpack.c.b16 %v2463, %v2447
        %v2880 = vpack.c.b16 %v2464, %v2448
        %v2881 = vpack.c.b16 %v2465, %v2449
        %v2882 = vpack.c.b16 %v2466, %v2450
        %v2883 = vpack.c.b16 %v2467, %v2451
        %v2884 = vpack.c.b16 %v2468, %v2452
        %v2885 = vpack.c.b16 %v2469, %v2453
        %v2886 = vpack.c.b16 %v2470, %v2454
        %v2887 = vpack.c.b16 %v2471, %v2455
        %v2888 = vpack.c.b16 %v2488, %v2472
        %v2889 = vpack.c.b16 %v2489, %v2473
        %v2890 = vpack.c.b16 %v2490, %v2474
        %v2891 = vpack.c.b16 %v2491, %v2475
        %v2892 = vpack.c.b16 %v2492, %v2476
        %v2893 = vpack.c.b16 %v2493, %v2477
        %v2894 = vpack.c.b16 %v2494, %v2478
        %v2895 = vpack.c.b16 %v2495, %v2479
        %v2896 = vpack.c.b16 %v2496, %v2480
        %v2897 = vpack.c.b16 %v2497, %v2481
        %v2898 = vpack.c.b16 %v2498, %v2482
        %v2899 = vpack.c.b16 %v2499, %v2483
        %v2900 = vpack.c.b16 %v2500, %v2484
        %v2901 = vpack.c.b16 %v2501, %v2485
        %v2902 = vpack.c.b16 %v2502, %v2486
        %v2903 = vpack.c.b16 %v2503, %v2487
        %v2904 = vpack.c.b16 %v2520, %v2504
        %v2905 = vpack.c.b16 %v2521, %v2505
        %v2906 = vpack.c.b16 %v2522, %v2506
        %v2907 = vpack.c.b16 %v2523, %v2507
        %v2908 = vpack.c.b16 %v2524, %v2508
        %v2909 = vpack.c.b16 %v2525, %v2509
        %v2910 = vpack.c.b16 %v2526, %v2510
        %v2911 = vpack.c.b16 %v2527, %v2511
        %v2912 = vpack.c.b16 %v2528, %v2512
        %v2913 = vpack.c.b16 %v2529, %v2513
        %v2914 = vpack.c.b16 %v2530, %v2514
        %v2915 = vpack.c.b16 %v2531, %v2515
        %v2916 = vpack.c.b16 %v2532, %v2516
        %v2917 = vpack.c.b16 %v2533, %v2517
        %v2918 = vpack.c.b16 %v2534, %v2518
        %v2919 = vpack.c.b16 %v2535, %v2519
        %3304 = vmatprep.subr.bf16.mxu0 %v2537
        %3305 = vmatpush1.bf16.msra.mxu0 %v2536
        %3306 = vmatprep.subr.bf16.mxu0 %v2553
        %3307 = vmatpush1.bf16.msra.mxu0 %v2552
        %3308 = vmatprep.subr.bf16.mxu0 %v2569
        %3309 = vmatpush1.bf16.msra.mxu0 %v2568
        %3310 = vmatprep.subr.bf16.mxu0 %v2585
        %3311 = vmatpush1.bf16.msra.mxu0 %v2584
        %3312 = vmatprep.subr.bf16.mxu0 %v2601
        %3313 = vmatpush1.bf16.msra.mxu0 %v2600
        %3314 = vmatprep.subr.bf16.mxu0 %v2617
        %3315 = vmatpush1.bf16.msra.mxu0 %v2616
        %3316 = vmatprep.subr.bf16.mxu0 %v2633
        %3317 = vmatpush1.bf16.msra.mxu0 %v2632
        %3318 = vmatprep.subr.bf16.mxu0 %v2649
        %3319 = vmatpush1.bf16.msra.mxu0 %v2648
        %3320 = vmatprep.subr.bf16.mxu0 %v2665
        %3321 = vmatpush1.bf16.msra.mxu0 %v2664
        %3322 = vmatprep.subr.bf16.mxu0 %v2681
        %3323 = vmatpush1.bf16.msra.mxu0 %v2680
        %3324 = vmatprep.subr.bf16.mxu0 %v2697
        %3325 = vmatpush1.bf16.msra.mxu0 %v2696
        %3326 = vmatprep.subr.bf16.mxu0 %v2713
        %3327 = vmatpush1.bf16.msra.mxu0 %v2712
        %3328 = vmatprep.subr.bf16.mxu0 %v2729
        %3329 = vmatpush1.bf16.msra.mxu0 %v2728
        %3330 = vmatprep.subr.bf16.mxu0 %v2745
        %3331 = vmatpush1.bf16.msra.mxu0 %v2744
        %3332 = vmatprep.subr.bf16.mxu0 %v2761
        %3333 = vmatpush1.bf16.msra.mxu0 %v2760
        %3334 = vmatprep.subr.bf16.mxu0 %v2777
        %3335 = vmatpush1.bf16.msra.mxu0 %v2776
        %3336 = vmatprep.mubr.bf16.mxu0 %v1379
        %3337 = vmatmul.mubr.bf16.gmra.mrb[0].mxu0 %v1378
        %v3338 = vpop.f32.mrb[0].mxu0
        %v3339 = vadd.f32 0.0, %v3338
        %v3340 = vpop.f32.mrb[0].mxu0
        %v3341 = vadd.f32 0.0, %v3340
        %v3342 = vpop.f32.mrb[0].mxu0
        %v3343 = vpop.f32.mrb[0].mxu0
        %3344 = vdwg.mxu0
        %3345 = vmatprep.subr.bf16.mxu0 %v2793
        %3346 = vmatpush1.bf16.msra.mxu0 %v2792
        %3347 = vmatprep.subr.bf16.mxu0 %v2809
        %3348 = vmatpush1.bf16.msra.mxu0 %v2808
        %3349 = vmatprep.subr.bf16.mxu0 %v2825
        %3350 = vmatpush1.bf16.msra.mxu0 %v2824
        %3351 = vmatprep.subr.bf16.mxu0 %v2841
        %3352 = vmatpush1.bf16.msra.mxu0 %v2840
        %3353 = vmatprep.subr.bf16.mxu0 %v2857
        %3354 = vmatpush1.bf16.msra.mxu0 %v2856
        %3355 = vmatprep.subr.bf16.mxu0 %v2873
        %3356 = vmatpush1.bf16.msra.mxu0 %v2872
        %3357 = vmatprep.subr.bf16.mxu0 %v2889
        %3358 = vmatpush1.bf16.msra.mxu0 %v2888
        %3359 = vmatprep.subr.bf16.mxu0 %v2905
        %3360 = vmatpush1.bf16.msra.mxu0 %v2904
        %3361 = vmatprep.subr.bf16.mxu0 0
        %3362 = vmatpush1.bf16.msra.mxu0 0
        %3363 = vmatprep.subr.bf16.mxu0 0
        %3364 = vmatpush1.bf16.msra.mxu0 0
        %3365 = vmatprep.subr.bf16.mxu0 0
        %3366 = vmatpush1.bf16.msra.mxu0 0
        %3367 = vmatprep.subr.bf16.mxu0 0
        %3368 = vmatpush1.bf16.msra.mxu0 0
        %3369 = vmatprep.subr.bf16.mxu0 0
        %3370 = vmatpush1.bf16.msra.mxu0 0
        %3371 = vmatprep.subr.bf16.mxu0 0
        %3372 = vmatpush1.bf16.msra.mxu0 0
        %3373 = vmatprep.subr.bf16.mxu0 0
        %3374 = vmatpush1.bf16.msra.mxu0 0
        %3375 = vmatprep.subr.bf16.mxu0 0
        %3376 = vmatpush1.bf16.msra.mxu0 0
        %3377 = vmatprep.mubr.bf16.mxu0 0
        %3378 = vmatmul.mubr.bf16.gmra.mrb[0].mxu0 %v1380
        %v3379 = vpop.f32.mrb[0].mxu0
        %v3380 = vadd.f32 %v3339, %v3379
        %v3381 = vpop.f32.mrb[0].mxu0
        %v3382 = vadd.f32 %v3341, %v3381
        %v3383 = vpop.f32.mrb[0].mxu0
        %v3384 = vpop.f32.mrb[0].mxu0
        %3385 = vdwg.mxu0
        %3386 = vmatprep.subr.bf16.mxu0 %v2539
        %3387 = vmatpush1.bf16.msra.mxu0 %v2538
        %3388 = vmatprep.subr.bf16.mxu0 %v2555
        %3389 = vmatpush1.bf16.msra.mxu0 %v2554
        %3390 = vmatprep.subr.bf16.mxu0 %v2571
        %3391 = vmatpush1.bf16.msra.mxu0 %v2570
        %3392 = vmatprep.subr.bf16.mxu0 %v2587
        %3393 = vmatpush1.bf16.msra.mxu0 %v2586
        %3394 = vmatprep.subr.bf16.mxu0 %v2603
        %3395 = vmatpush1.bf16.msra.mxu0 %v2602
        %3396 = vmatprep.subr.bf16.mxu0 %v2619
        %3397 = vmatpush1.bf16.msra.mxu0 %v2618
        %3398 = vmatprep.subr.bf16.mxu0 %v2635
        %3399 = vmatpush1.bf16.msra.mxu0 %v2634
        %3400 = vmatprep.subr.bf16.mxu0 %v2651
        %3401 = vmatpush1.bf16.msra.mxu0 %v2650
        %3402 = vmatprep.subr.bf16.mxu0 %v2667
        %3403 = vmatpush1.bf16.msra.mxu0 %v2666
        %3404 = vmatprep.subr.bf16.mxu0 %v2683
        %3405 = vmatpush1.bf16.msra.mxu0 %v2682
        %3406 = vmatprep.subr.bf16.mxu0 %v2699
        %3407 = vmatpush1.bf16.msra.mxu0 %v2698
        %3408 = vmatprep.subr.bf16.mxu0 %v2715
        %3409 = vmatpush1.bf16.msra.mxu0 %v2714
        %3410 = vmatprep.subr.bf16.mxu0 %v2731
        %3411 = vmatpush1.bf16.msra.mxu0 %v2730
        %3412 = vmatprep.subr.bf16.mxu0 %v2747
        %3413 = vmatpush1.bf16.msra.mxu0 %v2746
        %3414 = vmatprep.subr.bf16.mxu0 %v2763
        %3415 = vmatpush1.bf16.msra.mxu0 %v2762
        %3416 = vmatprep.subr.bf16.mxu0 %v2779
        %3417 = vmatpush1.bf16.msra.mxu0 %v2778
        %3418 = vmatprep.mubr.bf16.mxu0 %v1379
        %3419 = vmatmul.mubr.bf16.gmra.mrb[0].mxu0 %v1378
        %v3420 = vpop.f32.mrb[0].mxu0
        %v3421 = vadd.f32 0.0, %v3420
        %v3422 = vpop.f32.mrb[0].mxu0
        %v3423 = vadd.f32 0.0, %v3422
        %v3424 = vpop.f32.mrb[0].mxu0
        %v3425 = vpop.f32.mrb[0].mxu0
        %3426 = vdwg.mxu0
        %3427 = vmatprep.subr.bf16.mxu0 %v2795
        %3428 = vmatpush1.bf16.msra.mxu0 %v2794
        %3429 = vmatprep.subr.bf16.mxu0 %v2811
        %3430 = vmatpush1.bf16.msra.mxu0 %v2810
        %3431 = vmatprep.subr.bf16.mxu0 %v2827
        %3432 = vmatpush1.bf16.msra.mxu0 %v2826
        %3433 = vmatprep.subr.bf16.mxu0 %v2843
        %3434 = vmatpush1.bf16.msra.mxu0 %v2842
        %3435 = vmatprep.subr.bf16.mxu0 %v2859
        %3436 = vmatpush1.bf16.msra.mxu0 %v2858
        %3437 = vmatprep.subr.bf16.mxu0 %v2875
        %3438 = vmatpush1.bf16.msra.mxu0 %v2874
        %3439 = vmatprep.subr.bf16.mxu0 %v2891
        %3440 = vmatpush1.bf16.msra.mxu0 %v2890
        %3441 = vmatprep.subr.bf16.mxu0 %v2907
        %3442 = vmatpush1.bf16.msra.mxu0 %v2906
        %3443 = vmatprep.subr.bf16.mxu0 0
        %3444 = vmatpush1.bf16.msra.mxu0 0
        %3445 = vmatprep.subr.bf16.mxu0 0
        %3446 = vmatpush1.bf16.msra.mxu0 0
        %3447 = vmatprep.subr.bf16.mxu0 0
        %3448 = vmatpush1.bf16.msra.mxu0 0
        %3449 = vmatprep.subr.bf16.mxu0 0
        %3450 = vmatpush1.bf16.msra.mxu0 0
        %3451 = vmatprep.subr.bf16.mxu0 0
        %3452 = vmatpush1.bf16.msra.mxu0 0
        %3453 = vmatprep.subr.bf16.mxu0 0
        %3454 = vmatpush1.bf16.msra.mxu0 0
        %3455 = vmatprep.subr.bf16.mxu0 0
        %3456 = vmatpush1.bf16.msra.mxu0 0
        %3457 = vmatprep.subr.bf16.mxu0 0
        %3458 = vmatpush1.bf16.msra.mxu0 0
        %3459 = vmatprep.mubr.bf16.mxu0 0
        %3460 = vmatmul.mubr.bf16.gmra.mrb[0].mxu0 %v1380
        %v3461 = vpop.f32.mrb[0].mxu0
        %v3462 = vadd.f32 %v3421, %v3461
        %v3463 = vpop.f32.mrb[0].mxu0
        %v3464 = vadd.f32 %v3423, %v3463
        %v3465 = vpop.f32.mrb[0].mxu0
        %v3466 = vpop.f32.mrb[0].mxu0
        %3467 = vdwg.mxu0
        %3468 = vmatprep.subr.bf16.mxu0 %v2541
        %3469 = vmatpush1.bf16.msra.mxu0 %v2540
        %3470 = vmatprep.subr.bf16.mxu0 %v2557
        %3471 = vmatpush1.bf16.msra.mxu0 %v2556
        %3472 = vmatprep.subr.bf16.mxu0 %v2573
        %3473 = vmatpush1.bf16.msra.mxu0 %v2572
        %3474 = vmatprep.subr.bf16.mxu0 %v2589
        %3475 = vmatpush1.bf16.msra.mxu0 %v2588
        %3476 = vmatprep.subr.bf16.mxu0 %v2605
        %3477 = vmatpush1.bf16.msra.mxu0 %v2604
        %3478 = vmatprep.subr.bf16.mxu0 %v2621
        %3479 = vmatpush1.bf16.msra.mxu0 %v2620
        %3480 = vmatprep.subr.bf16.mxu0 %v2637
        %3481 = vmatpush1.bf16.msra.mxu0 %v2636
        %3482 = vmatprep.subr.bf16.mxu0 %v2653
        %3483 = vmatpush1.bf16.msra.mxu0 %v2652
        %3484 = vmatprep.subr.bf16.mxu0 %v2669
        %3485 = vmatpush1.bf16.msra.mxu0 %v2668
        %3486 = vmatprep.subr.bf16.mxu0 %v2685
        %3487 = vmatpush1.bf16.msra.mxu0 %v2684
        %3488 = vmatprep.subr.bf16.mxu0 %v2701
        %3489 = vmatpush1.bf16.msra.mxu0 %v2700
        %3490 = vmatprep.subr.bf16.mxu0 %v2717
        %3491 = vmatpush1.bf16.msra.mxu0 %v2716
        %3492 = vmatprep.subr.bf16.mxu0 %v2733
        %3493 = vmatpush1.bf16.msra.mxu0 %v2732
        %3494 = vmatprep.subr.bf16.mxu0 %v2749
        %3495 = vmatpush1.bf16.msra.mxu0 %v2748
        %3496 = vmatprep.subr.bf16.mxu0 %v2765
        %3497 = vmatpush1.bf16.msra.mxu0 %v2764
        %3498 = vmatprep.subr.bf16.mxu0 %v2781
        %3499 = vmatpush1.bf16.msra.mxu0 %v2780
        %3500 = vmatprep.mubr.bf16.mxu0 %v1379
        %3501 = vmatmul.mubr.bf16.gmra.mrb[0].mxu0 %v1378
        %v3502 = vpop.f32.mrb[0].mxu0
        %v3503 = vadd.f32 0.0, %v3502
        %v3504 = vpop.f32.mrb[0].mxu0
        %v3505 = vadd.f32 0.0, %v3504
        %v3506 = vpop.f32.mrb[0].mxu0
        %v3507 = vpop.f32.mrb[0].mxu0
        %3508 = vdwg.mxu0
        %3509 = vmatprep.subr.bf16.mxu0 %v2797
        %3510 = vmatpush1.bf16.msra.mxu0 %v2796
        %3511 = vmatprep.subr.bf16.mxu0 %v2813
        %3512 = vmatpush1.bf16.msra.mxu0 %v2812
        %3513 = vmatprep.subr.bf16.mxu0 %v2829
        %3514 = vmatpush1.bf16.msra.mxu0 %v2828
        %3515 = vmatprep.subr.bf16.mxu0 %v2845
        %3516 = vmatpush1.bf16.msra.mxu0 %v2844
        %3517 = vmatprep.subr.bf16.mxu0 %v2861
        %3518 = vmatpush1.bf16.msra.mxu0 %v2860
        %3519 = vmatprep.subr.bf16.mxu0 %v2877
        %3520 = vmatpush1.bf16.msra.mxu0 %v2876
        %3521 = vmatprep.subr.bf16.mxu0 %v2893
        %3522 = vmatpush1.bf16.msra.mxu0 %v2892
        %3523 = vmatprep.subr.bf16.mxu0 %v2909
        %3524 = vmatpush1.bf16.msra.mxu0 %v2908
        %3525 = vmatprep.subr.bf16.mxu0 0
        %3526 = vmatpush1.bf16.msra.mxu0 0
        %3527 = vmatprep.subr.bf16.mxu0 0
        %3528 = vmatpush1.bf16.msra.mxu0 0
        %3529 = vmatprep.subr.bf16.mxu0 0
        %3530 = vmatpush1.bf16.msra.mxu0 0
        %3531 = vmatprep.subr.bf16.mxu0 0
        %3532 = vmatpush1.bf16.msra.mxu0 0
        %3533 = vmatprep.subr.bf16.mxu0 0
        %3534 = vmatpush1.bf16.msra.mxu0 0
        %3535 = vmatprep.subr.bf16.mxu0 0
        %3536 = vmatpush1.bf16.msra.mxu0 0
        %3537 = vmatprep.subr.bf16.mxu0 0
        %3538 = vmatpush1.bf16.msra.mxu0 0
        %3539 = vmatprep.subr.bf16.mxu0 0
        %3540 = vmatpush1.bf16.msra.mxu0 0
        %3541 = vmatprep.mubr.bf16.mxu0 0
        %3542 = vmatmul.mubr.bf16.gmra.mrb[0].mxu0 %v1380
        %v3543 = vpop.f32.mrb[0].mxu0
        %v3544 = vadd.f32 %v3503, %v3543
        %v3545 = vpop.f32.mrb[0].mxu0
        %v3546 = vadd.f32 %v3505, %v3545
        %v3547 = vpop.f32.mrb[0].mxu0
        %v3548 = vpop.f32.mrb[0].mxu0
        %3549 = vdwg.mxu0
        %3550 = vmatprep.subr.bf16.mxu0 %v2543
        %3551 = vmatpush1.bf16.msra.mxu0 %v2542
        %3552 = vmatprep.subr.bf16.mxu0 %v2559
        %3553 = vmatpush1.bf16.msra.mxu0 %v2558
        %3554 = vmatprep.subr.bf16.mxu0 %v2575
        %3555 = vmatpush1.bf16.msra.mxu0 %v2574
        %3556 = vmatprep.subr.bf16.mxu0 %v2591
        %3557 = vmatpush1.bf16.msra.mxu0 %v2590
        %3558 = vmatprep.subr.bf16.mxu0 %v2607
        %3559 = vmatpush1.bf16.msra.mxu0 %v2606
        %3560 = vmatprep.subr.bf16.mxu0 %v2623
        %3561 = vmatpush1.bf16.msra.mxu0 %v2622
        %3562 = vmatprep.subr.bf16.mxu0 %v2639
        %3563 = vmatpush1.bf16.msra.mxu0 %v2638
        %3564 = vmatprep.subr.bf16.mxu0 %v2655
        %3565 = vmatpush1.bf16.msra.mxu0 %v2654
        %3566 = vmatprep.subr.bf16.mxu0 %v2671
        %3567 = vmatpush1.bf16.msra.mxu0 %v2670
        %3568 = vmatprep.subr.bf16.mxu0 %v2687
        %3569 = vmatpush1.bf16.msra.mxu0 %v2686
        %3570 = vmatprep.subr.bf16.mxu0 %v2703
        %3571 = vmatpush1.bf16.msra.mxu0 %v2702
        %3572 = vmatprep.subr.bf16.mxu0 %v2719
        %3573 = vmatpush1.bf16.msra.mxu0 %v2718
        %3574 = vmatprep.subr.bf16.mxu0 %v2735
        %3575 = vmatpush1.bf16.msra.mxu0 %v2734
        %3576 = vmatprep.subr.bf16.mxu0 %v2751
        %3577 = vmatpush1.bf16.msra.mxu0 %v2750
        %3578 = vmatprep.subr.bf16.mxu0 %v2767
        %3579 = vmatpush1.bf16.msra.mxu0 %v2766
        %3580 = vmatprep.subr.bf16.mxu0 %v2783
        %3581 = vmatpush1.bf16.msra.mxu0 %v2782
        %3582 = vmatprep.mubr.bf16.mxu0 %v1379
        %3583 = vmatmul.mubr.bf16.gmra.mrb[0].mxu0 %v1378
        %v3584 = vpop.f32.mrb[0].mxu0
        %v3585 = vadd.f32 0.0, %v3584
        %v3586 = vpop.f32.mrb[0].mxu0
        %v3587 = vadd.f32 0.0, %v3586
        %v3588 = vpop.f32.mrb[0].mxu0
        %v3589 = vpop.f32.mrb[0].mxu0
        %3590 = vdwg.mxu0
        %3591 = vmatprep.subr.bf16.mxu0 %v2799
        %3592 = vmatpush1.bf16.msra.mxu0 %v2798
        %3593 = vmatprep.subr.bf16.mxu0 %v2815
        %3594 = vmatpush1.bf16.msra.mxu0 %v2814
        %3595 = vmatprep.subr.bf16.mxu0 %v2831
        %3596 = vmatpush1.bf16.msra.mxu0 %v2830
        %3597 = vmatprep.subr.bf16.mxu0 %v2847
        %3598 = vmatpush1.bf16.msra.mxu0 %v2846
        %3599 = vmatprep.subr.bf16.mxu0 %v2863
        %3600 = vmatpush1.bf16.msra.mxu0 %v2862
        %3601 = vmatprep.subr.bf16.mxu0 %v2879
        %3602 = vmatpush1.bf16.msra.mxu0 %v2878
        %3603 = vmatprep.subr.bf16.mxu0 %v2895
        %3604 = vmatpush1.bf16.msra.mxu0 %v2894
        %3605 = vmatprep.subr.bf16.mxu0 %v2911
        %3606 = vmatpush1.bf16.msra.mxu0 %v2910
        %3607 = vmatprep.subr.bf16.mxu0 0
        %3608 = vmatpush1.bf16.msra.mxu0 0
        %3609 = vmatprep.subr.bf16.mxu0 0
        %3610 = vmatpush1.bf16.msra.mxu0 0
        %3611 = vmatprep.subr.bf16.mxu0 0
        %3612 = vmatpush1.bf16.msra.mxu0 0
        %3613 = vmatprep.subr.bf16.mxu0 0
        %3614 = vmatpush1.bf16.msra.mxu0 0
        %3615 = vmatprep.subr.bf16.mxu0 0
        %3616 = vmatpush1.bf16.msra.mxu0 0
        %3617 = vmatprep.subr.bf16.mxu0 0
        %3618 = vmatpush1.bf16.msra.mxu0 0
        %3619 = vmatprep.subr.bf16.mxu0 0
        %3620 = vmatpush1.bf16.msra.mxu0 0
        %3621 = vmatprep.subr.bf16.mxu0 0
        %3622 = vmatpush1.bf16.msra.mxu0 0
        %3623 = vmatprep.mubr.bf16.mxu0 0
        %3624 = vmatmul.mubr.bf16.gmra.mrb[0].mxu0 %v1380
        %v3625 = vpop.f32.mrb[0].mxu0
        %v3626 = vadd.f32 %v3585, %v3625
        %v3627 = vpop.f32.mrb[0].mxu0
        %v3628 = vadd.f32 %v3587, %v3627
        %v3629 = vpop.f32.mrb[0].mxu0
        %v3630 = vpop.f32.mrb[0].mxu0
        %3631 = vdwg.mxu0
        %3632 = vmatprep.subr.bf16.mxu0 %v2545
        %3633 = vmatpush1.bf16.msra.mxu0 %v2544
        %3634 = vmatprep.subr.bf16.mxu0 %v2561
        %3635 = vmatpush1.bf16.msra.mxu0 %v2560
        %3636 = vmatprep.subr.bf16.mxu0 %v2577
        %3637 = vmatpush1.bf16.msra.mxu0 %v2576
        %3638 = vmatprep.subr.bf16.mxu0 %v2593
        %3639 = vmatpush1.bf16.msra.mxu0 %v2592
        %3640 = vmatprep.subr.bf16.mxu0 %v2609
        %3641 = vmatpush1.bf16.msra.mxu0 %v2608
        %3642 = vmatprep.subr.bf16.mxu0 %v2625
        %3643 = vmatpush1.bf16.msra.mxu0 %v2624
        %3644 = vmatprep.subr.bf16.mxu0 %v2641
        %3645 = vmatpush1.bf16.msra.mxu0 %v2640
        %3646 = vmatprep.subr.bf16.mxu0 %v2657
        %3647 = vmatpush1.bf16.msra.mxu0 %v2656
        %3648 = vmatprep.subr.bf16.mxu0 %v2673
        %3649 = vmatpush1.bf16.msra.mxu0 %v2672
        %3650 = vmatprep.subr.bf16.mxu0 %v2689
        %3651 = vmatpush1.bf16.msra.mxu0 %v2688
        %3652 = vmatprep.subr.bf16.mxu0 %v2705
        %3653 = vmatpush1.bf16.msra.mxu0 %v2704
        %3654 = vmatprep.subr.bf16.mxu0 %v2721
        %3655 = vmatpush1.bf16.msra.mxu0 %v2720
        %3656 = vmatprep.subr.bf16.mxu0 %v2737
        %3657 = vmatpush1.bf16.msra.mxu0 %v2736
        %3658 = vmatprep.subr.bf16.mxu0 %v2753
        %3659 = vmatpush1.bf16.msra.mxu0 %v2752
        %3660 = vmatprep.subr.bf16.mxu0 %v2769
        %3661 = vmatpush1.bf16.msra.mxu0 %v2768
        %3662 = vmatprep.subr.bf16.mxu0 %v2785
        %3663 = vmatpush1.bf16.msra.mxu0 %v2784
        %3664 = vmatprep.mubr.bf16.mxu0 %v1379
        %3665 = vmatmul.mubr.bf16.gmra.mrb[0].mxu0 %v1378
        %v3666 = vpop.f32.mrb[0].mxu0
        %v3667 = vadd.f32 0.0, %v3666
        %v3668 = vpop.f32.mrb[0].mxu0
        %v3669 = vadd.f32 0.0, %v3668
        %v3670 = vpop.f32.mrb[0].mxu0
        %v3671 = vpop.f32.mrb[0].mxu0
        %3672 = vdwg.mxu0
        %3673 = vmatprep.subr.bf16.mxu0 %v2801
        %3674 = vmatpush1.bf16.msra.mxu0 %v2800
        %3675 = vmatprep.subr.bf16.mxu0 %v2817
        %3676 = vmatpush1.bf16.msra.mxu0 %v2816
        %3677 = vmatprep.subr.bf16.mxu0 %v2833
        %3678 = vmatpush1.bf16.msra.mxu0 %v2832
        %3679 = vmatprep.subr.bf16.mxu0 %v2849
        %3680 = vmatpush1.bf16.msra.mxu0 %v2848
        %3681 = vmatprep.subr.bf16.mxu0 %v2865
        %3682 = vmatpush1.bf16.msra.mxu0 %v2864
        %3683 = vmatprep.subr.bf16.mxu0 %v2881
        %3684 = vmatpush1.bf16.msra.mxu0 %v2880
        %3685 = vmatprep.subr.bf16.mxu0 %v2897
        %3686 = vmatpush1.bf16.msra.mxu0 %v2896
        %3687 = vmatprep.subr.bf16.mxu0 %v2913
        %3688 = vmatpush1.bf16.msra.mxu0 %v2912
        %3689 = vmatprep.subr.bf16.mxu0 0
        %3690 = vmatpush1.bf16.msra.mxu0 0
        %3691 = vmatprep.subr.bf16.mxu0 0
        %3692 = vmatpush1.bf16.msra.mxu0 0
        %3693 = vmatprep.subr.bf16.mxu0 0
        %3694 = vmatpush1.bf16.msra.mxu0 0
        %3695 = vmatprep.subr.bf16.mxu0 0
        %3696 = vmatpush1.bf16.msra.mxu0 0
        %3697 = vmatprep.subr.bf16.mxu0 0
        %3698 = vmatpush1.bf16.msra.mxu0 0
        %3699 = vmatprep.subr.bf16.mxu0 0
        %3700 = vmatpush1.bf16.msra.mxu0 0
        %3701 = vmatprep.subr.bf16.mxu0 0
        %3702 = vmatpush1.bf16.msra.mxu0 0
        %3703 = vmatprep.subr.bf16.mxu0 0
        %3704 = vmatpush1.bf16.msra.mxu0 0
        %3705 = vmatprep.mubr.bf16.mxu0 0
        %3706 = vmatmul.mubr.bf16.gmra.mrb[0].mxu0 %v1380
        %v3707 = vpop.f32.mrb[0].mxu0
        %v3708 = vadd.f32 %v3667, %v3707
        %v3709 = vpop.f32.mrb[0].mxu0
        %v3710 = vadd.f32 %v3669, %v3709
        %v3711 = vpop.f32.mrb[0].mxu0
        %v3712 = vpop.f32.mrb[0].mxu0
        %3713 = vdwg.mxu0
        %3714 = vmatprep.subr.bf16.mxu0 %v2547
        %3715 = vmatpush1.bf16.msra.mxu0 %v2546
        %3716 = vmatprep.subr.bf16.mxu0 %v2563
        %3717 = vmatpush1.bf16.msra.mxu0 %v2562
        %3718 = vmatprep.subr.bf16.mxu0 %v2579
        %3719 = vmatpush1.bf16.msra.mxu0 %v2578
        %3720 = vmatprep.subr.bf16.mxu0 %v2595
        %3721 = vmatpush1.bf16.msra.mxu0 %v2594
        %3722 = vmatprep.subr.bf16.mxu0 %v2611
        %3723 = vmatpush1.bf16.msra.mxu0 %v2610
        %3724 = vmatprep.subr.bf16.mxu0 %v2627
        %3725 = vmatpush1.bf16.msra.mxu0 %v2626
        %3726 = vmatprep.subr.bf16.mxu0 %v2643
        %3727 = vmatpush1.bf16.msra.mxu0 %v2642
        %3728 = vmatprep.subr.bf16.mxu0 %v2659
        %3729 = vmatpush1.bf16.msra.mxu0 %v2658
        %3730 = vmatprep.subr.bf16.mxu0 %v2675
        %3731 = vmatpush1.bf16.msra.mxu0 %v2674
        %3732 = vmatprep.subr.bf16.mxu0 %v2691
        %3733 = vmatpush1.bf16.msra.mxu0 %v2690
        %3734 = vmatprep.subr.bf16.mxu0 %v2707
        %3735 = vmatpush1.bf16.msra.mxu0 %v2706
        %3736 = vmatprep.subr.bf16.mxu0 %v2723
        %3737 = vmatpush1.bf16.msra.mxu0 %v2722
        %3738 = vmatprep.subr.bf16.mxu0 %v2739
        %3739 = vmatpush1.bf16.msra.mxu0 %v2738
        %3740 = vmatprep.subr.bf16.mxu0 %v2755
        %3741 = vmatpush1.bf16.msra.mxu0 %v2754
        %3742 = vmatprep.subr.bf16.mxu0 %v2771
        %3743 = vmatpush1.bf16.msra.mxu0 %v2770
        %3744 = vmatprep.subr.bf16.mxu0 %v2787
        %3745 = vmatpush1.bf16.msra.mxu0 %v2786
        %3746 = vmatprep.mubr.bf16.mxu0 %v1379
        %3747 = vmatmul.mubr.bf16.gmra.mrb[0].mxu0 %v1378
        %v3748 = vpop.f32.mrb[0].mxu0
        %v3749 = vadd.f32 0.0, %v3748
        %v3750 = vpop.f32.mrb[0].mxu0
        %v3751 = vadd.f32 0.0, %v3750
        %v3752 = vpop.f32.mrb[0].mxu0
        %v3753 = vpop.f32.mrb[0].mxu0
        %3754 = vdwg.mxu0
        %3755 = vmatprep.subr.bf16.mxu0 %v2803
        %3756 = vmatpush1.bf16.msra.mxu0 %v2802
        %3757 = vmatprep.subr.bf16.mxu0 %v2819
        %3758 = vmatpush1.bf16.msra.mxu0 %v2818
        %3759 = vmatprep.subr.bf16.mxu0 %v2835
        %3760 = vmatpush1.bf16.msra.mxu0 %v2834
        %3761 = vmatprep.subr.bf16.mxu0 %v2851
        %3762 = vmatpush1.bf16.msra.mxu0 %v2850
        %3763 = vmatprep.subr.bf16.mxu0 %v2867
        %3764 = vmatpush1.bf16.msra.mxu0 %v2866
        %3765 = vmatprep.subr.bf16.mxu0 %v2883
        %3766 = vmatpush1.bf16.msra.mxu0 %v2882
        %3767 = vmatprep.subr.bf16.mxu0 %v2899
        %3768 = vmatpush1.bf16.msra.mxu0 %v2898
        %3769 = vmatprep.subr.bf16.mxu0 %v2915
        %3770 = vmatpush1.bf16.msra.mxu0 %v2914
        %3771 = vmatprep.subr.bf16.mxu0 0
        %3772 = vmatpush1.bf16.msra.mxu0 0
        %3773 = vmatprep.subr.bf16.mxu0 0
        %3774 = vmatpush1.bf16.msra.mxu0 0
        %3775 = vmatprep.subr.bf16.mxu0 0
        %3776 = vmatpush1.bf16.msra.mxu0 0
        %3777 = vmatprep.subr.bf16.mxu0 0
        %3778 = vmatpush1.bf16.msra.mxu0 0
        %3779 = vmatprep.subr.bf16.mxu0 0
        %3780 = vmatpush1.bf16.msra.mxu0 0
        %3781 = vmatprep.subr.bf16.mxu0 0
        %3782 = vmatpush1.bf16.msra.mxu0 0
        %3783 = vmatprep.subr.bf16.mxu0 0
        %3784 = vmatpush1.bf16.msra.mxu0 0
        %3785 = vmatprep.subr.bf16.mxu0 0
        %3786 = vmatpush1.bf16.msra.mxu0 0
        %3787 = vmatprep.mubr.bf16.mxu0 0
        %3788 = vmatmul.mubr.bf16.gmra.mrb[0].mxu0 %v1380
        %v3789 = vpop.f32.mrb[0].mxu0
        %v3790 = vadd.f32 %v3749, %v3789
        %v3791 = vpop.f32.mrb[0].mxu0
        %v3792 = vadd.f32 %v3751, %v3791
        %v3793 = vpop.f32.mrb[0].mxu0
        %v3794 = vpop.f32.mrb[0].mxu0
        %3795 = vdwg.mxu0
        %3796 = vmatprep.subr.bf16.mxu0 %v2549
        %3797 = vmatpush1.bf16.msra.mxu0 %v2548
        %3798 = vmatprep.subr.bf16.mxu0 %v2565
        %3799 = vmatpush1.bf16.msra.mxu0 %v2564
        %3800 = vmatprep.subr.bf16.mxu0 %v2581
        %3801 = vmatpush1.bf16.msra.mxu0 %v2580
        %3802 = vmatprep.subr.bf16.mxu0 %v2597
        %3803 = vmatpush1.bf16.msra.mxu0 %v2596
        %3804 = vmatprep.subr.bf16.mxu0 %v2613
        %3805 = vmatpush1.bf16.msra.mxu0 %v2612
        %3806 = vmatprep.subr.bf16.mxu0 %v2629
        %3807 = vmatpush1.bf16.msra.mxu0 %v2628
        %3808 = vmatprep.subr.bf16.mxu0 %v2645
        %3809 = vmatpush1.bf16.msra.mxu0 %v2644
        %3810 = vmatprep.subr.bf16.mxu0 %v2661
        %3811 = vmatpush1.bf16.msra.mxu0 %v2660
        %3812 = vmatprep.subr.bf16.mxu0 %v2677
        %3813 = vmatpush1.bf16.msra.mxu0 %v2676
        %3814 = vmatprep.subr.bf16.mxu0 %v2693
        %3815 = vmatpush1.bf16.msra.mxu0 %v2692
        %3816 = vmatprep.subr.bf16.mxu0 %v2709
        %3817 = vmatpush1.bf16.msra.mxu0 %v2708
        %3818 = vmatprep.subr.bf16.mxu0 %v2725
        %3819 = vmatpush1.bf16.msra.mxu0 %v2724
        %3820 = vmatprep.subr.bf16.mxu0 %v2741
        %3821 = vmatpush1.bf16.msra.mxu0 %v2740
        %3822 = vmatprep.subr.bf16.mxu0 %v2757
        %3823 = vmatpush1.bf16.msra.mxu0 %v2756
        %3824 = vmatprep.subr.bf16.mxu0 %v2773
        %3825 = vmatpush1.bf16.msra.mxu0 %v2772
        %3826 = vmatprep.subr.bf16.mxu0 %v2789
        %3827 = vmatpush1.bf16.msra.mxu0 %v2788
        %3828 = vmatprep.mubr.bf16.mxu0 %v1379
        %3829 = vmatmul.mubr.bf16.gmra.mrb[0].mxu0 %v1378
        %v3830 = vpop.f32.mrb[0].mxu0
        %v3831 = vadd.f32 0.0, %v3830
        %v3832 = vpop.f32.mrb[0].mxu0
        %v3833 = vadd.f32 0.0, %v3832
        %v3834 = vpop.f32.mrb[0].mxu0
        %v3835 = vpop.f32.mrb[0].mxu0
        %3836 = vdwg.mxu0
        %3837 = vmatprep.subr.bf16.mxu0 %v2805
        %3838 = vmatpush1.bf16.msra.mxu0 %v2804
        %3839 = vmatprep.subr.bf16.mxu0 %v2821
        %3840 = vmatpush1.bf16.msra.mxu0 %v2820
        %3841 = vmatprep.subr.bf16.mxu0 %v2837
        %3842 = vmatpush1.bf16.msra.mxu0 %v2836
        %3843 = vmatprep.subr.bf16.mxu0 %v2853
        %3844 = vmatpush1.bf16.msra.mxu0 %v2852
        %3845 = vmatprep.subr.bf16.mxu0 %v2869
        %3846 = vmatpush1.bf16.msra.mxu0 %v2868
        %3847 = vmatprep.subr.bf16.mxu0 %v2885
        %3848 = vmatpush1.bf16.msra.mxu0 %v2884
        %3849 = vmatprep.subr.bf16.mxu0 %v2901
        %3850 = vmatpush1.bf16.msra.mxu0 %v2900
        %3851 = vmatprep.subr.bf16.mxu0 %v2917
        %3852 = vmatpush1.bf16.msra.mxu0 %v2916
        %3853 = vmatprep.subr.bf16.mxu0 0
        %3854 = vmatpush1.bf16.msra.mxu0 0
        %3855 = vmatprep.subr.bf16.mxu0 0
        %3856 = vmatpush1.bf16.msra.mxu0 0
        %3857 = vmatprep.subr.bf16.mxu0 0
        %3858 = vmatpush1.bf16.msra.mxu0 0
        %3859 = vmatprep.subr.bf16.mxu0 0
        %3860 = vmatpush1.bf16.msra.mxu0 0
        %3861 = vmatprep.subr.bf16.mxu0 0
        %3862 = vmatpush1.bf16.msra.mxu0 0
        %3863 = vmatprep.subr.bf16.mxu0 0
        %3864 = vmatpush1.bf16.msra.mxu0 0
        %3865 = vmatprep.subr.bf16.mxu0 0
        %3866 = vmatpush1.bf16.msra.mxu0 0
        %3867 = vmatprep.subr.bf16.mxu0 0
        %3868 = vmatpush1.bf16.msra.mxu0 0
        %3869 = vmatprep.mubr.bf16.mxu0 0
        %3870 = vmatmul.mubr.bf16.gmra.mrb[0].mxu0 %v1380
        %v3871 = vpop.f32.mrb[0].mxu0
        %v3872 = vadd.f32 %v3831, %v3871
        %v3873 = vpop.f32.mrb[0].mxu0
        %v3874 = vadd.f32 %v3833, %v3873
        %v3875 = vpop.f32.mrb[0].mxu0
        %v3876 = vpop.f32.mrb[0].mxu0
        %3877 = vdwg.mxu0
        %3878 = vmatprep.subr.bf16.mxu0 %v2551
        %3879 = vmatpush1.bf16.msra.mxu0 %v2550
        %3880 = vmatprep.subr.bf16.mxu0 %v2567
        %3881 = vmatpush1.bf16.msra.mxu0 %v2566
        %3882 = vmatprep.subr.bf16.mxu0 %v2583
        %3883 = vmatpush1.bf16.msra.mxu0 %v2582
        %3884 = vmatprep.subr.bf16.mxu0 %v2599
        %3885 = vmatpush1.bf16.msra.mxu0 %v2598
        %3886 = vmatprep.subr.bf16.mxu0 %v2615
        %3887 = vmatpush1.bf16.msra.mxu0 %v2614
        %3888 = vmatprep.subr.bf16.mxu0 %v2631
        %3889 = vmatpush1.bf16.msra.mxu0 %v2630
        %3890 = vmatprep.subr.bf16.mxu0 %v2647
        %3891 = vmatpush1.bf16.msra.mxu0 %v2646
        %3892 = vmatprep.subr.bf16.mxu0 %v2663
        %3893 = vmatpush1.bf16.msra.mxu0 %v2662
        %3894 = vmatprep.subr.bf16.mxu0 %v2679
        %3895 = vmatpush1.bf16.msra.mxu0 %v2678
        %3896 = vmatprep.subr.bf16.mxu0 %v2695
        %3897 = vmatpush1.bf16.msra.mxu0 %v2694
        %3898 = vmatprep.subr.bf16.mxu0 %v2711
        %3899 = vmatpush1.bf16.msra.mxu0 %v2710
        %3900 = vmatprep.subr.bf16.mxu0 %v2727
        %3901 = vmatpush1.bf16.msra.mxu0 %v2726
        %3902 = vmatprep.subr.bf16.mxu0 %v2743
        %3903 = vmatpush1.bf16.msra.mxu0 %v2742
        %3904 = vmatprep.subr.bf16.mxu0 %v2759
        %3905 = vmatpush1.bf16.msra.mxu0 %v2758
        %3906 = vmatprep.subr.bf16.mxu0 %v2775
        %3907 = vmatpush1.bf16.msra.mxu0 %v2774
        %3908 = vmatprep.subr.bf16.mxu0 %v2791
        %3909 = vmatpush1.bf16.msra.mxu0 %v2790
        %3910 = vmatprep.mubr.bf16.mxu0 %v1379
        %3911 = vmatmul.mubr.bf16.gmra.mrb[0].mxu0 %v1378
        %v3912 = vpop.f32.mrb[0].mxu0
        %v3913 = vadd.f32 0.0, %v3912
        %v3914 = vpop.f32.mrb[0].mxu0
        %v3915 = vadd.f32 0.0, %v3914
        %v3916 = vpop.f32.mrb[0].mxu0
        %v3917 = vpop.f32.mrb[0].mxu0
        %3918 = vdwg.mxu0
        %3919 = vmatprep.subr.bf16.mxu0 %v2807
        %3920 = vmatpush1.bf16.msra.mxu0 %v2806
        %3921 = vmatprep.subr.bf16.mxu0 %v2823
        %3922 = vmatpush1.bf16.msra.mxu0 %v2822
        %3923 = vmatprep.subr.bf16.mxu0 %v2839
        %3924 = vmatpush1.bf16.msra.mxu0 %v2838
        %3925 = vmatprep.subr.bf16.mxu0 %v2855
        %3926 = vmatpush1.bf16.msra.mxu0 %v2854
        %3927 = vmatprep.subr.bf16.mxu0 %v2871
        %3928 = vmatpush1.bf16.msra.mxu0 %v2870
        %3929 = vmatprep.subr.bf16.mxu0 %v2887
        %3930 = vmatpush1.bf16.msra.mxu0 %v2886
        %3931 = vmatprep.subr.bf16.mxu0 %v2903
        %3932 = vmatpush1.bf16.msra.mxu0 %v2902
        %3933 = vmatprep.subr.bf16.mxu0 %v2919
        %3934 = vmatpush1.bf16.msra.mxu0 %v2918
        %3935 = vmatprep.subr.bf16.mxu0 0
        %3936 = vmatpush1.bf16.msra.mxu0 0
        %3937 = vmatprep.subr.bf16.mxu0 0
        %3938 = vmatpush1.bf16.msra.mxu0 0
        %3939 = vmatprep.subr.bf16.mxu0 0
        %3940 = vmatpush1.bf16.msra.mxu0 0
        %3941 = vmatprep.subr.bf16.mxu0 0
        %3942 = vmatpush1.bf16.msra.mxu0 0
        %3943 = vmatprep.subr.bf16.mxu0 0
        %3944 = vmatpush1.bf16.msra.mxu0 0
        %3945 = vmatprep.subr.bf16.mxu0 0
        %3946 = vmatpush1.bf16.msra.mxu0 0
        %3947 = vmatprep.subr.bf16.mxu0 0
        %3948 = vmatpush1.bf16.msra.mxu0 0
        %3949 = vmatprep.subr.bf16.mxu0 0
        %3950 = vmatpush1.bf16.msra.mxu0 0
        %3951 = vmatprep.mubr.bf16.mxu0 0
        %3952 = vmatmul.mubr.bf16.gmra.mrb[0].mxu0 %v1380
        %v3953 = vpop.f32.mrb[0].mxu0
        %v3954 = vadd.f32 %v3913, %v3953
        %v3955 = vpop.f32.mrb[0].mxu0
        %v3956 = vadd.f32 %v3915, %v3955
        %v3957 = vpop.f32.mrb[0].mxu0
        %v3958 = vpop.f32.mrb[0].mxu0
        %3959 = vdwg.mxu0
        %v3960 = vld [vmem:[%s2] sm:$0x3f]
        %3962 = vset.pattern.permute.xlu0 0
        %3963 = vperm.xlu0 %3962, %v3960
        %v3964 = vpop.permute.xlu0 %3963
        %v3966 = vmul.f32 %v3380, %v3964
        %v3967 = vmul.f32 %v3382, %v3964
        %v3968 = vmul.f32 %v3462, %v3964
        %v3969 = vmul.f32 %v3464, %v3964
        %v3970 = vmul.f32 %v3544, %v3964
        %v3971 = vmul.f32 %v3546, %v3964
        %v3972 = vmul.f32 %v3626, %v3964
        %v3973 = vmul.f32 %v3628, %v3964
        %v3974 = vmul.f32 %v3708, %v3964
        %v3975 = vmul.f32 %v3710, %v3964
        %v3976 = vmul.f32 %v3790, %v3964
        %v3977 = vmul.f32 %v3792, %v3964
        %v3978 = vmul.f32 %v3872, %v3964
        %v3979 = vmul.f32 %v3874, %v3964
        %v3980 = vmul.f32 %v3954, %v3964
        %v3981 = vmul.f32 %v3956, %v3964
        %v3982 = vld [vmem:[%s3] sm:$0x3f]
        %3984 = vset.pattern.permute.xlu0 0
        %3985 = vperm.xlu0 %3984, %v3982
        %v3986 = vpop.permute.xlu0 %3985
        %v3988 = vadd.f32 %v3966, %v3986
        %v3989 = vadd.f32 %v3967, %v3986
        %v3990 = vadd.f32 %v3968, %v3986
        %v3991 = vadd.f32 %v3969, %v3986
        %v3992 = vadd.f32 %v3970, %v3986
        %v3993 = vadd.f32 %v3971, %v3986
        %v3994 = vadd.f32 %v3972, %v3986
        %v3995 = vadd.f32 %v3973, %v3986
        %v3996 = vadd.f32 %v3974, %v3986
        %v3997 = vadd.f32 %v3975, %v3986
        %v3998 = vadd.f32 %v3976, %v3986
        %v3999 = vadd.f32 %v3977, %v3986
        %v4000 = vadd.f32 %v3978, %v3986
        %v4001 = vadd.f32 %v3979, %v3986
        %v4002 = vadd.f32 %v3980, %v3986
        %v4003 = vadd.f32 %v3981, %v3986
        %4004 = vst [vmem:[%s984] sm:$0x3f] %v3988
        %4005 = vst [vmem:[%s984 + $0x8] sm:$0x3f] %v3989
        %4006 = vst [vmem:[%s984 + $0x10] sm:$0x3f] %v3990
        %4007 = vst [vmem:[%s984 + $0x18] sm:$0x3f] %v3991
        %4008 = vst [vmem:[%s984 + $0x20] sm:$0x3f] %v3992
        %4009 = vst [vmem:[%s984 + $0x28] sm:$0x3f] %v3993
        %4010 = vst [vmem:[%s984 + $0x30] sm:$0x3f] %v3994
        %4011 = vst [vmem:[%s984 + $0x38] sm:$0x3f] %v3995
        %4012 = vst [vmem:[%s984 + $0x40] sm:$0x3f] %v3996
        %4013 = vst [vmem:[%s984 + $0x48] sm:$0x3f] %v3997
        %4014 = vst [vmem:[%s984 + $0x50] sm:$0x3f] %v3998
        %4015 = vst [vmem:[%s984 + $0x58] sm:$0x3f] %v3999
        %4016 = vst [vmem:[%s984 + $0x60] sm:$0x3f] %v4000
        %4017 = vst [vmem:[%s984 + $0x68] sm:$0x3f] %v4001
        %4018 = vst [vmem:[%s984 + $0x70] sm:$0x3f] %v4002
        %4019 = vst [vmem:[%s984 + $0x78] sm:$0x3f] %v4003
        %s4020 = smul.u32 16, %s15
        %p4021 = scmp.lt.s32.totalorder %s4020, 31
        %s4022 = scalar_select %p4021, %s4020, 31
        %s4023 = smul.addr %s4022, 8
        %s4024 = scalar_lea.vmem %s4, %s4023
        // Predicated region
        $region60: #{alexnet_legacy_forward.7} parent=54 // pred_check
          %p4025 = pneg %p122
        $region61: #{alexnet_legacy_forward.7} parent=54 // pred_check_branch
          %4027 = sbr.rel (%p4025) target = $region63
        $region62: #{alexnet_legacy_forward.7} parent=54 // pred_region
          %s4028 = smul.u32 16, %s15
        $region63: #{alexnet_legacy_forward.7} parent=54 // pred_fallthru
          _
      $region55: #{alexnet_legacy_forward.7} parent=5 // pred_fallthru
        _
      %p4029 = scmp.le.s32.totalorder 2, %s10
      // Predicated region
      $region64: #{alexnet_legacy_forward.7} parent=5 // pred_check
        %p4030 = pneg %p4029
      $region65: #{alexnet_legacy_forward.7} parent=5 // pred_check_branch
        %4032 = sbr.rel (%p4030) target = $region67
      $region66: #{alexnet_legacy_forward.7} parent=5 // pred_region
        %s4033 = ssub.s32 %s10, 2
        // Predicated region
        $region68: #{alexnet_legacy_forward.7} parent=66 // pred_check
          %p4034 = pneg %p128
        $region69: #{alexnet_legacy_forward.7} parent=66 // pred_check_branch
          %4036 = sbr.rel (%p4034) target = $region71
        $region70: #{alexnet_legacy_forward.7} parent=66 // pred_region
          %s4037 = smul.u32 16, %s16
          %p4038 = scmp.lt.s32.totalorder %s4037, 31
          %s4039 = scalar_select %p4038, %s4037, 31
          %s4040 = smul.addr %s4039, 8
          %s4041 = scalar_lea.vmem %s4, %s4040
        $region71: #{alexnet_legacy_forward.7} parent=66 // pred_fallthru
          _
      $region67: #{alexnet_legacy_forward.7} parent=5 // pred_fallthru
        _
    $region6: #{alexnet_legacy_forward.7} parent=1 // loop_footer
      %s14 = sadd.s32 1, %s10
    $region7: #{alexnet_legacy_forward.7} parent=1 // loop_footer_branch
      %9 = sbr.rel target = $region3
    $region8: #{alexnet_legacy_forward.7} parent=1 // loop_exit
      _

// kernel: alexnet_legacy_forward.8
$region0: #{alexnet_legacy_forward.8}
  #allocation0 [shape = 'u32[]', space=smem, size = 0x4, offset = 0x4, fixed_abs, tag = 'smem constant byte address 0x4 - core index']
  #allocation1 [shape = 'u32[144,128]{1,0:T(1,128)}', space=vmem, size = 0x12000, scoped, tag = 'internal scratch']
  %s0 = inlined_call_operand.vmem [shape: f32[9,6,896], index: 0, kind: input, shape index: {}]
  %s1 = inlined_call_operand.vmem [shape: f32[6,896], index: 1, kind: output, shape index: {}]
  %s2 = sld [smem:[#allocation0]]
  $region14: #{alexnet_legacy_forward.8} parent=0
    _
  %s4 = ssub.s32 1, %s2
  %s5 = scalar_select 0, %s4, %s2
  // Predicated region
  $region2: #{alexnet_legacy_forward.8} parent=0 // pred_check
    _
  $region3: #{alexnet_legacy_forward.8} parent=0 // pred_check_branch
    %7 = sbr.rel (0) target = $region5
  $region4: #{alexnet_legacy_forward.8} parent=0 // pred_region
    _
  $region5: #{alexnet_legacy_forward.8} parent=0 // pred_fallthru
    _
  %v8 = vld [vmem:[%s0] sm:$0x3f]
  %v9 = vld [vmem:[%s0 + $0x8] sm:$0x3f]
  %v10 = vld [vmem:[%s0 + $0x10] sm:$0x3f]
  %v11 = vld [vmem:[%s0 + $0x18] sm:$0x3f]
  %v12 = vld [vmem:[%s0 + $0x20] sm:$0x3f]
  %v13 = vld [vmem:[%s0 + $0x28] sm:$0x3f]
  %v14 = vld [vmem:[%s0 + $0x30] sm:$0x3f]
  %v15 = vld [vmem:[%s0 + $0x38] sm:$0x3f]
  %v16 = vld [vmem:[%s0 + $0x40] sm:$0x3f]
  %v17 = vld [vmem:[%s0 + $0x48] sm:$0x3f]
  %v18 = vld [vmem:[%s0 + $0x50] sm:$0x3f]
  %v19 = vld [vmem:[%s0 + $0x58] sm:$0x3f]
  %v20 = vld [vmem:[%s0 + $0x60] sm:$0x3f]
  %v21 = vld [vmem:[%s0 + $0x68] sm:$0x3f]
  %v22 = vld [vmem:[%s0 + $0x70] sm:$0x3f]
  %v23 = vld [vmem:[%s0 + $0x78] sm:$0x3f]
  %v24 = vld [vmem:[%s0 + $0x80] sm:$0x3f]
  %v25 = vld [vmem:[%s0 + $0x88] sm:$0x3f]
  %v26 = vld [vmem:[%s0 + $0x90] sm:$0x3f]
  %v27 = vld [vmem:[%s0 + $0x98] sm:$0x3f]
  %v28 = vld [vmem:[%s0 + $0xa0] sm:$0x3f]
  %v29 = vld [vmem:[%s0 + $0xa8] sm:$0x3f]
  %v30 = vld [vmem:[%s0 + $0xb0] sm:$0x3f]
  %v31 = vld [vmem:[%s0 + $0xb8] sm:$0x3f]
  %v32 = vld [vmem:[%s0 + $0xc0] sm:$0x3f]
  %v33 = vld [vmem:[%s0 + $0xc8] sm:$0x3f]
  %v34 = vld [vmem:[%s0 + $0xd0] sm:$0x3f]
  %v35 = vld [vmem:[%s0 + $0xd8] sm:$0x3f]
  %v36 = vld [vmem:[%s0 + $0xe0] sm:$0x3f]
  %v37 = vld [vmem:[%s0 + $0xe8] sm:$0x3f]
  %v38 = vld [vmem:[%s0 + $0xf0] sm:$0x3f]
  %v39 = vld [vmem:[%s0 + $0xf8] sm:$0x3f]
  %v40 = vld [vmem:[%s0 + $0x100] sm:$0x3f]
  %v41 = vld [vmem:[%s0 + $0x108] sm:$0x3f]
  %v42 = vld [vmem:[%s0 + $0x110] sm:$0x3f]
  %v43 = vld [vmem:[%s0 + $0x118] sm:$0x3f]
  %v44 = vld [vmem:[%s0 + $0x120] sm:$0x3f]
  %v45 = vld [vmem:[%s0 + $0x128] sm:$0x3f]
  %v46 = vld [vmem:[%s0 + $0x130] sm:$0x3f]
  %v47 = vld [vmem:[%s0 + $0x138] sm:$0x3f]
  %v48 = vld [vmem:[%s0 + $0x140] sm:$0x3f]
  %v49 = vld [vmem:[%s0 + $0x148] sm:$0x3f]
  %v50 = vld [vmem:[%s0 + $0x150] sm:$0x3f]
  %v51 = vld [vmem:[%s0 + $0x158] sm:$0x3f]
  %v52 = vld [vmem:[%s0 + $0x160] sm:$0x3f]
  %v53 = vld [vmem:[%s0 + $0x168] sm:$0x3f]
  %v54 = vld [vmem:[%s0 + $0x170] sm:$0x3f]
  %v55 = vld [vmem:[%s0 + $0x178] sm:$0x3f]
  %v56 = vld [vmem:[%s0 + $0x180] sm:$0x3f]
  %v57 = vld [vmem:[%s0 + $0x188] sm:$0x3f]
  %v58 = vld [vmem:[%s0 + $0x190] sm:$0x3f]
  %v59 = vld [vmem:[%s0 + $0x198] sm:$0x3f]
  %v60 = vld [vmem:[%s0 + $0x1a0] sm:$0x3f]
  %v61 = vld [vmem:[%s0 + $0x1a8] sm:$0x3f]
  %v62 = vld [vmem:[%s0 + $0x1b0] sm:$0x3f]
  %v63 = vld [vmem:[%s0 + $0x1b8] sm:$0x3f]
  %v64 = vld [vmem:[%s0 + $0x1c0] sm:$0x3f]
  %v65 = vld [vmem:[%s0 + $0x1c8] sm:$0x3f]
  %v66 = vld [vmem:[%s0 + $0x1d0] sm:$0x3f]
  %v67 = vld [vmem:[%s0 + $0x1d8] sm:$0x3f]
  %v68 = vld [vmem:[%s0 + $0x1e0] sm:$0x3f]
  %v69 = vld [vmem:[%s0 + $0x1e8] sm:$0x3f]
  %v70 = vld [vmem:[%s0 + $0x1f0] sm:$0x3f]
  %vm71 = vcmask 1045504
  %v72 = vsel %vm71, %v8, -inf
  %v73 = vsel %vm71, %v15, -inf
  %v74 = vmax.f32 %v72, %v73
  %v75 = vsel %vm71, %v22, -inf
  %v76 = vmax.f32 %v74, %v75
  %v77 = vsel %vm71, %v29, -inf
  %v78 = vmax.f32 %v76, %v77
  %v79 = vsel %vm71, %v36, -inf
  %v80 = vmax.f32 %v78, %v79
  %v81 = vsel %vm71, %v43, -inf
  %v82 = vmax.f32 %v80, %v81
  %v83 = vsel %vm71, %v50, -inf
  %v84 = vmax.f32 %v82, %v83
  %v85 = vsel %vm71, %v57, -inf
  %v86 = vmax.f32 %v84, %v85
  %v87 = vsel %vm71, %v64, -inf
  %v88 = vmax.f32 %v86, %v87
  %v89 = vsel %vm71, %v9, -inf
  %v90 = vsel %vm71, %v16, -inf
  %v91 = vmax.f32 %v89, %v90
  %v92 = vsel %vm71, %v23, -inf
  %v93 = vmax.f32 %v91, %v92
  %v94 = vsel %vm71, %v30, -inf
  %v95 = vmax.f32 %v93, %v94
  %v96 = vsel %vm71, %v37, -inf
  %v97 = vmax.f32 %v95, %v96
  %v98 = vsel %vm71, %v44, -inf
  %v99 = vmax.f32 %v97, %v98
  %v100 = vsel %vm71, %v51, -inf
  %v101 = vmax.f32 %v99, %v100
  %v102 = vsel %vm71, %v58, -inf
  %v103 = vmax.f32 %v101, %v102
  %v104 = vsel %vm71, %v65, -inf
  %v105 = vmax.f32 %v103, %v104
  %v106 = vsel %vm71, %v10, -inf
  %v107 = vsel %vm71, %v17, -inf
  %v108 = vmax.f32 %v106, %v107
  %v109 = vsel %vm71, %v24, -inf
  %v110 = vmax.f32 %v108, %v109
  %v111 = vsel %vm71, %v31, -inf
  %v112 = vmax.f32 %v110, %v111
  %v113 = vsel %vm71, %v38, -inf
  %v114 = vmax.f32 %v112, %v113
  %v115 = vsel %vm71, %v45, -inf
  %v116 = vmax.f32 %v114, %v115
  %v117 = vsel %vm71, %v52, -inf
  %v118 = vmax.f32 %v116, %v117
  %v119 = vsel %vm71, %v59, -inf
  %v120 = vmax.f32 %v118, %v119
  %v121 = vsel %vm71, %v66, -inf
  %v122 = vmax.f32 %v120, %v121
  %v123 = vsel %vm71, %v11, -inf
  %v124 = vsel %vm71, %v18, -inf
  %v125 = vmax.f32 %v123, %v124
  %v126 = vsel %vm71, %v25, -inf
  %v127 = vmax.f32 %v125, %v126
  %v128 = vsel %vm71, %v32, -inf
  %v129 = vmax.f32 %v127, %v128
  %v130 = vsel %vm71, %v39, -inf
  %v131 = vmax.f32 %v129, %v130
  %v132 = vsel %vm71, %v46, -inf
  %v133 = vmax.f32 %v131, %v132
  %v134 = vsel %vm71, %v53, -inf
  %v135 = vmax.f32 %v133, %v134
  %v136 = vsel %vm71, %v60, -inf
  %v137 = vmax.f32 %v135, %v136
  %v138 = vsel %vm71, %v67, -inf
  %v139 = vmax.f32 %v137, %v138
  %v140 = vsel %vm71, %v12, -inf
  %v141 = vsel %vm71, %v19, -inf
  %v142 = vmax.f32 %v140, %v141
  %v143 = vsel %vm71, %v26, -inf
  %v144 = vmax.f32 %v142, %v143
  %v145 = vsel %vm71, %v33, -inf
  %v146 = vmax.f32 %v144, %v145
  %v147 = vsel %vm71, %v40, -inf
  %v148 = vmax.f32 %v146, %v147
  %v149 = vsel %vm71, %v47, -inf
  %v150 = vmax.f32 %v148, %v149
  %v151 = vsel %vm71, %v54, -inf
  %v152 = vmax.f32 %v150, %v151
  %v153 = vsel %vm71, %v61, -inf
  %v154 = vmax.f32 %v152, %v153
  %v155 = vsel %vm71, %v68, -inf
  %v156 = vmax.f32 %v154, %v155
  %v157 = vsel %vm71, %v13, -inf
  %v158 = vsel %vm71, %v20, -inf
  %v159 = vmax.f32 %v157, %v158
  %v160 = vsel %vm71, %v27, -inf
  %v161 = vmax.f32 %v159, %v160
  %v162 = vsel %vm71, %v34, -inf
  %v163 = vmax.f32 %v161, %v162
  %v164 = vsel %vm71, %v41, -inf
  %v165 = vmax.f32 %v163, %v164
  %v166 = vsel %vm71, %v48, -inf
  %v167 = vmax.f32 %v165, %v166
  %v168 = vsel %vm71, %v55, -inf
  %v169 = vmax.f32 %v167, %v168
  %v170 = vsel %vm71, %v62, -inf
  %v171 = vmax.f32 %v169, %v170
  %v172 = vsel %vm71, %v69, -inf
  %v173 = vmax.f32 %v171, %v172
  %v174 = vsel %vm71, %v14, -inf
  %v175 = vsel %vm71, %v21, -inf
  %v176 = vmax.f32 %v174, %v175
  %v177 = vsel %vm71, %v28, -inf
  %v178 = vmax.f32 %v176, %v177
  %v179 = vsel %vm71, %v35, -inf
  %v180 = vmax.f32 %v178, %v179
  %v181 = vsel %vm71, %v42, -inf
  %v182 = vmax.f32 %v180, %v181
  %v183 = vsel %vm71, %v49, -inf
  %v184 = vmax.f32 %v182, %v183
  %v185 = vsel %vm71, %v56, -inf
  %v186 = vmax.f32 %v184, %v185
  %v187 = vsel %vm71, %v63, -inf
  %v188 = vmax.f32 %v186, %v187
  %v189 = vsel %vm71, %v70, -inf
  %v190 = vmax.f32 %v188, %v189
  %v191 = vmax.f32 %v88, 0.0
  %v192 = vmax.f32 %v105, 0.0
  %v193 = vmax.f32 %v122, 0.0
  %v194 = vmax.f32 %v139, 0.0
  %v195 = vmax.f32 %v156, 0.0
  %v196 = vmax.f32 %v173, 0.0
  %v197 = vmax.f32 %v190, 0.0
  %198 = vst [vmem:[%s1] sm:$0x3f] %v191
  %199 = vst [vmem:[%s1 + $0x8] sm:$0x3f] %v192
  %200 = vst [vmem:[%s1 + $0x10] sm:$0x3f] %v193
  %201 = vst [vmem:[%s1 + $0x18] sm:$0x3f] %v194
  %202 = vst [vmem:[%s1 + $0x20] sm:$0x3f] %v195
  %203 = vst [vmem:[%s1 + $0x28] sm:$0x3f] %v196
  %204 = vst [vmem:[%s1 + $0x30] sm:$0x3f] %v197
  // Predicated region
  $region6: #{alexnet_legacy_forward.8} parent=0 // pred_check
    _
  $region7: #{alexnet_legacy_forward.8} parent=0 // pred_check_branch
    %206 = sbr.rel (0) target = $region9
  $region8: #{alexnet_legacy_forward.8} parent=0 // pred_region
    _
  $region9: #{alexnet_legacy_forward.8} parent=0 // pred_fallthru
    _
  // Predicated region
  $region10: #{alexnet_legacy_forward.8} parent=0 // pred_check
    _
  $region11: #{alexnet_legacy_forward.8} parent=0 // pred_check_branch
    %208 = sbr.rel (0) target = $region13
  $region12: #{alexnet_legacy_forward.8} parent=0 // pred_region
    _
  $region13: #{alexnet_legacy_forward.8} parent=0 // pred_fallthru
    _

// kernel: alexnet_legacy_forward.9
$region0: #{alexnet_legacy_forward.9}
  #allocation0 [shape = 'u32[]', space=smem, size = 0x4, offset = 0x4, fixed_abs, tag = 'smem constant byte address 0x4 - core index']
  #allocation1 [shape = 'u32[144,128]{1,0:T(1,128)}', space=vmem, size = 0x12000, scoped, tag = 'internal scratch']
  %s0 = inlined_call_operand.vmem [shape: bf16[16,256], index: 0, kind: input, shape index: {}]
  %s1 = inlined_call_operand.vmem [shape: bf16[256,640], index: 1, kind: input, shape index: {}]
  %s2 = inlined_call_operand.vmem [shape: f32[16,1], index: 2, kind: input, shape index: {}]
  %s3 = inlined_call_operand.vmem [shape: f32[16,1], index: 3, kind: input, shape index: {}]
  %s4 = inlined_call_operand.vmem [shape: f32[16,640], index: 4, kind: output, shape index: {}]
  %s5 = sld [smem:[#allocation0]]
  $region26: #{alexnet_legacy_forward.9} parent=0
    _
  %s7 = ssub.s32 1, %s5
  %s8 = scalar_select 0, %s7, %s5
  // Predicated region
  $region2: #{alexnet_legacy_forward.9} parent=0 // pred_check
    _
  $region3: #{alexnet_legacy_forward.9} parent=0 // pred_check_branch
    %10 = sbr.rel (0) target = $region5
  $region4: #{alexnet_legacy_forward.9} parent=0 // pred_region
    _
  $region5: #{alexnet_legacy_forward.9} parent=0 // pred_fallthru
    _
  // Predicated region
  $region6: #{alexnet_legacy_forward.9} parent=0 // pred_check
    _
  $region7: #{alexnet_legacy_forward.9} parent=0 // pred_check_branch
    %12 = sbr.rel (0) target = $region9
  $region8: #{alexnet_legacy_forward.9} parent=0 // pred_region
    _
  $region9: #{alexnet_legacy_forward.9} parent=0 // pred_fallthru
    _
  // Predicated region
  $region10: #{alexnet_legacy_forward.9} parent=0 // pred_check
    _
  $region11: #{alexnet_legacy_forward.9} parent=0 // pred_check_branch
    %14 = sbr.rel (0) target = $region13
  $region12: #{alexnet_legacy_forward.9} parent=0 // pred_region
    _
  $region13: #{alexnet_legacy_forward.9} parent=0 // pred_fallthru
    _
  // Predicated region
  $region14: #{alexnet_legacy_forward.9} parent=0 // pred_check
    _
  $region15: #{alexnet_legacy_forward.9} parent=0 // pred_check_branch
    %16 = sbr.rel (0) target = $region17
  $region16: #{alexnet_legacy_forward.9} parent=0 // pred_region
    _
  $region17: #{alexnet_legacy_forward.9} parent=0 // pred_fallthru
    _
  %v18 = vld [vmem:[%s0] sm:$0xff]
  %v19 = vld [vmem:[%s0 + $0x8] sm:$0xff]
  %v20 = vld [vmem:[%s1] sm:$0xff]
  %v21 = vld [vmem:[%s1 + $0x8] sm:$0xff]
  %v22 = vld [vmem:[%s1 + $0x10] sm:$0xf]
  %v23 = vld [vmem:[%s1 + $0x14] sm:$0xff]
  %v24 = vld [vmem:[%s1 + $0x1c] sm:$0xff]
  %v25 = vld [vmem:[%s1 + $0x24] sm:$0xf]
  %v26 = vld [vmem:[%s1 + $0x28] sm:$0xff]
  %v27 = vld [vmem:[%s1 + $0x30] sm:$0xff]
  %v28 = vld [vmem:[%s1 + $0x38] sm:$0xf]
  %v29 = vld [vmem:[%s1 + $0x3c] sm:$0xff]
  %v30 = vld [vmem:[%s1 + $0x44] sm:$0xff]
  %v31 = vld [vmem:[%s1 + $0x4c] sm:$0xf]
  %v32 = vld [vmem:[%s1 + $0x50] sm:$0xff]
  %v33 = vld [vmem:[%s1 + $0x58] sm:$0xff]
  %v34 = vld [vmem:[%s1 + $0x60] sm:$0xf]
  %v35 = vld [vmem:[%s1 + $0x64] sm:$0xff]
  %v36 = vld [vmem:[%s1 + $0x6c] sm:$0xff]
  %v37 = vld [vmem:[%s1 + $0x74] sm:$0xf]
  %v38 = vld [vmem:[%s1 + $0x78] sm:$0xff]
  %v39 = vld [vmem:[%s1 + $0x80] sm:$0xff]
  %v40 = vld [vmem:[%s1 + $0x88] sm:$0xf]
  %v41 = vld [vmem:[%s1 + $0x8c] sm:$0xff]
  %v42 = vld [vmem:[%s1 + $0x94] sm:$0xff]
  %v43 = vld [vmem:[%s1 + $0x9c] sm:$0xf]
  %v44 = vld [vmem:[%s1 + $0xa0] sm:$0xff]
  %v45 = vld [vmem:[%s1 + $0xa8] sm:$0xff]
  %v46 = vld [vmem:[%s1 + $0xb0] sm:$0xf]
  %v47 = vld [vmem:[%s1 + $0xb4] sm:$0xff]
  %v48 = vld [vmem:[%s1 + $0xbc] sm:$0xff]
  %v49 = vld [vmem:[%s1 + $0xc4] sm:$0xf]
  %v50 = vld [vmem:[%s1 + $0xc8] sm:$0xff]
  %v51 = vld [vmem:[%s1 + $0xd0] sm:$0xff]
  %v52 = vld [vmem:[%s1 + $0xd8] sm:$0xf]
  %v53 = vld [vmem:[%s1 + $0xdc] sm:$0xff]
  %v54 = vld [vmem:[%s1 + $0xe4] sm:$0xff]
  %v55 = vld [vmem:[%s1 + $0xec] sm:$0xf]
  %v56 = vld [vmem:[%s1 + $0xf0] sm:$0xff]
  %v57 = vld [vmem:[%s1 + $0xf8] sm:$0xff]
  %v58 = vld [vmem:[%s1 + $0x100] sm:$0xf]
  %v59 = vld [vmem:[%s1 + $0x104] sm:$0xff]
  %v60 = vld [vmem:[%s1 + $0x10c] sm:$0xff]
  %v61 = vld [vmem:[%s1 + $0x114] sm:$0xf]
  %v62 = vld [vmem:[%s1 + $0x118] sm:$0xff]
  %v63 = vld [vmem:[%s1 + $0x120] sm:$0xff]
  %v64 = vld [vmem:[%s1 + $0x128] sm:$0xf]
  %v65 = vld [vmem:[%s1 + $0x12c] sm:$0xff]
  %v66 = vld [vmem:[%s1 + $0x134] sm:$0xff]
  %v67 = vld [vmem:[%s1 + $0x13c] sm:$0xf]
  %v68 = vld [vmem:[%s1 + $0x140] sm:$0xff]
  %v69 = vld [vmem:[%s1 + $0x148] sm:$0xff]
  %v70 = vld [vmem:[%s1 + $0x150] sm:$0xf]
  %v71 = vld [vmem:[%s1 + $0x154] sm:$0xff]
  %v72 = vld [vmem:[%s1 + $0x15c] sm:$0xff]
  %v73 = vld [vmem:[%s1 + $0x164] sm:$0xf]
  %v74 = vld [vmem:[%s1 + $0x168] sm:$0xff]
  %v75 = vld [vmem:[%s1 + $0x170] sm:$0xff]
  %v76 = vld [vmem:[%s1 + $0x178] sm:$0xf]
  %v77 = vld [vmem:[%s1 + $0x17c] sm:$0xff]
  %v78 = vld [vmem:[%s1 + $0x184] sm:$0xff]
  %v79 = vld [vmem:[%s1 + $0x18c] sm:$0xf]
  %v80 = vld [vmem:[%s1 + $0x190] sm:$0xff]
  %v81 = vld [vmem:[%s1 + $0x198] sm:$0xff]
  %v82 = vld [vmem:[%s1 + $0x1a0] sm:$0xf]
  %v83 = vld [vmem:[%s1 + $0x1a4] sm:$0xff]
  %v84 = vld [vmem:[%s1 + $0x1ac] sm:$0xff]
  %v85 = vld [vmem:[%s1 + $0x1b4] sm:$0xf]
  %v86 = vld [vmem:[%s1 + $0x1b8] sm:$0xff]
  %v87 = vld [vmem:[%s1 + $0x1c0] sm:$0xff]
  %v88 = vld [vmem:[%s1 + $0x1c8] sm:$0xf]
  %v89 = vld [vmem:[%s1 + $0x1cc] sm:$0xff]
  %v90 = vld [vmem:[%s1 + $0x1d4] sm:$0xff]
  %v91 = vld [vmem:[%s1 + $0x1dc] sm:$0xf]
  %v92 = vld [vmem:[%s1 + $0x1e0] sm:$0xff]
  %v93 = vld [vmem:[%s1 + $0x1e8] sm:$0xff]
  %v94 = vld [vmem:[%s1 + $0x1f0] sm:$0xf]
  %v95 = vld [vmem:[%s1 + $0x1f4] sm:$0xff]
  %v96 = vld [vmem:[%s1 + $0x1fc] sm:$0xff]
  %v97 = vld [vmem:[%s1 + $0x204] sm:$0xf]
  %v98 = vld [vmem:[%s1 + $0x208] sm:$0xff]
  %v99 = vld [vmem:[%s1 + $0x210] sm:$0xff]
  %v100 = vld [vmem:[%s1 + $0x218] sm:$0xf]
  %v101 = vld [vmem:[%s1 + $0x21c] sm:$0xff]
  %v102 = vld [vmem:[%s1 + $0x224] sm:$0xff]
  %v103 = vld [vmem:[%s1 + $0x22c] sm:$0xf]
  %v104 = vld [vmem:[%s1 + $0x230] sm:$0xff]
  %v105 = vld [vmem:[%s1 + $0x238] sm:$0xff]
  %v106 = vld [vmem:[%s1 + $0x240] sm:$0xf]
  %v107 = vld [vmem:[%s1 + $0x244] sm:$0xff]
  %v108 = vld [vmem:[%s1 + $0x24c] sm:$0xff]
  %v109 = vld [vmem:[%s1 + $0x254] sm:$0xf]
  %v110 = vld [vmem:[%s1 + $0x258] sm:$0xff]
  %v111 = vld [vmem:[%s1 + $0x260] sm:$0xff]
  %v112 = vld [vmem:[%s1 + $0x268] sm:$0xf]
  %v113 = vld [vmem:[%s1 + $0x26c] sm:$0xff]
  %v114 = vld [vmem:[%s1 + $0x274] sm:$0xff]
  %v115 = vld [vmem:[%s1 + $0x27c] sm:$0xf]
  %v118 = vunpack.c.l.b16 %v18
  %v119 = vunpack.c.h.b16 %v18
  %v120 = vunpack.c.l.b16 %v19
  %v121 = vunpack.c.h.b16 %v19
  %v122 = vpack.c.b16 %v120, %v118
  %v123 = vpack.c.b16 %v121, %v119
  %v222 = vunpack.c.l.b16 %v20
  %v223 = vunpack.c.h.b16 %v20
  %v224 = vunpack.c.l.b16 %v21
  %v225 = vunpack.c.h.b16 %v21
  %v226 = vunpack.c.l.b16 %v22
  %v227 = vunpack.c.l.b16 %v23
  %v228 = vunpack.c.h.b16 %v23
  %v229 = vunpack.c.l.b16 %v24
  %v230 = vunpack.c.h.b16 %v24
  %v231 = vunpack.c.l.b16 %v25
  %v232 = vunpack.c.l.b16 %v26
  %v233 = vunpack.c.h.b16 %v26
  %v234 = vunpack.c.l.b16 %v27
  %v235 = vunpack.c.h.b16 %v27
  %v236 = vunpack.c.l.b16 %v28
  %v237 = vunpack.c.l.b16 %v29
  %v238 = vunpack.c.h.b16 %v29
  %v239 = vunpack.c.l.b16 %v30
  %v240 = vunpack.c.h.b16 %v30
  %v241 = vunpack.c.l.b16 %v31
  %v242 = vunpack.c.l.b16 %v32
  %v243 = vunpack.c.h.b16 %v32
  %v244 = vunpack.c.l.b16 %v33
  %v245 = vunpack.c.h.b16 %v33
  %v246 = vunpack.c.l.b16 %v34
  %v247 = vunpack.c.l.b16 %v35
  %v248 = vunpack.c.h.b16 %v35
  %v249 = vunpack.c.l.b16 %v36
  %v250 = vunpack.c.h.b16 %v36
  %v251 = vunpack.c.l.b16 %v37
  %v252 = vunpack.c.l.b16 %v38
  %v253 = vunpack.c.h.b16 %v38
  %v254 = vunpack.c.l.b16 %v39
  %v255 = vunpack.c.h.b16 %v39
  %v256 = vunpack.c.l.b16 %v40
  %v257 = vunpack.c.l.b16 %v41
  %v258 = vunpack.c.h.b16 %v41
  %v259 = vunpack.c.l.b16 %v42
  %v260 = vunpack.c.h.b16 %v42
  %v261 = vunpack.c.l.b16 %v43
  %v262 = vunpack.c.l.b16 %v44
  %v263 = vunpack.c.h.b16 %v44
  %v264 = vunpack.c.l.b16 %v45
  %v265 = vunpack.c.h.b16 %v45
  %v266 = vunpack.c.l.b16 %v46
  %v267 = vunpack.c.l.b16 %v47
  %v268 = vunpack.c.h.b16 %v47
  %v269 = vunpack.c.l.b16 %v48
  %v270 = vunpack.c.h.b16 %v48
  %v271 = vunpack.c.l.b16 %v49
  %v272 = vunpack.c.l.b16 %v50
  %v273 = vunpack.c.h.b16 %v50
  %v274 = vunpack.c.l.b16 %v51
  %v275 = vunpack.c.h.b16 %v51
  %v276 = vunpack.c.l.b16 %v52
  %v277 = vunpack.c.l.b16 %v53
  %v278 = vunpack.c.h.b16 %v53
  %v279 = vunpack.c.l.b16 %v54
  %v280 = vunpack.c.h.b16 %v54
  %v281 = vunpack.c.l.b16 %v55
  %v282 = vunpack.c.l.b16 %v56
  %v283 = vunpack.c.h.b16 %v56
  %v284 = vunpack.c.l.b16 %v57
  %v285 = vunpack.c.h.b16 %v57
  %v286 = vunpack.c.l.b16 %v58
  %v287 = vunpack.c.l.b16 %v59
  %v288 = vunpack.c.h.b16 %v59
  %v289 = vunpack.c.l.b16 %v60
  %v290 = vunpack.c.h.b16 %v60
  %v291 = vunpack.c.l.b16 %v61
  %v292 = vunpack.c.l.b16 %v62
  %v293 = vunpack.c.h.b16 %v62
  %v294 = vunpack.c.l.b16 %v63
  %v295 = vunpack.c.h.b16 %v63
  %v296 = vunpack.c.l.b16 %v64
  %v297 = vunpack.c.l.b16 %v65
  %v298 = vunpack.c.h.b16 %v65
  %v299 = vunpack.c.l.b16 %v66
  %v300 = vunpack.c.h.b16 %v66
  %v301 = vunpack.c.l.b16 %v67
  %v302 = vunpack.c.l.b16 %v68
  %v303 = vunpack.c.h.b16 %v68
  %v304 = vunpack.c.l.b16 %v69
  %v305 = vunpack.c.h.b16 %v69
  %v306 = vunpack.c.l.b16 %v70
  %v307 = vunpack.c.l.b16 %v71
  %v308 = vunpack.c.h.b16 %v71
  %v309 = vunpack.c.l.b16 %v72
  %v310 = vunpack.c.h.b16 %v72
  %v311 = vunpack.c.l.b16 %v73
  %v312 = vunpack.c.l.b16 %v74
  %v313 = vunpack.c.h.b16 %v74
  %v314 = vunpack.c.l.b16 %v75
  %v315 = vunpack.c.h.b16 %v75
  %v316 = vunpack.c.l.b16 %v76
  %v317 = vunpack.c.l.b16 %v77
  %v318 = vunpack.c.h.b16 %v77
  %v319 = vunpack.c.l.b16 %v78
  %v320 = vunpack.c.h.b16 %v78
  %v321 = vunpack.c.l.b16 %v79
  %v322 = vunpack.c.l.b16 %v80
  %v323 = vunpack.c.h.b16 %v80
  %v324 = vunpack.c.l.b16 %v81
  %v325 = vunpack.c.h.b16 %v81
  %v326 = vunpack.c.l.b16 %v82
  %v327 = vunpack.c.l.b16 %v83
  %v328 = vunpack.c.h.b16 %v83
  %v329 = vunpack.c.l.b16 %v84
  %v330 = vunpack.c.h.b16 %v84
  %v331 = vunpack.c.l.b16 %v85
  %v332 = vunpack.c.l.b16 %v86
  %v333 = vunpack.c.h.b16 %v86
  %v334 = vunpack.c.l.b16 %v87
  %v335 = vunpack.c.h.b16 %v87
  %v336 = vunpack.c.l.b16 %v88
  %v337 = vunpack.c.l.b16 %v89
  %v338 = vunpack.c.h.b16 %v89
  %v339 = vunpack.c.l.b16 %v90
  %v340 = vunpack.c.h.b16 %v90
  %v341 = vunpack.c.l.b16 %v91
  %v342 = vunpack.c.l.b16 %v92
  %v343 = vunpack.c.h.b16 %v92
  %v344 = vunpack.c.l.b16 %v93
  %v345 = vunpack.c.h.b16 %v93
  %v346 = vunpack.c.l.b16 %v94
  %v347 = vunpack.c.l.b16 %v95
  %v348 = vunpack.c.h.b16 %v95
  %v349 = vunpack.c.l.b16 %v96
  %v350 = vunpack.c.h.b16 %v96
  %v351 = vunpack.c.l.b16 %v97
  %v352 = vunpack.c.l.b16 %v98
  %v353 = vunpack.c.h.b16 %v98
  %v354 = vunpack.c.l.b16 %v99
  %v355 = vunpack.c.h.b16 %v99
  %v356 = vunpack.c.l.b16 %v100
  %v357 = vunpack.c.l.b16 %v101
  %v358 = vunpack.c.h.b16 %v101
  %v359 = vunpack.c.l.b16 %v102
  %v360 = vunpack.c.h.b16 %v102
  %v361 = vunpack.c.l.b16 %v103
  %v362 = vunpack.c.l.b16 %v104
  %v363 = vunpack.c.h.b16 %v104
  %v364 = vunpack.c.l.b16 %v105
  %v365 = vunpack.c.h.b16 %v105
  %v366 = vunpack.c.l.b16 %v106
  %v367 = vunpack.c.l.b16 %v107
  %v368 = vunpack.c.h.b16 %v107
  %v369 = vunpack.c.l.b16 %v108
  %v370 = vunpack.c.h.b16 %v108
  %v371 = vunpack.c.l.b16 %v109
  %v372 = vunpack.c.l.b16 %v110
  %v373 = vunpack.c.h.b16 %v110
  %v374 = vunpack.c.l.b16 %v111
  %v375 = vunpack.c.h.b16 %v111
  %v376 = vunpack.c.l.b16 %v112
  %v377 = vunpack.c.l.b16 %v113
  %v378 = vunpack.c.h.b16 %v113
  %v379 = vunpack.c.l.b16 %v114
  %v380 = vunpack.c.h.b16 %v114
  %v381 = vunpack.c.l.b16 %v115
  %v382 = vpack.c.b16 %v227, %v222
  %v383 = vpack.c.b16 %v228, %v223
  %v384 = vpack.c.b16 %v229, %v224
  %v385 = vpack.c.b16 %v230, %v225
  %v386 = vpack.c.b16 %v231, %v226
  %v387 = vpack.c.b16 %v237, %v232
  %v388 = vpack.c.b16 %v238, %v233
  %v389 = vpack.c.b16 %v239, %v234
  %v390 = vpack.c.b16 %v240, %v235
  %v391 = vpack.c.b16 %v241, %v236
  %v392 = vpack.c.b16 %v247, %v242
  %v393 = vpack.c.b16 %v248, %v243
  %v394 = vpack.c.b16 %v249, %v244
  %v395 = vpack.c.b16 %v250, %v245
  %v396 = vpack.c.b16 %v251, %v246
  %v397 = vpack.c.b16 %v257, %v252
  %v398 = vpack.c.b16 %v258, %v253
  %v399 = vpack.c.b16 %v259, %v254
  %v400 = vpack.c.b16 %v260, %v255
  %v401 = vpack.c.b16 %v261, %v256
  %v402 = vpack.c.b16 %v267, %v262
  %v403 = vpack.c.b16 %v268, %v263
  %v404 = vpack.c.b16 %v269, %v264
  %v405 = vpack.c.b16 %v270, %v265
  %v406 = vpack.c.b16 %v271, %v266
  %v407 = vpack.c.b16 %v277, %v272
  %v408 = vpack.c.b16 %v278, %v273
  %v409 = vpack.c.b16 %v279, %v274
  %v410 = vpack.c.b16 %v280, %v275
  %v411 = vpack.c.b16 %v281, %v276
  %v412 = vpack.c.b16 %v287, %v282
  %v413 = vpack.c.b16 %v288, %v283
  %v414 = vpack.c.b16 %v289, %v284
  %v415 = vpack.c.b16 %v290, %v285
  %v416 = vpack.c.b16 %v291, %v286
  %v417 = vpack.c.b16 %v297, %v292
  %v418 = vpack.c.b16 %v298, %v293
  %v419 = vpack.c.b16 %v299, %v294
  %v420 = vpack.c.b16 %v300, %v295
  %v421 = vpack.c.b16 %v301, %v296
  %v422 = vpack.c.b16 %v307, %v302
  %v423 = vpack.c.b16 %v308, %v303
  %v424 = vpack.c.b16 %v309, %v304
  %v425 = vpack.c.b16 %v310, %v305
  %v426 = vpack.c.b16 %v311, %v306
  %v427 = vpack.c.b16 %v317, %v312
  %v428 = vpack.c.b16 %v318, %v313
  %v429 = vpack.c.b16 %v319, %v314
  %v430 = vpack.c.b16 %v320, %v315
  %v431 = vpack.c.b16 %v321, %v316
  %v432 = vpack.c.b16 %v327, %v322
  %v433 = vpack.c.b16 %v328, %v323
  %v434 = vpack.c.b16 %v329, %v324
  %v435 = vpack.c.b16 %v330, %v325
  %v436 = vpack.c.b16 %v331, %v326
  %v437 = vpack.c.b16 %v337, %v332
  %v438 = vpack.c.b16 %v338, %v333
  %v439 = vpack.c.b16 %v339, %v334
  %v440 = vpack.c.b16 %v340, %v335
  %v441 = vpack.c.b16 %v341, %v336
  %v442 = vpack.c.b16 %v347, %v342
  %v443 = vpack.c.b16 %v348, %v343
  %v444 = vpack.c.b16 %v349, %v344
  %v445 = vpack.c.b16 %v350, %v345
  %v446 = vpack.c.b16 %v351, %v346
  %v447 = vpack.c.b16 %v357, %v352
  %v448 = vpack.c.b16 %v358, %v353
  %v449 = vpack.c.b16 %v359, %v354
  %v450 = vpack.c.b16 %v360, %v355
  %v451 = vpack.c.b16 %v361, %v356
  %v452 = vpack.c.b16 %v367, %v362
  %v453 = vpack.c.b16 %v368, %v363
  %v454 = vpack.c.b16 %v369, %v364
  %v455 = vpack.c.b16 %v370, %v365
  %v456 = vpack.c.b16 %v371, %v366
  %v457 = vpack.c.b16 %v377, %v372
  %v458 = vpack.c.b16 %v378, %v373
  %v459 = vpack.c.b16 %v379, %v374
  %v460 = vpack.c.b16 %v380, %v375
  %v461 = vpack.c.b16 %v381, %v376
  %542 = vmatprep.subr.bf16.mxu0 %v383
  %543 = vmatpush1.bf16.msra.mxu0 %v382
  %544 = vmatprep.subr.bf16.mxu0 %v388
  %545 = vmatpush1.bf16.msra.mxu0 %v387
  %546 = vmatprep.subr.bf16.mxu0 %v393
  %547 = vmatpush1.bf16.msra.mxu0 %v392
  %548 = vmatprep.subr.bf16.mxu0 %v398
  %549 = vmatpush1.bf16.msra.mxu0 %v397
  %550 = vmatprep.subr.bf16.mxu0 %v403
  %551 = vmatpush1.bf16.msra.mxu0 %v402
  %552 = vmatprep.subr.bf16.mxu0 %v408
  %553 = vmatpush1.bf16.msra.mxu0 %v407
  %554 = vmatprep.subr.bf16.mxu0 %v413
  %555 = vmatpush1.bf16.msra.mxu0 %v412
  %556 = vmatprep.subr.bf16.mxu0 %v418
  %557 = vmatpush1.bf16.msra.mxu0 %v417
  %558 = vmatprep.subr.bf16.mxu0 %v423
  %559 = vmatpush1.bf16.msra.mxu0 %v422
  %560 = vmatprep.subr.bf16.mxu0 %v428
  %561 = vmatpush1.bf16.msra.mxu0 %v427
  %562 = vmatprep.subr.bf16.mxu0 %v433
  %563 = vmatpush1.bf16.msra.mxu0 %v432
  %564 = vmatprep.subr.bf16.mxu0 %v438
  %565 = vmatpush1.bf16.msra.mxu0 %v437
  %566 = vmatprep.subr.bf16.mxu0 %v443
  %567 = vmatpush1.bf16.msra.mxu0 %v442
  %568 = vmatprep.subr.bf16.mxu0 %v448
  %569 = vmatpush1.bf16.msra.mxu0 %v447
  %570 = vmatprep.subr.bf16.mxu0 %v453
  %571 = vmatpush1.bf16.msra.mxu0 %v452
  %572 = vmatprep.subr.bf16.mxu0 %v458
  %573 = vmatpush1.bf16.msra.mxu0 %v457
  %574 = vmatprep.mubr.bf16.mxu0 %v123
  %575 = vmatmul.mubr.bf16.gmra.mrb[0].mxu0 %v122
  %v576 = vpop.f32.mrb[0].mxu0
  %v577 = vadd.f32 0.0, %v576
  %v578 = vpop.f32.mrb[0].mxu0
  %v579 = vadd.f32 0.0, %v578
  %v580 = vpop.f32.mrb[0].mxu0
  %v581 = vadd.f32 0.0, %v580
  %v582 = vpop.f32.mrb[0].mxu0
  %v583 = vadd.f32 0.0, %v582
  %584 = vdwg.mxu0
  %585 = vmatprep.subr.bf16.mxu0 %v385
  %586 = vmatpush1.bf16.msra.mxu0 %v384
  %587 = vmatprep.subr.bf16.mxu0 %v390
  %588 = vmatpush1.bf16.msra.mxu0 %v389
  %589 = vmatprep.subr.bf16.mxu0 %v395
  %590 = vmatpush1.bf16.msra.mxu0 %v394
  %591 = vmatprep.subr.bf16.mxu0 %v400
  %592 = vmatpush1.bf16.msra.mxu0 %v399
  %593 = vmatprep.subr.bf16.mxu0 %v405
  %594 = vmatpush1.bf16.msra.mxu0 %v404
  %595 = vmatprep.subr.bf16.mxu0 %v410
  %596 = vmatpush1.bf16.msra.mxu0 %v409
  %597 = vmatprep.subr.bf16.mxu0 %v415
  %598 = vmatpush1.bf16.msra.mxu0 %v414
  %599 = vmatprep.subr.bf16.mxu0 %v420
  %600 = vmatpush1.bf16.msra.mxu0 %v419
  %601 = vmatprep.subr.bf16.mxu0 %v425
  %602 = vmatpush1.bf16.msra.mxu0 %v424
  %603 = vmatprep.subr.bf16.mxu0 %v430
  %604 = vmatpush1.bf16.msra.mxu0 %v429
  %605 = vmatprep.subr.bf16.mxu0 %v435
  %606 = vmatpush1.bf16.msra.mxu0 %v434
  %607 = vmatprep.subr.bf16.mxu0 %v440
  %608 = vmatpush1.bf16.msra.mxu0 %v439
  %609 = vmatprep.subr.bf16.mxu0 %v445
  %610 = vmatpush1.bf16.msra.mxu0 %v444
  %611 = vmatprep.subr.bf16.mxu0 %v450
  %612 = vmatpush1.bf16.msra.mxu0 %v449
  %613 = vmatprep.subr.bf16.mxu0 %v455
  %614 = vmatpush1.bf16.msra.mxu0 %v454
  %615 = vmatprep.subr.bf16.mxu0 %v460
  %616 = vmatpush1.bf16.msra.mxu0 %v459
  %617 = vmatprep.mubr.bf16.mxu0 %v123
  %618 = vmatmul.mubr.bf16.gmra.mrb[0].mxu0 %v122
  %v619 = vpop.f32.mrb[0].mxu0
  %v620 = vadd.f32 0.0, %v619
  %v621 = vpop.f32.mrb[0].mxu0
  %v622 = vadd.f32 0.0, %v621
  %v623 = vpop.f32.mrb[0].mxu0
  %v624 = vadd.f32 0.0, %v623
  %v625 = vpop.f32.mrb[0].mxu0
  %v626 = vadd.f32 0.0, %v625
  %627 = vdwg.mxu0
  %628 = vmatprep.subr.bf16.mxu0 0
  %629 = vmatpush1.bf16.msra.mxu0 %v386
  %630 = vmatprep.subr.bf16.mxu0 0
  %631 = vmatpush1.bf16.msra.mxu0 %v391
  %632 = vmatprep.subr.bf16.mxu0 0
  %633 = vmatpush1.bf16.msra.mxu0 %v396
  %634 = vmatprep.subr.bf16.mxu0 0
  %635 = vmatpush1.bf16.msra.mxu0 %v401
  %636 = vmatprep.subr.bf16.mxu0 0
  %637 = vmatpush1.bf16.msra.mxu0 %v406
  %638 = vmatprep.subr.bf16.mxu0 0
  %639 = vmatpush1.bf16.msra.mxu0 %v411
  %640 = vmatprep.subr.bf16.mxu0 0
  %641 = vmatpush1.bf16.msra.mxu0 %v416
  %642 = vmatprep.subr.bf16.mxu0 0
  %643 = vmatpush1.bf16.msra.mxu0 %v421
  %644 = vmatprep.subr.bf16.mxu0 0
  %645 = vmatpush1.bf16.msra.mxu0 %v426
  %646 = vmatprep.subr.bf16.mxu0 0
  %647 = vmatpush1.bf16.msra.mxu0 %v431
  %648 = vmatprep.subr.bf16.mxu0 0
  %649 = vmatpush1.bf16.msra.mxu0 %v436
  %650 = vmatprep.subr.bf16.mxu0 0
  %651 = vmatpush1.bf16.msra.mxu0 %v441
  %652 = vmatprep.subr.bf16.mxu0 0
  %653 = vmatpush1.bf16.msra.mxu0 %v446
  %654 = vmatprep.subr.bf16.mxu0 0
  %655 = vmatpush1.bf16.msra.mxu0 %v451
  %656 = vmatprep.subr.bf16.mxu0 0
  %657 = vmatpush1.bf16.msra.mxu0 %v456
  %658 = vmatprep.subr.bf16.mxu0 0
  %659 = vmatpush1.bf16.msra.mxu0 %v461
  %660 = vmatprep.mubr.bf16.mxu0 %v123
  %661 = vmatmul.mubr.bf16.gmra.mrb[0].mxu0 %v122
  %v662 = vpop.f32.mrb[0].mxu0
  %v663 = vadd.f32 0.0, %v662
  %v664 = vpop.f32.mrb[0].mxu0
  %v665 = vpop.f32.mrb[0].mxu0
  %v666 = vadd.f32 0.0, %v665
  %v667 = vpop.f32.mrb[0].mxu0
  %668 = vdwg.mxu0
  %v669 = vld [vmem:[%s2] sm:$0xff]
  %v670 = vld [vmem:[%s2 + $0x8] sm:$0xff]
  %672 = vset.pattern.permute.xlu0 0
  %673 = vperm.xlu0 %672, %v669
  %v674 = vpop.permute.xlu0 %673
  %677 = vset.pattern.permute.xlu0 0
  %678 = vperm.xlu0 %677, %v670
  %v679 = vpop.permute.xlu0 %678
  %v681 = vmul.f32 %v577, %v674
  %v682 = vmul.f32 %v579, %v674
  %v683 = vmul.f32 %v620, %v674
  %v684 = vmul.f32 %v622, %v674
  %v685 = vmul.f32 %v663, %v674
  %v686 = vmul.f32 %v581, %v679
  %v687 = vmul.f32 %v583, %v679
  %v688 = vmul.f32 %v624, %v679
  %v689 = vmul.f32 %v626, %v679
  %v690 = vmul.f32 %v666, %v679
  %v691 = vld [vmem:[%s3] sm:$0xff]
  %v692 = vld [vmem:[%s3 + $0x8] sm:$0xff]
  %694 = vset.pattern.permute.xlu0 0
  %695 = vperm.xlu0 %694, %v691
  %v696 = vpop.permute.xlu0 %695
  %699 = vset.pattern.permute.xlu0 0
  %700 = vperm.xlu0 %699, %v692
  %v701 = vpop.permute.xlu0 %700
  %v703 = vadd.f32 %v681, %v696
  %v704 = vadd.f32 %v682, %v696
  %v705 = vadd.f32 %v683, %v696
  %v706 = vadd.f32 %v684, %v696
  %v707 = vadd.f32 %v685, %v696
  %v708 = vadd.f32 %v686, %v701
  %v709 = vadd.f32 %v687, %v701
  %v710 = vadd.f32 %v688, %v701
  %v711 = vadd.f32 %v689, %v701
  %v712 = vadd.f32 %v690, %v701
  %713 = vst [vmem:[%s4] sm:$0xff] %v703
  %714 = vst [vmem:[%s4 + $0x8] sm:$0xff] %v704
  %715 = vst [vmem:[%s4 + $0x10] sm:$0xff] %v705
  %716 = vst [vmem:[%s4 + $0x18] sm:$0xff] %v706
  %717 = vst [vmem:[%s4 + $0x20] sm:$0xff] %v707
  %718 = vst [vmem:[%s4 + $0x28] sm:$0xff] %v708
  %719 = vst [vmem:[%s4 + $0x30] sm:$0xff] %v709
  %720 = vst [vmem:[%s4 + $0x38] sm:$0xff] %v710
  %721 = vst [vmem:[%s4 + $0x40] sm:$0xff] %v711
  %722 = vst [vmem:[%s4 + $0x48] sm:$0xff] %v712
  // Predicated region
  $region18: #{alexnet_legacy_forward.9} parent=0 // pred_check
    _
  $region19: #{alexnet_legacy_forward.9} parent=0 // pred_check_branch
    %724 = sbr.rel (0) target = $region21
  $region20: #{alexnet_legacy_forward.9} parent=0 // pred_region
    _
  $region21: #{alexnet_legacy_forward.9} parent=0 // pred_fallthru
    _
  // Predicated region
  $region22: #{alexnet_legacy_forward.9} parent=0 // pred_check
    _
  $region23: #{alexnet_legacy_forward.9} parent=0 // pred_check_branch
    %726 = sbr.rel (0) target = $region25
  $region24: #{alexnet_legacy_forward.9} parent=0 // pred_region
    _
  $region25: #{alexnet_legacy_forward.9} parent=0 // pred_fallthru
    _

// kernel: alexnet_legacy_forward.10
$region0: #{alexnet_legacy_forward.10}
  #allocation0 [shape = 'u32[]', space=smem, size = 0x4, offset = 0x4, fixed_abs, tag = 'smem constant byte address 0x4 - core index']
  #allocation1 [shape = 'u32[144,128]{1,0:T(1,128)}', space=vmem, size = 0x12000, scoped, tag = 'internal scratch']
  %s0 = inlined_call_operand.vmem [shape: f32[9,16,128], index: 0, kind: input, shape index: {}]
  %s1 = inlined_call_operand.vmem [shape: f32[16,128], index: 1, kind: output, shape index: {}]
  %s2 = sld [smem:[#allocation0]]
  $region14: #{alexnet_legacy_forward.10} parent=0
    _
  %s4 = ssub.s32 1, %s2
  %s5 = scalar_select 0, %s4, %s2
  // Predicated region
  $region2: #{alexnet_legacy_forward.10} parent=0 // pred_check
    _
  $region3: #{alexnet_legacy_forward.10} parent=0 // pred_check_branch
    %7 = sbr.rel (0) target = $region5
  $region4: #{alexnet_legacy_forward.10} parent=0 // pred_region
    _
  $region5: #{alexnet_legacy_forward.10} parent=0 // pred_fallthru
    _
  %v8 = vld [vmem:[%s0] sm:$0xff]
  %v9 = vld [vmem:[%s0 + $0x8] sm:$0xff]
  %v10 = vld [vmem:[%s0 + $0x10] sm:$0xff]
  %v11 = vld [vmem:[%s0 + $0x18] sm:$0xff]
  %v12 = vld [vmem:[%s0 + $0x20] sm:$0xff]
  %v13 = vld [vmem:[%s0 + $0x28] sm:$0xff]
  %v14 = vld [vmem:[%s0 + $0x30] sm:$0xff]
  %v15 = vld [vmem:[%s0 + $0x38] sm:$0xff]
  %v16 = vld [vmem:[%s0 + $0x40] sm:$0xff]
  %v17 = vld [vmem:[%s0 + $0x48] sm:$0xff]
  %v18 = vld [vmem:[%s0 + $0x50] sm:$0xff]
  %v19 = vld [vmem:[%s0 + $0x58] sm:$0xff]
  %v20 = vld [vmem:[%s0 + $0x60] sm:$0xff]
  %v21 = vld [vmem:[%s0 + $0x68] sm:$0xff]
  %v22 = vld [vmem:[%s0 + $0x70] sm:$0xff]
  %v23 = vld [vmem:[%s0 + $0x78] sm:$0xff]
  %v24 = vld [vmem:[%s0 + $0x80] sm:$0xff]
  %v25 = vld [vmem:[%s0 + $0x88] sm:$0xff]
  %v26 = vmax.f32 %v8, %v12
  %v27 = vmax.f32 %v10, %v14
  %v28 = vmax.f32 %v26, %v16
  %v29 = vmax.f32 %v27, %v18
  %v30 = vmax.f32 %v28, %v20
  %v31 = vmax.f32 %v29, %v22
  %v32 = vmax.f32 %v30, %v24
  %v33 = vmax.f32 %v32, %v31
  %v34 = vmax.f32 %v9, %v13
  %v35 = vmax.f32 %v11, %v15
  %v36 = vmax.f32 %v34, %v17
  %v37 = vmax.f32 %v35, %v19
  %v38 = vmax.f32 %v36, %v21
  %v39 = vmax.f32 %v37, %v23
  %v40 = vmax.f32 %v38, %v25
  %v41 = vmax.f32 %v40, %v39
  %v42 = vmax.f32 %v33, 0.0
  %v43 = vmax.f32 %v41, 0.0
  %44 = vst [vmem:[%s1] sm:$0xff] %v42
  %45 = vst [vmem:[%s1 + $0x8] sm:$0xff] %v43
  // Predicated region
  $region6: #{alexnet_legacy_forward.10} parent=0 // pred_check
    _
  $region7: #{alexnet_legacy_forward.10} parent=0 // pred_check_branch
    %47 = sbr.rel (0) target = $region9
  $region8: #{alexnet_legacy_forward.10} parent=0 // pred_region
    _
  $region9: #{alexnet_legacy_forward.10} parent=0 // pred_fallthru
    _
  // Predicated region
  $region10: #{alexnet_legacy_forward.10} parent=0 // pred_check
    _
  $region11: #{alexnet_legacy_forward.10} parent=0 // pred_check_branch
    %49 = sbr.rel (0) target = $region13
  $region12: #{alexnet_legacy_forward.10} parent=0 // pred_region
    _
  $region13: #{alexnet_legacy_forward.10} parent=0 // pred_fallthru
    _

// kernel: alexnet_legacy_forward.11
$region0: #{alexnet_legacy_forward.11}
  #allocation0 [shape = 'u32[]', space=smem, size = 0x4, offset = 0x4, fixed_abs, tag = 'smem constant byte address 0x4 - core index']
  #allocation1 [shape = 'u32[144,128]{1,0:T(1,128)}', space=vmem, size = 0x12000, scoped, tag = 'internal scratch']
  %s0 = inlined_call_operand.vmem [shape: bf16[24,256], index: 0, kind: input, shape index: {}]
  %s1 = inlined_call_operand.vmem [shape: bf16[256,128], index: 1, kind: input, shape index: {}]
  %s2 = inlined_call_operand.vmem [shape: f32[24,1], index: 2, kind: input, shape index: {}]
  %s3 = inlined_call_operand.vmem [shape: f32[24,1], index: 3, kind: input, shape index: {}]
  %s4 = inlined_call_operand.vmem [shape: f32[24,128], index: 4, kind: output, shape index: {}]
  %s5 = sld [smem:[#allocation0]]
  $region26: #{alexnet_legacy_forward.11} parent=0
    _
  %s7 = ssub.s32 1, %s5
  %s8 = scalar_select 0, %s7, %s5
  // Predicated region
  $region2: #{alexnet_legacy_forward.11} parent=0 // pred_check
    _
  $region3: #{alexnet_legacy_forward.11} parent=0 // pred_check_branch
    %10 = sbr.rel (0) target = $region5
  $region4: #{alexnet_legacy_forward.11} parent=0 // pred_region
    _
  $region5: #{alexnet_legacy_forward.11} parent=0 // pred_fallthru
    _
  // Predicated region
  $region6: #{alexnet_legacy_forward.11} parent=0 // pred_check
    _
  $region7: #{alexnet_legacy_forward.11} parent=0 // pred_check_branch
    %12 = sbr.rel (0) target = $region9
  $region8: #{alexnet_legacy_forward.11} parent=0 // pred_region
    _
  $region9: #{alexnet_legacy_forward.11} parent=0 // pred_fallthru
    _
  // Predicated region
  $region10: #{alexnet_legacy_forward.11} parent=0 // pred_check
    _
  $region11: #{alexnet_legacy_forward.11} parent=0 // pred_check_branch
    %14 = sbr.rel (0) target = $region13
  $region12: #{alexnet_legacy_forward.11} parent=0 // pred_region
    _
  $region13: #{alexnet_legacy_forward.11} parent=0 // pred_fallthru
    _
  // Predicated region
  $region14: #{alexnet_legacy_forward.11} parent=0 // pred_check
    _
  $region15: #{alexnet_legacy_forward.11} parent=0 // pred_check_branch
    %16 = sbr.rel (0) target = $region17
  $region16: #{alexnet_legacy_forward.11} parent=0 // pred_region
    _
  $region17: #{alexnet_legacy_forward.11} parent=0 // pred_fallthru
    _
  %v18 = vld [vmem:[%s0] sm:$0xff]
  %v19 = vld [vmem:[%s0 + $0x8] sm:$0xff]
  %v20 = vld [vmem:[%s0 + $0x10] sm:$0xff]
  %v21 = vld [vmem:[%s1] sm:$0xf]
  %v22 = vld [vmem:[%s1 + $0x4] sm:$0xf]
  %v23 = vld [vmem:[%s1 + $0x8] sm:$0xf]
  %v24 = vld [vmem:[%s1 + $0xc] sm:$0xf]
  %v25 = vld [vmem:[%s1 + $0x10] sm:$0xf]
  %v26 = vld [vmem:[%s1 + $0x14] sm:$0xf]
  %v27 = vld [vmem:[%s1 + $0x18] sm:$0xf]
  %v28 = vld [vmem:[%s1 + $0x1c] sm:$0xf]
  %v29 = vld [vmem:[%s1 + $0x20] sm:$0xf]
  %v30 = vld [vmem:[%s1 + $0x24] sm:$0xf]
  %v31 = vld [vmem:[%s1 + $0x28] sm:$0xf]
  %v32 = vld [vmem:[%s1 + $0x2c] sm:$0xf]
  %v33 = vld [vmem:[%s1 + $0x30] sm:$0xf]
  %v34 = vld [vmem:[%s1 + $0x34] sm:$0xf]
  %v35 = vld [vmem:[%s1 + $0x38] sm:$0xf]
  %v36 = vld [vmem:[%s1 + $0x3c] sm:$0xf]
  %v37 = vld [vmem:[%s1 + $0x40] sm:$0xf]
  %v38 = vld [vmem:[%s1 + $0x44] sm:$0xf]
  %v39 = vld [vmem:[%s1 + $0x48] sm:$0xf]
  %v40 = vld [vmem:[%s1 + $0x4c] sm:$0xf]
  %v41 = vld [vmem:[%s1 + $0x50] sm:$0xf]
  %v42 = vld [vmem:[%s1 + $0x54] sm:$0xf]
  %v43 = vld [vmem:[%s1 + $0x58] sm:$0xf]
  %v44 = vld [vmem:[%s1 + $0x5c] sm:$0xf]
  %v45 = vld [vmem:[%s1 + $0x60] sm:$0xf]
  %v46 = vld [vmem:[%s1 + $0x64] sm:$0xf]
  %v47 = vld [vmem:[%s1 + $0x68] sm:$0xf]
  %v48 = vld [vmem:[%s1 + $0x6c] sm:$0xf]
  %v49 = vld [vmem:[%s1 + $0x70] sm:$0xf]
  %v50 = vld [vmem:[%s1 + $0x74] sm:$0xf]
  %v51 = vld [vmem:[%s1 + $0x78] sm:$0xf]
  %v52 = vld [vmem:[%s1 + $0x7c] sm:$0xf]
  %v56 = vunpack.c.l.b16 %v18
  %v57 = vunpack.c.h.b16 %v18
  %v58 = vunpack.c.l.b16 %v19
  %v59 = vunpack.c.h.b16 %v19
  %v60 = vunpack.c.l.b16 %v20
  %v61 = vunpack.c.h.b16 %v20
  %v62 = vpack.c.b16 %v58, %v56
  %v63 = vpack.c.b16 %v59, %v57
  %v64 = vpack.c.b16 %v60, %v60
  %v65 = vpack.c.b16 %v61, %v61
  %v102 = vunpack.c.l.b16 %v21
  %v103 = vunpack.c.l.b16 %v22
  %v104 = vunpack.c.l.b16 %v23
  %v105 = vunpack.c.l.b16 %v24
  %v106 = vunpack.c.l.b16 %v25
  %v107 = vunpack.c.l.b16 %v26
  %v108 = vunpack.c.l.b16 %v27
  %v109 = vunpack.c.l.b16 %v28
  %v110 = vunpack.c.l.b16 %v29
  %v111 = vunpack.c.l.b16 %v30
  %v112 = vunpack.c.l.b16 %v31
  %v113 = vunpack.c.l.b16 %v32
  %v114 = vunpack.c.l.b16 %v33
  %v115 = vunpack.c.l.b16 %v34
  %v116 = vunpack.c.l.b16 %v35
  %v117 = vunpack.c.l.b16 %v36
  %v118 = vunpack.c.l.b16 %v37
  %v119 = vunpack.c.l.b16 %v38
  %v120 = vunpack.c.l.b16 %v39
  %v121 = vunpack.c.l.b16 %v40
  %v122 = vunpack.c.l.b16 %v41
  %v123 = vunpack.c.l.b16 %v42
  %v124 = vunpack.c.l.b16 %v43
  %v125 = vunpack.c.l.b16 %v44
  %v126 = vunpack.c.l.b16 %v45
  %v127 = vunpack.c.l.b16 %v46
  %v128 = vunpack.c.l.b16 %v47
  %v129 = vunpack.c.l.b16 %v48
  %v130 = vunpack.c.l.b16 %v49
  %v131 = vunpack.c.l.b16 %v50
  %v132 = vunpack.c.l.b16 %v51
  %v133 = vunpack.c.l.b16 %v52
  %v134 = vpack.c.b16 %v103, %v102
  %v135 = vpack.c.b16 %v105, %v104
  %v136 = vpack.c.b16 %v107, %v106
  %v137 = vpack.c.b16 %v109, %v108
  %v138 = vpack.c.b16 %v111, %v110
  %v139 = vpack.c.b16 %v113, %v112
  %v140 = vpack.c.b16 %v115, %v114
  %v141 = vpack.c.b16 %v117, %v116
  %v142 = vpack.c.b16 %v119, %v118
  %v143 = vpack.c.b16 %v121, %v120
  %v144 = vpack.c.b16 %v123, %v122
  %v145 = vpack.c.b16 %v125, %v124
  %v146 = vpack.c.b16 %v127, %v126
  %v147 = vpack.c.b16 %v129, %v128
  %v148 = vpack.c.b16 %v131, %v130
  %v149 = vpack.c.b16 %v133, %v132
  %166 = vmatprep.subr.bf16.mxu0 0
  %167 = vmatpush1.bf16.msra.mxu0 %v134
  %168 = vmatprep.subr.bf16.mxu0 0
  %169 = vmatpush1.bf16.msra.mxu0 %v135
  %170 = vmatprep.subr.bf16.mxu0 0
  %171 = vmatpush1.bf16.msra.mxu0 %v136
  %172 = vmatprep.subr.bf16.mxu0 0
  %173 = vmatpush1.bf16.msra.mxu0 %v137
  %174 = vmatprep.subr.bf16.mxu0 0
  %175 = vmatpush1.bf16.msra.mxu0 %v138
  %176 = vmatprep.subr.bf16.mxu0 0
  %177 = vmatpush1.bf16.msra.mxu0 %v139
  %178 = vmatprep.subr.bf16.mxu0 0
  %179 = vmatpush1.bf16.msra.mxu0 %v140
  %180 = vmatprep.subr.bf16.mxu0 0
  %181 = vmatpush1.bf16.msra.mxu0 %v141
  %182 = vmatprep.subr.bf16.mxu0 0
  %183 = vmatpush1.bf16.msra.mxu0 %v142
  %184 = vmatprep.subr.bf16.mxu0 0
  %185 = vmatpush1.bf16.msra.mxu0 %v143
  %186 = vmatprep.subr.bf16.mxu0 0
  %187 = vmatpush1.bf16.msra.mxu0 %v144
  %188 = vmatprep.subr.bf16.mxu0 0
  %189 = vmatpush1.bf16.msra.mxu0 %v145
  %190 = vmatprep.subr.bf16.mxu0 0
  %191 = vmatpush1.bf16.msra.mxu0 %v146
  %192 = vmatprep.subr.bf16.mxu0 0
  %193 = vmatpush1.bf16.msra.mxu0 %v147
  %194 = vmatprep.subr.bf16.mxu0 0
  %195 = vmatpush1.bf16.msra.mxu0 %v148
  %196 = vmatprep.subr.bf16.mxu0 0
  %197 = vmatpush1.bf16.msra.mxu0 %v149
  %198 = vmatprep.mubr.bf16.mxu0 %v63
  %199 = vmatmul.mubr.bf16.gmra.mrb[0].mxu0 %v62
  %v200 = vpop.f32.mrb[0].mxu0
  %v201 = vadd.f32 0.0, %v200
  %v202 = vpop.f32.mrb[0].mxu0
  %v203 = vpop.f32.mrb[0].mxu0
  %v204 = vadd.f32 0.0, %v203
  %v205 = vpop.f32.mrb[0].mxu0
  %206 = vmatprep.mubr.bf16.mxu0 %v65
  %207 = vmatmul.mubr.bf16.gmra.mrb[0].mxu0 %v64
  %v208 = vpop.f32.mrb[0].mxu0
  %v209 = vadd.f32 0.0, %v208
  %v210 = vpop.f32.mrb[0].mxu0
  %v211 = vpop.f32.mrb[0].mxu0
  %v212 = vpop.f32.mrb[0].mxu0
  %213 = vdwg.mxu0
  %v214 = vld [vmem:[%s2] sm:$0xff]
  %v215 = vld [vmem:[%s2 + $0x8] sm:$0xff]
  %v216 = vld [vmem:[%s2 + $0x10] sm:$0xff]
  %218 = vset.pattern.permute.xlu0 0
  %219 = vperm.xlu0 %218, %v214
  %v220 = vpop.permute.xlu0 %219
  %223 = vset.pattern.permute.xlu0 0
  %224 = vperm.xlu0 %223, %v215
  %v225 = vpop.permute.xlu0 %224
  %228 = vset.pattern.permute.xlu0 0
  %229 = vperm.xlu0 %228, %v216
  %v230 = vpop.permute.xlu0 %229
  %v232 = vmul.f32 %v201, %v220
  %v233 = vmul.f32 %v204, %v225
  %v234 = vmul.f32 %v209, %v230
  %v235 = vld [vmem:[%s3] sm:$0xff]
  %v236 = vld [vmem:[%s3 + $0x8] sm:$0xff]
  %v237 = vld [vmem:[%s3 + $0x10] sm:$0xff]
  %239 = vset.pattern.permute.xlu0 0
  %240 = vperm.xlu0 %239, %v235
  %v241 = vpop.permute.xlu0 %240
  %244 = vset.pattern.permute.xlu0 0
  %245 = vperm.xlu0 %244, %v236
  %v246 = vpop.permute.xlu0 %245
  %249 = vset.pattern.permute.xlu0 0
  %250 = vperm.xlu0 %249, %v237
  %v251 = vpop.permute.xlu0 %250
  %v253 = vadd.f32 %v232, %v241
  %v254 = vadd.f32 %v233, %v246
  %v255 = vadd.f32 %v234, %v251
  %v256 = vmax.f32 %v253, 0.0
  %v257 = vmax.f32 %v254, 0.0
  %v258 = vmax.f32 %v255, 0.0
  %259 = vst [vmem:[%s4] sm:$0xff] %v256
  %260 = vst [vmem:[%s4 + $0x8] sm:$0xff] %v257
  %261 = vst [vmem:[%s4 + $0x10] sm:$0xff] %v258
  // Predicated region
  $region18: #{alexnet_legacy_forward.11} parent=0 // pred_check
    _
  $region19: #{alexnet_legacy_forward.11} parent=0 // pred_check_branch
    %263 = sbr.rel (0) target = $region21
  $region20: #{alexnet_legacy_forward.11} parent=0 // pred_region
    _
  $region21: #{alexnet_legacy_forward.11} parent=0 // pred_fallthru
    _
  // Predicated region
  $region22: #{alexnet_legacy_forward.11} parent=0 // pred_check
    _
  $region23: #{alexnet_legacy_forward.11} parent=0 // pred_check_branch
    %265 = sbr.rel (0) target = $region25
  $region24: #{alexnet_legacy_forward.11} parent=0 // pred_region
    _
  $region25: #{alexnet_legacy_forward.11} parent=0 // pred_fallthru
    _

// kernel: alexnet_legacy_forward.13
$region0: #{alexnet_legacy_forward.13}
  #allocation0 [shape = 'u32[]', space=smem, size = 0x4, offset = 0x4, fixed_abs, tag = 'smem constant byte address 0x4 - core index']
  #allocation1 [shape = 'u32[144,128]{1,0:T(1,128)}', space=vmem, size = 0x12000, scoped, tag = 'internal scratch']
  %s0 = inlined_call_operand.vmem [shape: bf16[16,256], index: 0, kind: input, shape index: {}]
  %s1 = inlined_call_operand.vmem [shape: bf16[256,128], index: 1, kind: input, shape index: {}]
  %s2 = inlined_call_operand.vmem [shape: f32[16,1], index: 2, kind: input, shape index: {}]
  %s3 = inlined_call_operand.vmem [shape: f32[16,1], index: 3, kind: input, shape index: {}]
  %s4 = inlined_call_operand.vmem [shape: f32[16,128], index: 4, kind: output, shape index: {}]
  %s5 = sld [smem:[#allocation0]]
  $region26: #{alexnet_legacy_forward.13} parent=0
    _
  %s7 = ssub.s32 1, %s5
  %s8 = scalar_select 0, %s7, %s5
  // Predicated region
  $region2: #{alexnet_legacy_forward.13} parent=0 // pred_check
    _
  $region3: #{alexnet_legacy_forward.13} parent=0 // pred_check_branch
    %10 = sbr.rel (0) target = $region5
  $region4: #{alexnet_legacy_forward.13} parent=0 // pred_region
    _
  $region5: #{alexnet_legacy_forward.13} parent=0 // pred_fallthru
    _
  // Predicated region
  $region6: #{alexnet_legacy_forward.13} parent=0 // pred_check
    _
  $region7: #{alexnet_legacy_forward.13} parent=0 // pred_check_branch
    %12 = sbr.rel (0) target = $region9
  $region8: #{alexnet_legacy_forward.13} parent=0 // pred_region
    _
  $region9: #{alexnet_legacy_forward.13} parent=0 // pred_fallthru
    _
  // Predicated region
  $region10: #{alexnet_legacy_forward.13} parent=0 // pred_check
    _
  $region11: #{alexnet_legacy_forward.13} parent=0 // pred_check_branch
    %14 = sbr.rel (0) target = $region13
  $region12: #{alexnet_legacy_forward.13} parent=0 // pred_region
    _
  $region13: #{alexnet_legacy_forward.13} parent=0 // pred_fallthru
    _
  // Predicated region
  $region14: #{alexnet_legacy_forward.13} parent=0 // pred_check
    _
  $region15: #{alexnet_legacy_forward.13} parent=0 // pred_check_branch
    %16 = sbr.rel (0) target = $region17
  $region16: #{alexnet_legacy_forward.13} parent=0 // pred_region
    _
  $region17: #{alexnet_legacy_forward.13} parent=0 // pred_fallthru
    _
  %v18 = vld [vmem:[%s0] sm:$0xff]
  %v19 = vld [vmem:[%s0 + $0x8] sm:$0xff]
  %v20 = vld [vmem:[%s1] sm:$0xf]
  %v21 = vld [vmem:[%s1 + $0x4] sm:$0xf]
  %v22 = vld [vmem:[%s1 + $0x8] sm:$0xf]
  %v23 = vld [vmem:[%s1 + $0xc] sm:$0xf]
  %v24 = vld [vmem:[%s1 + $0x10] sm:$0xf]
  %v25 = vld [vmem:[%s1 + $0x14] sm:$0xf]
  %v26 = vld [vmem:[%s1 + $0x18] sm:$0xf]
  %v27 = vld [vmem:[%s1 + $0x1c] sm:$0xf]
  %v28 = vld [vmem:[%s1 + $0x20] sm:$0xf]
  %v29 = vld [vmem:[%s1 + $0x24] sm:$0xf]
  %v30 = vld [vmem:[%s1 + $0x28] sm:$0xf]
  %v31 = vld [vmem:[%s1 + $0x2c] sm:$0xf]
  %v32 = vld [vmem:[%s1 + $0x30] sm:$0xf]
  %v33 = vld [vmem:[%s1 + $0x34] sm:$0xf]
  %v34 = vld [vmem:[%s1 + $0x38] sm:$0xf]
  %v35 = vld [vmem:[%s1 + $0x3c] sm:$0xf]
  %v36 = vld [vmem:[%s1 + $0x40] sm:$0xf]
  %v37 = vld [vmem:[%s1 + $0x44] sm:$0xf]
  %v38 = vld [vmem:[%s1 + $0x48] sm:$0xf]
  %v39 = vld [vmem:[%s1 + $0x4c] sm:$0xf]
  %v40 = vld [vmem:[%s1 + $0x50] sm:$0xf]
  %v41 = vld [vmem:[%s1 + $0x54] sm:$0xf]
  %v42 = vld [vmem:[%s1 + $0x58] sm:$0xf]
  %v43 = vld [vmem:[%s1 + $0x5c] sm:$0xf]
  %v44 = vld [vmem:[%s1 + $0x60] sm:$0xf]
  %v45 = vld [vmem:[%s1 + $0x64] sm:$0xf]
  %v46 = vld [vmem:[%s1 + $0x68] sm:$0xf]
  %v47 = vld [vmem:[%s1 + $0x6c] sm:$0xf]
  %v48 = vld [vmem:[%s1 + $0x70] sm:$0xf]
  %v49 = vld [vmem:[%s1 + $0x74] sm:$0xf]
  %v50 = vld [vmem:[%s1 + $0x78] sm:$0xf]
  %v51 = vld [vmem:[%s1 + $0x7c] sm:$0xf]
  %v54 = vunpack.c.l.b16 %v18
  %v55 = vunpack.c.h.b16 %v18
  %v56 = vunpack.c.l.b16 %v19
  %v57 = vunpack.c.h.b16 %v19
  %v58 = vpack.c.b16 %v56, %v54
  %v59 = vpack.c.b16 %v57, %v55
  %v94 = vunpack.c.l.b16 %v20
  %v95 = vunpack.c.l.b16 %v21
  %v96 = vunpack.c.l.b16 %v22
  %v97 = vunpack.c.l.b16 %v23
  %v98 = vunpack.c.l.b16 %v24
  %v99 = vunpack.c.l.b16 %v25
  %v100 = vunpack.c.l.b16 %v26
  %v101 = vunpack.c.l.b16 %v27
  %v102 = vunpack.c.l.b16 %v28
  %v103 = vunpack.c.l.b16 %v29
  %v104 = vunpack.c.l.b16 %v30
  %v105 = vunpack.c.l.b16 %v31
  %v106 = vunpack.c.l.b16 %v32
  %v107 = vunpack.c.l.b16 %v33
  %v108 = vunpack.c.l.b16 %v34
  %v109 = vunpack.c.l.b16 %v35
  %v110 = vunpack.c.l.b16 %v36
  %v111 = vunpack.c.l.b16 %v37
  %v112 = vunpack.c.l.b16 %v38
  %v113 = vunpack.c.l.b16 %v39
  %v114 = vunpack.c.l.b16 %v40
  %v115 = vunpack.c.l.b16 %v41
  %v116 = vunpack.c.l.b16 %v42
  %v117 = vunpack.c.l.b16 %v43
  %v118 = vunpack.c.l.b16 %v44
  %v119 = vunpack.c.l.b16 %v45
  %v120 = vunpack.c.l.b16 %v46
  %v121 = vunpack.c.l.b16 %v47
  %v122 = vunpack.c.l.b16 %v48
  %v123 = vunpack.c.l.b16 %v49
  %v124 = vunpack.c.l.b16 %v50
  %v125 = vunpack.c.l.b16 %v51
  %v126 = vpack.c.b16 %v95, %v94
  %v127 = vpack.c.b16 %v97, %v96
  %v128 = vpack.c.b16 %v99, %v98
  %v129 = vpack.c.b16 %v101, %v100
  %v130 = vpack.c.b16 %v103, %v102
  %v131 = vpack.c.b16 %v105, %v104
  %v132 = vpack.c.b16 %v107, %v106
  %v133 = vpack.c.b16 %v109, %v108
  %v134 = vpack.c.b16 %v111, %v110
  %v135 = vpack.c.b16 %v113, %v112
  %v136 = vpack.c.b16 %v115, %v114
  %v137 = vpack.c.b16 %v117, %v116
  %v138 = vpack.c.b16 %v119, %v118
  %v139 = vpack.c.b16 %v121, %v120
  %v140 = vpack.c.b16 %v123, %v122
  %v141 = vpack.c.b16 %v125, %v124
  %158 = vmatprep.subr.bf16.mxu0 0
  %159 = vmatpush1.bf16.msra.mxu0 %v126
  %160 = vmatprep.subr.bf16.mxu0 0
  %161 = vmatpush1.bf16.msra.mxu0 %v127
  %162 = vmatprep.subr.bf16.mxu0 0
  %163 = vmatpush1.bf16.msra.mxu0 %v128
  %164 = vmatprep.subr.bf16.mxu0 0
  %165 = vmatpush1.bf16.msra.mxu0 %v129
  %166 = vmatprep.subr.bf16.mxu0 0
  %167 = vmatpush1.bf16.msra.mxu0 %v130
  %168 = vmatprep.subr.bf16.mxu0 0
  %169 = vmatpush1.bf16.msra.mxu0 %v131
  %170 = vmatprep.subr.bf16.mxu0 0
  %171 = vmatpush1.bf16.msra.mxu0 %v132
  %172 = vmatprep.subr.bf16.mxu0 0
  %173 = vmatpush1.bf16.msra.mxu0 %v133
  %174 = vmatprep.subr.bf16.mxu0 0
  %175 = vmatpush1.bf16.msra.mxu0 %v134
  %176 = vmatprep.subr.bf16.mxu0 0
  %177 = vmatpush1.bf16.msra.mxu0 %v135
  %178 = vmatprep.subr.bf16.mxu0 0
  %179 = vmatpush1.bf16.msra.mxu0 %v136
  %180 = vmatprep.subr.bf16.mxu0 0
  %181 = vmatpush1.bf16.msra.mxu0 %v137
  %182 = vmatprep.subr.bf16.mxu0 0
  %183 = vmatpush1.bf16.msra.mxu0 %v138
  %184 = vmatprep.subr.bf16.mxu0 0
  %185 = vmatpush1.bf16.msra.mxu0 %v139
  %186 = vmatprep.subr.bf16.mxu0 0
  %187 = vmatpush1.bf16.msra.mxu0 %v140
  %188 = vmatprep.subr.bf16.mxu0 0
  %189 = vmatpush1.bf16.msra.mxu0 %v141
  %190 = vmatprep.mubr.bf16.mxu0 %v59
  %191 = vmatmul.mubr.bf16.gmra.mrb[0].mxu0 %v58
  %v192 = vpop.f32.mrb[0].mxu0
  %v193 = vadd.f32 0.0, %v192
  %v194 = vpop.f32.mrb[0].mxu0
  %v195 = vpop.f32.mrb[0].mxu0
  %v196 = vadd.f32 0.0, %v195
  %v197 = vpop.f32.mrb[0].mxu0
  %198 = vdwg.mxu0
  %v199 = vld [vmem:[%s2] sm:$0xff]
  %v200 = vld [vmem:[%s2 + $0x8] sm:$0xff]
  %202 = vset.pattern.permute.xlu0 0
  %203 = vperm.xlu0 %202, %v199
  %v204 = vpop.permute.xlu0 %203
  %207 = vset.pattern.permute.xlu0 0
  %208 = vperm.xlu0 %207, %v200
  %v209 = vpop.permute.xlu0 %208
  %v211 = vmul.f32 %v193, %v204
  %v212 = vmul.f32 %v196, %v209
  %v213 = vld [vmem:[%s3] sm:$0xff]
  %v214 = vld [vmem:[%s3 + $0x8] sm:$0xff]
  %216 = vset.pattern.permute.xlu0 0
  %217 = vperm.xlu0 %216, %v213
  %v218 = vpop.permute.xlu0 %217
  %221 = vset.pattern.permute.xlu0 0
  %222 = vperm.xlu0 %221, %v214
  %v223 = vpop.permute.xlu0 %222
  %v225 = vadd.f32 %v211, %v218
  %v226 = vadd.f32 %v212, %v223
  %227 = vst [vmem:[%s4] sm:$0xff] %v225
  %228 = vst [vmem:[%s4 + $0x8] sm:$0xff] %v226
  // Predicated region
  $region18: #{alexnet_legacy_forward.13} parent=0 // pred_check
    _
  $region19: #{alexnet_legacy_forward.13} parent=0 // pred_check_branch
    %230 = sbr.rel (0) target = $region21
  $region20: #{alexnet_legacy_forward.13} parent=0 // pred_region
    _
  $region21: #{alexnet_legacy_forward.13} parent=0 // pred_fallthru
    _
  // Predicated region
  $region22: #{alexnet_legacy_forward.13} parent=0 // pred_check
    _
  $region23: #{alexnet_legacy_forward.13} parent=0 // pred_check_branch
    %232 = sbr.rel (0) target = $region25
  $region24: #{alexnet_legacy_forward.13} parent=0 // pred_region
    _
  $region25: #{alexnet_legacy_forward.13} parent=0 // pred_fallthru
    _

</llo_original>
